<compile_context>
chip_gen: v5e
topology: v5e:2x2
jax: 0.10.0
libtpu: 0.0.40
codegen_flags: <defaults>
</compile_context>

<pallas_src>
import numpy as np
import jax
import jax.numpy as jnp
from jax.experimental import pallas as pl
from jax.experimental.pallas import tpu as pltpu

NEG_SLOPE = 0.2
BN_EPS = 1e-5

# v7x-safe defaults.  v5e/v6e: MAX_TILE_M=1024 / vmem_limit ~64 MiB are safe and better.
MAX_TILE_M = 512
MIN_TILE_M = 256

_COMPILER_PARAMS = pltpu.CompilerParams(
    dimension_semantics=("parallel",),      # per-tile partial stats keep this megacore-safe
    vmem_limit_bytes=48 * 1024 * 1024,
)

# Whole-array VMEM operand: staged once before the grid, single-buffered (used for the
# weight matrix and the prologue scale/shift, whose block index never changes).
_WHOLE_VMEM = pl.BlockSpec(memory_space=pltpu.MemorySpace.VMEM)


# ------------------------------ small helpers --------------------------------

def _choose_tile_m(m):
    """Rows per grid step: biggest v7x-safe tile that divides M (avoids jnp.pad)."""
    if m <= MAX_TILE_M:
        return ((m + 7) // 8) * 8           # single tile, sublane-aligned
    if m % MAX_TILE_M == 0:
        return MAX_TILE_M
    for t in range(MAX_TILE_M, MIN_TILE_M - 1, -8):
        if m % t == 0:
            return t
    return MAX_TILE_M                        # fall back to padding the last tile's rows


def _pad_rows(x, mult):
    r = (-x.shape[0]) % mult
    return jnp.pad(x, ((0, r), (0, 0))) if r else x


# ------------------------------ Pallas kernels -------------------------------

def _gemm_lrelu_kernel(a_ref, b_ref, o_ref):
    # (tile_m, K) bf16 @ (K, Cout) bf16 -> f32 acc; LeakyReLU epilogue in f32 (VPU);
    # bf16 store halves the activation write.
    acc = jnp.dot(a_ref[...], b_ref[...], preferred_element_type=jnp.float32)
    o_ref[...] = jnp.where(acc > 0, acc, NEG_SLOPE * acc).astype(o_ref.dtype)


def _make_gemm_stats_kernel(m_valid, tile_m, fuse_prologue, mask_rows):
    """Conv GEMM writing the RAW conv output (bf16) + per-channel sum / sum-of-squares
    partials from the f32 accumulator.  When `fuse_prologue`, the PREVIOUS layer's BN
    affine + LeakyReLU is applied to the im2col A tile first (f32 VPU math)."""

    def kernel(*refs):
        if fuse_prologue:
            a_ref, b_ref, scale_ref, shift_ref, o_ref, sum_ref, sq_ref = refs
            a32 = a_ref[...].astype(jnp.float32)              # f32 math: v5e-safe
            y = a32 * scale_ref[...] + shift_ref[...]
            a = jnp.where(y > 0, y, NEG_SLOPE * y).astype(jnp.bfloat16)
        else:
            a_ref, b_ref, o_ref, sum_ref, sq_ref = refs
            a = a_ref[...]
        acc = jnp.dot(a, b_ref[...], preferred_element_type=jnp.float32)
        o_ref[...] = acc.astype(o_ref.dtype)                  # raw (pre-BN) conv output

        s = acc
        if mask_rows:
            # Padded A rows are not zero once the prologue is applied; keep them out of
            # the batch statistics.
            rows = (jax.lax.broadcasted_iota(jnp.int32, (tile_m, 1), 0)
                    + pl.program_id(0) * tile_m)
            s = jnp.where(rows < m_valid, acc, 0.0)
        s3 = s.reshape(tile_m // 8, 8, s.shape[-1])           # split sublane groups only
        sum_ref[...] = jnp.sum(s3, axis=0)                    # (8, Cout) per-tile partial
        sq_ref[...] = jnp.sum(s3 * s3, axis=0)

    return kernel


# ------------------------------ Pallas wrappers ------------------------------

def pallas_gemm_lrelu(a, b):
    """a: (M, K) bf16 patches, b: (K, Cout) bf16 -> (Mp, Cout) bf16 with LeakyReLU."""
    M, K = a.shape
    Cout = b.shape[1]
    tile_m = _choose_tile_m(M)
    ap = _pad_rows(a, tile_m)
    Mp = ap.shape[0]
    return pl.pallas_call(
        _gemm_lrelu_kernel,
        out_shape=jax.ShapeDtypeStruct((Mp, Cout), jnp.bfloat16),
        grid=(Mp // tile_m,),
        in_specs=[pl.BlockSpec((tile_m, K), lambda i: (i, 0)),
                  _WHOLE_VMEM],
        out_specs=pl.BlockSpec((tile_m, Cout), lambda i: (i, 0)),
        compiler_params=_COMPILER_PARAMS,
    )(ap, b)


def pallas_gemm_stats(a, b, scale=None, shift=None):
    """Conv GEMM with fused BN batch statistics and (optionally) the previous layer's
    BN affine + LeakyReLU fused as a prologue on the A tile.

    a: (M, K) bf16 im2col patches of the previous layer's RAW conv output,
    b: (K, Cout) bf16 weight matrix,
    scale/shift: (1, K) f32 per-channel affine tiled k*k times along K (or None).
    Returns ((Mp, Cout) bf16 raw conv output, (Cout,) f32 sum, (Cout,) f32 sum-of-squares).
    """
    M, K = a.shape
    Cout = b.shape[1]
    tile_m = _choose_tile_m(M)
    ap = _pad_rows(a, tile_m)
    Mp = ap.shape[0]
    n_tiles = Mp // tile_m
    fuse = scale is not None

    kernel = _make_gemm_stats_kernel(M, tile_m, fuse, Mp != M)
    in_specs = [pl.BlockSpec((tile_m, K), lambda i: (i, 0)), _WHOLE_VMEM]
    operands = [ap, b]
    if fuse:
        in_specs += [_WHOLE_VMEM, _WHOLE_VMEM]
        operands += [scale, shift]

    out, sums, sqs = pl.pallas_call(
        kernel,
        out_shape=(jax.ShapeDtypeStruct((Mp, Cout), jnp.bfloat16),
                   jax.ShapeDtypeStruct((n_tiles * 8, Cout), jnp.float32),
                   jax.ShapeDtypeStruct((n_tiles * 8, Cout), jnp.float32)),
        grid=(n_tiles,),
        in_specs=in_specs,
        out_specs=(pl.BlockSpec((tile_m, Cout), lambda i: (i, 0)),
                   pl.BlockSpec((8, Cout), lambda i: (i, 0)),
                   pl.BlockSpec((8, Cout), lambda i: (i, 0))),
        compiler_params=_COMPILER_PARAMS,
    )(*operands)
    return out, jnp.sum(sums, axis=0), jnp.sum(sqs, axis=0)


# ------------------------------ conv-as-GEMM glue ----------------------------

def _im2col_nhwc(x, k, stride, pad, pad_value=None):
    """x: (N,H,W,C) -> patches (N*Ho*Wo, k*k*C), (kh,kw,C) ordering (C lane-contiguous).

    `pad_value` (per-channel, shape (C,)) fills the spatial border; used so that the
    raw-domain padding maps to 0 after the fused BN-affine + LeakyReLU prologue.
    """
    N, H, W, C = x.shape
    if pad:
        if pad_value is None:
            x = jnp.pad(x, ((0, 0), (pad, pad), (pad, pad), (0, 0)))
        else:
            full = jnp.broadcast_to(pad_value.astype(x.dtype),
                                    (N, H + 2 * pad, W + 2 * pad, C))
            x = full.at[:, pad:pad + H, pad:pad + W, :].set(x)
    Hp, Wp = x.shape[1], x.shape[2]
    Ho = (Hp - k) // stride + 1
    Wo = (Wp - k) // stride + 1
    cols = []
    for kh in range(k):
        for kw in range(k):
            cols.append(x[:, kh:kh + stride * (Ho - 1) + 1:stride,
                          kw:kw + stride * (Wo - 1) + 1:stride, :])
    p = jnp.stack(cols, axis=3)                      # (N, Ho, Wo, k*k, C)
    return p.reshape(N * Ho * Wo, k * k * C), Ho, Wo


def _weight_matrix(w):
    """w: (Cout, Cin, kh, kw) -> (kh*kw*Cin, Cout), matching the im2col K ordering."""
    cout = w.shape[0]
    return jnp.transpose(w, (2, 3, 1, 0)).reshape(-1, cout)


# ------------------------------ forward pass ---------------------------------

def discriminator_forward(x, params):
    N = x.shape[0]
    # Single NCHW->NHWC transpose + bf16 cast at the boundary; activations stay NHWC/bf16.
    h = jnp.transpose(x, (0, 2, 3, 1)).astype(jnp.bfloat16)

    # Block 1: Conv(nc->ndf, k=4, s=4, p=0) with LeakyReLU fused into the GEMM epilogue.
    patches, Ho, Wo = _im2col_nhwc(h, 4, 4, 0)
    w1 = _weight_matrix(params['w1']).astype(jnp.bfloat16)
    cout = w1.shape[1]
    M = N * Ho * Wo
    out = pallas_gemm_lrelu(patches, w1)
    h = out[:M].reshape(N, Ho, Wo, cout)

    # Blocks 2-4: Conv(k=4, s=2, p=1) + BatchNorm(batch stats) + LeakyReLU.
    # Each GEMM emits the RAW conv output + f32 channel sums; BN affine + LeakyReLU of
    # layer L is applied as the prologue of layer L+1's GEMM (no extra HBM pass).
    scale_k = shift_k = pad_raw = None
    scale_c = shift_c = None
    for wn, gn, bn_ in (('w2', 'g2', 'b2'), ('w3', 'g3', 'b3'), ('w4', 'g4', 'b4')):
        patches, Ho, Wo = _im2col_nhwc(h, 4, 2, 1, pad_value=pad_raw)
        wmat = _weight_matrix(params[wn]).astype(jnp.bfloat16)
        cout = wmat.shape[1]
        M = N * Ho * Wo
        raw, ssum, ssq = pallas_gemm_stats(patches, wmat, scale_k, shift_k)

        mean = ssum / M
        var = jnp.maximum(ssq / M - mean * mean, 0.0)   # clamp: single-pass var can go < 0
        scale_c = params[gn] / jnp.sqrt(var + BN_EPS)
        shift_c = params[bn_] - mean * scale_c
        # Prologue params for the NEXT conv: per-channel affine tiled k*k times to match
        # the (kh, kw, C) im2col K ordering; spatial border filled with the raw-domain
        # preimage of 0 (assumes gamma != 0, true for standard BN init).
        scale_k = jnp.tile(scale_c, 16)[None, :]
        shift_k = jnp.tile(shift_c, 16)[None, :]
        pad_raw = -shift_c / scale_c

        h = raw[:M].reshape(N, Ho, Wo, cout)            # RAW (pre-BN) conv output, bf16

    # Block 4's BN affine + LeakyReLU and Block 5: Conv(ndf*8 -> 1, k=4, s=1, p=0).
    # M = batch, Cout = 1: a padded MXU pass would be >99% idle, so plain f32 XLA dot.
    h4 = h.astype(jnp.float32) * scale_c + shift_c
    h4 = jnp.where(h4 > 0, h4, NEG_SLOPE * h4)
    patches, Ho, Wo = _im2col_nhwc(h4, 4, 1, 0)
    wmat5 = _weight_matrix(params['w5'])                 # (k*k*Cin, 1) f32
    out = jnp.dot(patches, wmat5, precision=jax.lax.Precision.HIGHEST)
    out = out.reshape(N, Ho, Wo, 1)
    return jnp.transpose(out, (0, 3, 1, 2))              # -> NCHW (N, 1, Ho, Wo)


# ------------------------------ params / reference ---------------------------

def init_params(key, nc, ndf):
    ks = jax.random.split(key, 5)

    def w(k, cout, cin):
        return 0.02 * jax.random.normal(k, (cout, cin, 4, 4), jnp.float32)

    return {
        'w1': w(ks[0], ndf, nc),
        'w2': w(ks[1], ndf * 2, ndf),
        'g2': jnp.ones((ndf * 2,), jnp.float32),
        'b2': jnp.zeros((ndf * 2,), jnp.float32),
        'w3': w(ks[2], ndf * 4, ndf * 2),
        'g3': jnp.ones((ndf * 4,), jnp.float32),
        'b3': jnp.zeros((ndf * 4,), jnp.float32),
        'w4': w(ks[3], ndf * 8, ndf * 4),
        'g4': jnp.ones((ndf * 8,), jnp.float32),
        'b4': jnp.zeros((ndf * 8,), jnp.float32),
        'w5': w(ks[4], 1, ndf * 8),
    }


def ref_forward(x, p):
    lrelu = lambda v: jnp.where(v > 0, v, NEG_SLOPE * v)

    def conv(v, w, s, pad):
        return jax.lax.conv_general_dilated(
            v, w, (s, s), [(pad, pad), (pad, pad)],
            dimension_numbers=('NCHW', 'OIHW', 'NCHW'),
            precision=jax.lax.Precision.HIGHEST)

    def bn(v, g, b):
        m = jnp.mean(v, axis=(0, 2, 3), keepdims=True)
        var = jnp.mean((v - m) ** 2, axis=(0, 2, 3), keepdims=True)
        return ((v - m) / jnp.sqrt(var + BN_EPS)
                * g.reshape(1, -1, 1, 1) + b.reshape(1, -1, 1, 1))

    h = lrelu(conv(x, p['w1'], 4, 0))
    h = lrelu(bn(conv(h, p['w2'], 2, 1), p['g2'], p['b2']))
    h = lrelu(bn(conv(h, p['w3'], 2, 1), p['g3'], p['b3']))
    h = lrelu(bn(conv(h, p['w4'], 2, 1), p['g4'], p['b4']))
    return conv(h, p['w5'], 1, 0)


if __name__ == "__main__":
    key = jax.random.PRNGKey(0)
    kx, kp = jax.random.split(key)
    ndf, nc = 8, 3
    # 128x128 input is the smallest spatial size this architecture supports
    # (the final 4x4 valid conv needs a 4x4 feature map after /4, /2, /2, /2).
    x = jax.random.normal(kx, (2, nc, 128, 128), jnp.float32)
    params = init_params(kp, nc, ndf)

    fwd = jax.jit(discriminator_forward)
    out = fwd(x, params)
    jax.block_until_ready(out)
    assert out.shape == (2, 1, 1, 1), out.shape

    ref = ref_forward(x, params)
    # GEMMs run bf16-in / f32-accumulate and activations are stored bf16, vs the pure
    # f32-HIGHEST reference; per-layer relative error ~2e-3 compounds over 5 layers.
    np.testing.assert_allclose(np.asarray(out), np.asarray(ref),
                               rtol=5e-2, atol=5e-2)
    print("KERNEL_OK")
</pallas_src>

<mosaic_0001>
module attributes {stable_mosaic.version = 11 : i64} {
  func.func @_gemm_lrelu_kernel(%arg0: i32, %arg1: memref<512x48xbf16, #tpu.memory_space<vmem>>, %arg2: memref<48x8xbf16, #tpu.memory_space<vmem>>, %arg3: memref<512x8xbf16, #tpu.memory_space<vmem>>) attributes {dimension_semantics = [#tpu.dimension_semantics<parallel>], iteration_bounds = array<i64: 4>, scalar_prefetch = 0 : i64, scratch_operands = 0 : i64, tpu.core_type = #tpu.core_type<tc>, window_params = [{transform_indices = @transform_0, window_bounds = array<i64: 512, 48>}, {pipeline_mode = #tpu.pipeline_mode<synchronous>, transform_indices = @transform_1, window_bounds = array<i64: 48, 8>}, {transform_indices = @transform_2, window_bounds = array<i64: 512, 8>}]} {
    %c0 = arith.constant 0 : index
    %c0_0 = arith.constant 0 : index
    %0 = vector.load %arg1[%c0, %c0_0] : memref<512x48xbf16, #tpu.memory_space<vmem>>, vector<512x48xbf16>
    %c0_1 = arith.constant 0 : index
    %c0_2 = arith.constant 0 : index
    %1 = vector.load %arg2[%c0_1, %c0_2] : memref<48x8xbf16, #tpu.memory_space<vmem>>, vector<48x8xbf16>
    %cst = arith.constant dense<0.000000e+00> : vector<512x8xf32>
    %2 = tpu.matmul %0, %1, %cst {dimension_numbers = #tpu.dot_dimension_numbers<[1], [0], [0], [1], [0, 0, 1, 1], [], []>} : vector<512x48xbf16>, vector<48x8xbf16>, vector<512x8xf32> -> vector<512x8xf32>
    %cst_3 = arith.constant 0.000000e+00 : f32
    %3 = vector.broadcast %cst_3 : f32 to vector<512x8xf32>
    %4 = arith.cmpf ogt, %2, %3 : vector<512x8xf32>
    %cst_4 = arith.constant 2.000000e-01 : f32
    %5 = vector.broadcast %cst_4 : f32 to vector<512x8xf32>
    %6 = arith.mulf %5, %2 : vector<512x8xf32>
    %7 = arith.select %4, %2, %6 : vector<512x8xi1>, vector<512x8xf32>
    %8 = arith.truncf %7 : vector<512x8xf32> to vector<512x8xbf16>
    %c0_5 = arith.constant 0 : index
    %c0_6 = arith.constant 0 : index
    %9 = vector.load %arg3[%c0_5, %c0_6] : memref<512x8xbf16, #tpu.memory_space<vmem>>, vector<512x8xbf16>
    tpu.vector_store %arg3[%c0_5, %c0_6], %8 {strides = array<i32>} : memref<512x8xbf16, #tpu.memory_space<vmem>>, vector<512x8xbf16>,
    return
  }
  func.func @transform_0(%arg0: i32) -> (i32, i32) {
    %c0_i32 = arith.constant 0 : i32
    %c0_i32_0 = arith.constant 0 : i32
    return %arg0, %c0_i32 : i32, i32
  }
  func.func @transform_1(%arg0: i32) -> (i32, i32) {
    %c0_i32 = arith.constant 0 : i32
    %c0_i32_0 = arith.constant 0 : i32
    %c0_i32_1 = arith.constant 0 : i32
    return %c0_i32, %c0_i32_0 : i32, i32
  }
  func.func @transform_2(%arg0: i32) -> (i32, i32) {
    %c0_i32 = arith.constant 0 : i32
    %c0_i32_0 = arith.constant 0 : i32
    return %arg0, %c0_i32 : i32, i32
  }
}

module attributes {stable_mosaic.version = 11 : i64} {
  func.func @kernel(%arg0: i32, %arg1: memref<512x128xbf16, #tpu.memory_space<vmem>>, %arg2: memref<128x16xbf16, #tpu.memory_space<vmem>>, %arg3: memref<512x16xbf16, #tpu.memory_space<vmem>>, %arg4: memref<8x16xf32, #tpu.memory_space<vmem>>, %arg5: memref<8x16xf32, #tpu.memory_space<vmem>>) attributes {dimension_semantics = [#tpu.dimension_semantics<parallel>], iteration_bounds = array<i64: 1>, scalar_prefetch = 0 : i64, scratch_operands = 0 : i64, tpu.core_type = #tpu.core_type<tc>, window_params = [{transform_indices = @transform_0, window_bounds = array<i64: 512, 128>}, {pipeline_mode = #tpu.pipeline_mode<synchronous>, transform_indices = @transform_1, window_bounds = array<i64: 128, 16>}, {transform_indices = @transform_2, window_bounds = array<i64: 512, 16>}, {transform_indices = @transform_3, window_bounds = array<i64: 8, 16>}, {transform_indices = @transform_4, window_bounds = array<i64: 8, 16>}]} {
    %c0 = arith.constant 0 : index
    %c0_0 = arith.constant 0 : index
    %0 = vector.load %arg1[%c0, %c0_0] : memref<512x128xbf16, #tpu.memory_space<vmem>>, vector<512x128xbf16>
    %c0_1 = arith.constant 0 : index
    %c0_2 = arith.constant 0 : index
    %1 = vector.load %arg2[%c0_1, %c0_2] : memref<128x16xbf16, #tpu.memory_space<vmem>>, vector<128x16xbf16>
    %cst = arith.constant dense<0.000000e+00> : vector<512x16xf32>
    %2 = tpu.matmul %0, %1, %cst {dimension_numbers = #tpu.dot_dimension_numbers<[1], [0], [0], [1], [0, 0, 1, 1], [], []>} : vector<512x128xbf16>, vector<128x16xbf16>, vector<512x16xf32> -> vector<512x16xf32>
    %3 = arith.truncf %2 : vector<512x16xf32> to vector<512x16xbf16>
    %c0_3 = arith.constant 0 : index
    %c0_4 = arith.constant 0 : index
    %4 = vector.load %arg3[%c0_3, %c0_4] : memref<512x16xbf16, #tpu.memory_space<vmem>>, vector<512x16xbf16>
    tpu.vector_store %arg3[%c0_3, %c0_4], %3 {strides = array<i32>} : memref<512x16xbf16, #tpu.memory_space<vmem>>, vector<512x16xbf16>,
    %5 = vector.shape_cast %2 : vector<512x16xf32> to vector<64x8x16xf32>
    %cst_5 = arith.constant dense<0.000000e+00> : vector<8x16xf32>
    %6 = vector.multi_reduction <add>, %5, %cst_5 [0] : vector<64x8x16xf32> to vector<8x16xf32>
    %c0_6 = arith.constant 0 : index
    %c0_7 = arith.constant 0 : index
    %7 = vector.load %arg4[%c0_6, %c0_7] : memref<8x16xf32, #tpu.memory_space<vmem>>, vector<8x16xf32>
    tpu.vector_store %arg4[%c0_6, %c0_7], %6 {strides = array<i32>} : memref<8x16xf32, #tpu.memory_space<vmem>>, vector<8x16xf32>,
    %8 = arith.mulf %5, %5 : vector<64x8x16xf32>
    %cst_8 = arith.constant dense<0.000000e+00> : vector<8x16xf32>
    %9 = vector.multi_reduction <add>, %8, %cst_8 [0] : vector<64x8x16xf32> to vector<8x16xf32>
    %c0_9 = arith.constant 0 : index
    %c0_10 = arith.constant 0 : index
    %10 = vector.load %arg5[%c0_9, %c0_10] : memref<8x16xf32, #tpu.memory_space<vmem>>, vector<8x16xf32>
    tpu.vector_store %arg5[%c0_9, %c0_10], %9 {strides = array<i32>} : memref<8x16xf32, #tpu.memory_space<vmem>>, vector<8x16xf32>,
    return
  }
  func.func @transform_0(%arg0: i32) -> (i32, i32) {
    %c0_i32 = arith.constant 0 : i32
    %c0_i32_0 = arith.constant 0 : i32
    return %arg0, %c0_i32 : i32, i32
  }
  func.func @transform_1(%arg0: i32) -> (i32, i32) {
    %c0_i32 = arith.constant 0 : i32
    %c0_i32_0 = arith.constant 0 : i32
    %c0_i32_1 = arith.constant 0 : i32
    return %c0_i32, %c0_i32_0 : i32, i32
  }
  func.func @transform_2(%arg0: i32) -> (i32, i32) {
    %c0_i32 = arith.constant 0 : i32
    %c0_i32_0 = arith.constant 0 : i32
    return %arg0, %c0_i32 : i32, i32
  }
  func.func @transform_3(%arg0: i32) -> (i32, i32) {
    %c0_i32 = arith.constant 0 : i32
    %c0_i32_0 = arith.constant 0 : i32
    return %arg0, %c0_i32 : i32, i32
  }
  func.func @transform_4(%arg0: i32) -> (i32, i32) {
    %c0_i32 = arith.constant 0 : i32
    %c0_i32_0 = arith.constant 0 : i32
    return %arg0, %c0_i32 : i32, i32
  }
}

module attributes {stable_mosaic.version = 11 : i64} {
  func.func @kernel(%arg0: i32, %arg1: memref<128x256xbf16, #tpu.memory_space<vmem>>, %arg2: memref<256x32xbf16, #tpu.memory_space<vmem>>, %arg3: memref<1x256xf32, #tpu.memory_space<vmem>>, %arg4: memref<1x256xf32, #tpu.memory_space<vmem>>, %arg5: memref<128x32xbf16, #tpu.memory_space<vmem>>, %arg6: memref<8x32xf32, #tpu.memory_space<vmem>>, %arg7: memref<8x32xf32, #tpu.memory_space<vmem>>) attributes {dimension_semantics = [#tpu.dimension_semantics<parallel>], iteration_bounds = array<i64: 1>, scalar_prefetch = 0 : i64, scratch_operands = 0 : i64, tpu.core_type = #tpu.core_type<tc>, window_params = [{transform_indices = @transform_0, window_bounds = array<i64: 128, 256>}, {pipeline_mode = #tpu.pipeline_mode<synchronous>, transform_indices = @transform_1, window_bounds = array<i64: 256, 32>}, {pipeline_mode = #tpu.pipeline_mode<synchronous>, transform_indices = @transform_2, window_bounds = array<i64: 1, 256>}, {pipeline_mode = #tpu.pipeline_mode<synchronous>, transform_indices = @transform_3, window_bounds = array<i64: 1, 256>}, {transform_indices = @transform_4, window_bounds = array<i64: 128, 32>}, {transform_indices = @transform_5, window_bounds = array<i64: 8, 32>}, {transform_indices = @transform_6, window_bounds = array<i64: 8, 32>}]} {
    %c0 = arith.constant 0 : index
    %c0_0 = arith.constant 0 : index
    %0 = vector.load %arg1[%c0, %c0_0] : memref<128x256xbf16, #tpu.memory_space<vmem>>, vector<128x256xbf16>
    %1 = arith.extf %0 : vector<128x256xbf16> to vector<128x256xf32>
    %c0_1 = arith.constant 0 : index
    %c0_2 = arith.constant 0 : index
    %2 = vector.load %arg3[%c0_1, %c0_2] : memref<1x256xf32, #tpu.memory_space<vmem>>, vector<1x256xf32>
    %3 = vector.broadcast %2 : vector<1x256xf32> to vector<128x256xf32>
    %4 = arith.mulf %1, %3 : vector<128x256xf32>
    %c0_3 = arith.constant 0 : index
    %c0_4 = arith.constant 0 : index
    %5 = vector.load %arg4[%c0_3, %c0_4] : memref<1x256xf32, #tpu.memory_space<vmem>>, vector<1x256xf32>
    %6 = vector.broadcast %5 : vector<1x256xf32> to vector<128x256xf32>
    %7 = arith.addf %4, %6 : vector<128x256xf32>
    %cst = arith.constant 0.000000e+00 : f32
    %8 = vector.broadcast %cst : f32 to vector<128x256xf32>
    %9 = arith.cmpf ogt, %7, %8 : vector<128x256xf32>
    %cst_5 = arith.constant 2.000000e-01 : f32
    %10 = vector.broadcast %cst_5 : f32 to vector<128x256xf32>
    %11 = arith.mulf %10, %7 : vector<128x256xf32>
    %12 = arith.select %9, %7, %11 : vector<128x256xi1>, vector<128x256xf32>
    %13 = arith.truncf %12 : vector<128x256xf32> to vector<128x256xbf16>
    %c0_6 = arith.constant 0 : index
    %c0_7 = arith.constant 0 : index
    %14 = vector.load %arg2[%c0_6, %c0_7] : memref<256x32xbf16, #tpu.memory_space<vmem>>, vector<256x32xbf16>
    %cst_8 = arith.constant dense<0.000000e+00> : vector<128x32xf32>
    %15 = tpu.matmul %13, %14, %cst_8 {dimension_numbers = #tpu.dot_dimension_numbers<[1], [0], [0], [1], [0, 0, 1, 1], [], []>} : vector<128x256xbf16>, vector<256x32xbf16>, vector<128x32xf32> -> vector<128x32xf32>
    %16 = arith.truncf %15 : vector<128x32xf32> to vector<128x32xbf16>
    %c0_9 = arith.constant 0 : index
    %c0_10 = arith.constant 0 : index
    %17 = vector.load %arg5[%c0_9, %c0_10] : memref<128x32xbf16, #tpu.memory_space<vmem>>, vector<128x32xbf16>
    tpu.vector_store %arg5[%c0_9, %c0_10], %16 {strides = array<i32>} : memref<128x32xbf16, #tpu.memory_space<vmem>>, vector<128x32xbf16>,
    %18 = vector.shape_cast %15 : vector<128x32xf32> to vector<16x8x32xf32>
    %cst_11 = arith.constant dense<0.000000e+00> : vector<8x32xf32>
    %19 = vector.multi_reduction <add>, %18, %cst_11 [0] : vector<16x8x32xf32> to vector<8x32xf32>
    %c0_12 = arith.constant 0 : index
    %c0_13 = arith.constant 0 : index
    %20 = vector.load %arg6[%c0_12, %c0_13] : memref<8x32xf32, #tpu.memory_space<vmem>>, vector<8x32xf32>
    tpu.vector_store %arg6[%c0_12, %c0_13], %19 {strides = array<i32>} : memref<8x32xf32, #tpu.memory_space<vmem>>, vector<8x32xf32>,
    %21 = arith.mulf %18, %18 : vector<16x8x32xf32>
    %cst_14 = arith.constant dense<0.000000e+00> : vector<8x32xf32>
    %22 = vector.multi_reduction <add>, %21, %cst_14 [0] : vector<16x8x32xf32> to vector<8x32xf32>
    %c0_15 = arith.constant 0 : index
    %c0_16 = arith.constant 0 : index
    %23 = vector.load %arg7[%c0_15, %c0_16] : memref<8x32xf32, #tpu.memory_space<vmem>>, vector<8x32xf32>
    tpu.vector_store %arg7[%c0_15, %c0_16], %22 {strides = array<i32>} : memref<8x32xf32, #tpu.memory_space<vmem>>, vector<8x32xf32>,
    return
  }
  func.func @transform_0(%arg0: i32) -> (i32, i32) {
    %c0_i32 = arith.constant 0 : i32
    %c0_i32_0 = arith.constant 0 : i32
    return %arg0, %c0_i32 : i32, i32
  }
  func.func @transform_1(%arg0: i32) -> (i32, i32) {
    %c0_i32 = arith.constant 0 : i32
    %c0_i32_0 = arith.constant 0 : i32
    %c0_i32_1 = arith.constant 0 : i32
    return %c0_i32, %c0_i32_0 : i32, i32
  }
  func.func @transform_2(%arg0: i32) -> (i32, i32) {
    %c0_i32 = arith.constant 0 : i32
    %c0_i32_0 = arith.constant 0 : i32
    %c0_i32_1 = arith.constant 0 : i32
    return %c0_i32, %c0_i32_0 : i32, i32
  }
  func.func @transform_3(%arg0: i32) -> (i32, i32) {
    %c0_i32 = arith.constant 0 : i32
    %c0_i32_0 = arith.constant 0 : i32
    %c0_i32_1 = arith.constant 0 : i32
    return %c0_i32, %c0_i32_0 : i32, i32
  }
  func.func @transform_4(%arg0: i32) -> (i32, i32) {
    %c0_i32 = arith.constant 0 : i32
    %c0_i32_0 = arith.constant 0 : i32
    return %arg0, %c0_i32 : i32, i32
  }
  func.func @transform_5(%arg0: i32) -> (i32, i32) {
    %c0_i32 = arith.constant 0 : i32
    %c0_i32_0 = arith.constant 0 : i32
    return %arg0, %c0_i32 : i32, i32
  }
  func.func @transform_6(%arg0: i32) -> (i32, i32) {
    %c0_i32 = arith.constant 0 : i32
    %c0_i32_0 = arith.constant 0 : i32
    return %arg0, %c0_i32 : i32, i32
  }
}

module attributes {stable_mosaic.version = 11 : i64} {
  func.func @kernel(%arg0: i32, %arg1: memref<32x512xbf16, #tpu.memory_space<vmem>>, %arg2: memref<512x64xbf16, #tpu.memory_space<vmem>>, %arg3: memref<1x512xf32, #tpu.memory_space<vmem>>, %arg4: memref<1x512xf32, #tpu.memory_space<vmem>>, %arg5: memref<32x64xbf16, #tpu.memory_space<vmem>>, %arg6: memref<8x64xf32, #tpu.memory_space<vmem>>, %arg7: memref<8x64xf32, #tpu.memory_space<vmem>>) attributes {dimension_semantics = [#tpu.dimension_semantics<parallel>], iteration_bounds = array<i64: 1>, scalar_prefetch = 0 : i64, scratch_operands = 0 : i64, tpu.core_type = #tpu.core_type<tc>, window_params = [{transform_indices = @transform_0, window_bounds = array<i64: 32, 512>}, {pipeline_mode = #tpu.pipeline_mode<synchronous>, transform_indices = @transform_1, window_bounds = array<i64: 512, 64>}, {pipeline_mode = #tpu.pipeline_mode<synchronous>, transform_indices = @transform_2, window_bounds = array<i64: 1, 512>}, {pipeline_mode = #tpu.pipeline_mode<synchronous>, transform_indices = @transform_3, window_bounds = array<i64: 1, 512>}, {transform_indices = @transform_4, window_bounds = array<i64: 32, 64>}, {transform_indices = @transform_5, window_bounds = array<i64: 8, 64>}, {transform_indices = @transform_6, window_bounds = array<i64: 8, 64>}]} {
    %c0 = arith.constant 0 : index
    %c0_0 = arith.constant 0 : index
    %0 = vector.load %arg1[%c0, %c0_0] : memref<32x512xbf16, #tpu.memory_space<vmem>>, vector<32x512xbf16>
    %1 = arith.extf %0 : vector<32x512xbf16> to vector<32x512xf32>
    %c0_1 = arith.constant 0 : index
    %c0_2 = arith.constant 0 : index
    %2 = vector.load %arg3[%c0_1, %c0_2] : memref<1x512xf32, #tpu.memory_space<vmem>>, vector<1x512xf32>
    %3 = vector.broadcast %2 : vector<1x512xf32> to vector<32x512xf32>
    %4 = arith.mulf %1, %3 : vector<32x512xf32>
    %c0_3 = arith.constant 0 : index
    %c0_4 = arith.constant 0 : index
    %5 = vector.load %arg4[%c0_3, %c0_4] : memref<1x512xf32, #tpu.memory_space<vmem>>, vector<1x512xf32>
    %6 = vector.broadcast %5 : vector<1x512xf32> to vector<32x512xf32>
    %7 = arith.addf %4, %6 : vector<32x512xf32>
    %cst = arith.constant 0.000000e+00 : f32
    %8 = vector.broadcast %cst : f32 to vector<32x512xf32>
    %9 = arith.cmpf ogt, %7, %8 : vector<32x512xf32>
    %cst_5 = arith.constant 2.000000e-01 : f32
    %10 = vector.broadcast %cst_5 : f32 to vector<32x512xf32>
    %11 = arith.mulf %10, %7 : vector<32x512xf32>
    %12 = arith.select %9, %7, %11 : vector<32x512xi1>, vector<32x512xf32>
    %13 = arith.truncf %12 : vector<32x512xf32> to vector<32x512xbf16>
    %c0_6 = arith.constant 0 : index
    %c0_7 = arith.constant 0 : index
    %14 = vector.load %arg2[%c0_6, %c0_7] : memref<512x64xbf16, #tpu.memory_space<vmem>>, vector<512x64xbf16>
    %cst_8 = arith.constant dense<0.000000e+00> : vector<32x64xf32>
    %15 = tpu.matmul %13, %14, %cst_8 {dimension_numbers = #tpu.dot_dimension_numbers<[1], [0], [0], [1], [0, 0, 1, 1], [], []>} : vector<32x512xbf16>, vector<512x64xbf16>, vector<32x64xf32> -> vector<32x64xf32>
    %16 = arith.truncf %15 : vector<32x64xf32> to vector<32x64xbf16>
    %c0_9 = arith.constant 0 : index
    %c0_10 = arith.constant 0 : index
    %17 = vector.load %arg5[%c0_9, %c0_10] : memref<32x64xbf16, #tpu.memory_space<vmem>>, vector<32x64xbf16>
    tpu.vector_store %arg5[%c0_9, %c0_10], %16 {strides = array<i32>} : memref<32x64xbf16, #tpu.memory_space<vmem>>, vector<32x64xbf16>,
    %18 = vector.shape_cast %15 : vector<32x64xf32> to vector<4x8x64xf32>
    %cst_11 = arith.constant dense<0.000000e+00> : vector<8x64xf32>
    %19 = vector.multi_reduction <add>, %18, %cst_11 [0] : vector<4x8x64xf32> to vector<8x64xf32>
    %c0_12 = arith.constant 0 : index
    %c0_13 = arith.constant 0 : index
    %20 = vector.load %arg6[%c0_12, %c0_13] : memref<8x64xf32, #tpu.memory_space<vmem>>, vector<8x64xf32>
    tpu.vector_store %arg6[%c0_12, %c0_13], %19 {strides = array<i32>} : memref<8x64xf32, #tpu.memory_space<vmem>>, vector<8x64xf32>,
    %21 = arith.mulf %18, %18 : vector<4x8x64xf32>
    %cst_14 = arith.constant dense<0.000000e+00> : vector<8x64xf32>
    %22 = vector.multi_reduction <add>, %21, %cst_14 [0] : vector<4x8x64xf32> to vector<8x64xf32>
    %c0_15 = arith.constant 0 : index
    %c0_16 = arith.constant 0 : index
    %23 = vector.load %arg7[%c0_15, %c0_16] : memref<8x64xf32, #tpu.memory_space<vmem>>, vector<8x64xf32>
    tpu.vector_store %arg7[%c0_15, %c0_16], %22 {strides = array<i32>} : memref<8x64xf32, #tpu.memory_space<vmem>>, vector<8x64xf32>,
    return
  }
  func.func @transform_0(%arg0: i32) -> (i32, i32) {
    %c0_i32 = arith.constant 0 : i32
    %c0_i32_0 = arith.constant 0 : i32
    return %arg0, %c0_i32 : i32, i32
  }
  func.func @transform_1(%arg0: i32) -> (i32, i32) {
    %c0_i32 = arith.constant 0 : i32
    %c0_i32_0 = arith.constant 0 : i32
    %c0_i32_1 = arith.constant 0 : i32
    return %c0_i32, %c0_i32_0 : i32, i32
  }
  func.func @transform_2(%arg0: i32) -> (i32, i32) {
    %c0_i32 = arith.constant 0 : i32
    %c0_i32_0 = arith.constant 0 : i32
    %c0_i32_1 = arith.constant 0 : i32
    return %c0_i32, %c0_i32_0 : i32, i32
  }
  func.func @transform_3(%arg0: i32) -> (i32, i32) {
    %c0_i32 = arith.constant 0 : i32
    %c0_i32_0 = arith.constant 0 : i32
    %c0_i32_1 = arith.constant 0 : i32
    return %c0_i32, %c0_i32_0 : i32, i32
  }
  func.func @transform_4(%arg0: i32) -> (i32, i32) {
    %c0_i32 = arith.constant 0 : i32
    %c0_i32_0 = arith.constant 0 : i32
    return %arg0, %c0_i32 : i32, i32
  }
  func.func @transform_5(%arg0: i32) -> (i32, i32) {
    %c0_i32 = arith.constant 0 : i32
    %c0_i32_0 = arith.constant 0 : i32
    return %arg0, %c0_i32 : i32, i32
  }
  func.func @transform_6(%arg0: i32) -> (i32, i32) {
    %c0_i32 = arith.constant 0 : i32
    %c0_i32_0 = arith.constant 0 : i32
    return %arg0, %c0_i32 : i32, i32
  }
}

</mosaic_0001>

<llo_original>
// kernel: discriminator_forward.4
$region0: #{discriminator_forward.4}
  #allocation0 [shape = 'u32[]', space=smem, size = 0x4, offset = 0x4, fixed_abs, tag = 'smem constant byte address 0x4 - core index']
  #allocation1 [shape = 'u32[72,128]{1,0:T(1,128)}', space=vmem, size = 0x9000, scoped, tag = 'internal scratch']
  %s0 = inlined_call_operand.vmem [shape: bf16[2048,48], index: 0, kind: input, shape index: {}]
  %s1 = inlined_call_operand.vmem [shape: bf16[48,8], index: 1, kind: input, shape index: {}]
  %s2 = inlined_call_operand.vmem [shape: bf16[2048,8], index: 2, kind: output, shape index: {}]
  %s3 = sld [smem:[#allocation0]]
  $region41: #{discriminator_forward.4} parent=0
    _
  %s5 = ssub.s32 1, %s3
  %s6 = scalar_select 0, %s5, %s3
  loop: start=0, step=1, limit=6
  $region2: #{discriminator_forward.4} parent=0 // loop_pre_header
    _
  $region3: #{discriminator_forward.4} parent=0 // loop_header
    %s8 = sphi 0, %s12
    %p9 = scmp.ge.s32.totalorder %s8, 6
    %s18 = sphi 0, %s20
    %s21 = sphi 0, %s18
    %s22 = sphi 0, %s21
    %s38 = sphi 0, %s22
    %s42 = sphi 0, %s42
    %s44 = sphi 0, %s42
    %s45 = sphi 0, %s44
    %s59 = sphi 0, %s45
    %s65 = sphi 0, %s67
    %s68 = sphi 0, %s65
    %s69 = sphi 0, %s68
    %s85 = sphi 0, %s69
  $region4: #{discriminator_forward.4} parent=0 // loop_header_branch
    %11 = sbr.rel (%p9) target = $region8
  $region5: #{discriminator_forward.4} parent=0 // loop_body
    %s13 = ssub.s32 %s8, 1
    %s14 = ssub.s32 %s8, 2
    %s15 = sadd.s32 %s8, 1
    %s16 = ssub.s32 %s8, %s15
    %p17 = scmp.eq.s32.totalorder %s16, 0
    %s19 = sadd.s32 %s18, 1
    %s20 = scalar_select %p17, %s18, %s19
    %p23 = pneg %p17
    %p24 = scmp.eq.s32.totalorder %s8, 3
    %p25 = por %p23, %p24
    %p26 = scmp.ne.s32.totalorder %s18, %s21
    %p27 = scmp.eq.s32.totalorder %s8, 0
    %p28 = por %p26, %p27
    %p29 = scmp.ne.s32.totalorder %s18, %s21
    %p30 = scmp.eq.s32.totalorder %s13, 3
    %p31 = por %p29, %p30
    %p32 = scmp.ne.s32.totalorder %s21, %s22
    %p33 = scmp.eq.s32.totalorder %s13, 0
    %p34 = por %p32, %p33
    %p35 = scmp.ne.s32.totalorder %s21, %s22
    %p36 = scmp.eq.s32.totalorder %s14, 3
    %p37 = por %p35, %p36
    %p39 = scmp.ne.s32.totalorder %s22, %s38
    %p40 = scmp.eq.s32.totalorder %s14, 0
    %p41 = por %p39, %p40
    %s43 = sadd.s32 %s42, 1
    %p46 = scmp.eq.s32.totalorder %s8, 3
    %p47 = scmp.ne.s32.totalorder %s42, %s44
    %p48 = scmp.eq.s32.totalorder %s8, 0
    %p49 = por %p47, %p48
    %p50 = scmp.ne.s32.totalorder %s42, %s44
    %p51 = scmp.eq.s32.totalorder %s13, 3
    %p52 = por %p50, %p51
    %p53 = scmp.ne.s32.totalorder %s44, %s45
    %p54 = scmp.eq.s32.totalorder %s13, 0
    %p55 = por %p53, %p54
    %p56 = scmp.ne.s32.totalorder %s44, %s45
    %p57 = scmp.eq.s32.totalorder %s14, 3
    %p58 = por %p56, %p57
    %p60 = scmp.ne.s32.totalorder %s45, %s59
    %p61 = scmp.eq.s32.totalorder %s14, 0
    %p62 = por %p60, %p61
    %s63 = ssub.s32 %s8, %s15
    %p64 = scmp.eq.s32.totalorder %s63, 0
    %s66 = sadd.s32 %s65, 1
    %s67 = scalar_select %p64, %s65, %s66
    %p70 = pneg %p64
    %p71 = scmp.eq.s32.totalorder %s8, 3
    %p72 = por %p70, %p71
    %p73 = scmp.ne.s32.totalorder %s65, %s68
    %p74 = scmp.eq.s32.totalorder %s8, 0
    %p75 = por %p73, %p74
    %p76 = scmp.ne.s32.totalorder %s65, %s68
    %p77 = scmp.eq.s32.totalorder %s13, 3
    %p78 = por %p76, %p77
    %p79 = scmp.ne.s32.totalorder %s68, %s69
    %p80 = scmp.eq.s32.totalorder %s13, 0
    %p81 = por %p79, %p80
    %p82 = scmp.ne.s32.totalorder %s68, %s69
    %p83 = scmp.eq.s32.totalorder %s14, 3
    %p84 = por %p82, %p83
    %p86 = scmp.ne.s32.totalorder %s69, %s85
    %p87 = scmp.eq.s32.totalorder %s14, 0
    %p88 = por %p86, %p87
    %p89 = scmp.le.s32.totalorder 1, %s8
    %p90 = scmp.lt.s32.totalorder %s8, 5
    %p91 = pnand %p89, %p90
    %p92 = pneg %p91
    // Predicated region
    $region9: #{discriminator_forward.4} parent=5 // pred_check
      _
    $region10: #{discriminator_forward.4} parent=5 // pred_check_branch
      %94 = sbr.rel (%p91) target = $region12
    $region11: #{discriminator_forward.4} parent=5 // pred_region
      %s95 = ssub.s32 %s8, 1
      // Predicated region
      $region13: #{discriminator_forward.4} parent=11 // pred_check
        %p96 = pneg %p55
      $region14: #{discriminator_forward.4} parent=11 // pred_check_branch
        %98 = sbr.rel (%p96) target = $region16
      $region15: #{discriminator_forward.4} parent=11 // pred_region
        _
      $region16: #{discriminator_forward.4} parent=11 // pred_fallthru
        _
    $region12: #{discriminator_forward.4} parent=5 // pred_fallthru
      _
    %p99 = scmp.lt.s32.totalorder %s8, 4
    // Predicated region
    $region17: #{discriminator_forward.4} parent=5 // pred_check
      %p100 = pneg %p99
    $region18: #{discriminator_forward.4} parent=5 // pred_check_branch
      %102 = sbr.rel (%p100) target = $region20
    $region19: #{discriminator_forward.4} parent=5 // pred_region
      // Predicated region
      $region21: #{discriminator_forward.4} parent=19 // pred_check
        %p103 = pneg %p28
      $region22: #{discriminator_forward.4} parent=19 // pred_check_branch
        %105 = sbr.rel (%p103) target = $region24
      $region23: #{discriminator_forward.4} parent=19 // pred_region
        %s106 = smul.u32 64, %s8
        %p107 = scmp.lt.s32.totalorder %s106, 255
        %s108 = scalar_select %p107, %s106, 255
        %s109 = smul.addr %s108, 4
        %s110 = scalar_lea.vmem %s0, %s109
        %s111 = smul.u32 64, %s8
      $region24: #{discriminator_forward.4} parent=19 // pred_fallthru
        _
    $region20: #{discriminator_forward.4} parent=5 // pred_fallthru
      _
    %p112 = scmp.le.s32.totalorder 1, %s8
    %p113 = scmp.lt.s32.totalorder %s8, 5
    %p114 = pnand %p112, %p113
    %p115 = pneg %p114
    // Predicated region
    $region25: #{discriminator_forward.4} parent=5 // pred_check
      _
    $region26: #{discriminator_forward.4} parent=5 // pred_check_branch
      %117 = sbr.rel (%p114) target = $region28
    $region27: #{discriminator_forward.4} parent=5 // pred_region
      %s118 = ssub.s32 %s8, 1
      %s119 = smul.u32 64, %s13
      %p120 = scmp.lt.s32.totalorder %s119, 255
      %s121 = scalar_select %p120, %s119, 255
      %s122 = smul.addr %s121, 4
      %s123 = scalar_lea.vmem %s0, %s122
      %p124 = pneg %p34
      %p125 = pneg %p31
      %p126 = pneg %p55
      %p127 = pneg %p52
      %p128 = pneg %p81
      %p129 = pneg %p78
      %s130 = smul.u32 64, %s13
      %p131 = scmp.lt.s32.totalorder %s130, 255
      %s132 = scalar_select %p131, %s130, 255
      %s133 = smul.addr %s132, 4
      %s134 = scalar_lea.vmem %s2, %s133
      %s135 = smul.u32 64, %s13
      %p136 = scmp.lt.s32.totalorder %s135, 255
      %s137 = scalar_select %p136, %s135, 255
      %s138 = smul.addr %s137, 4
      %s139 = scalar_lea.vmem %s0, %s138
      %s140 = smul.u32 64, %s13
      %s141 = smul.u32 64, %s13
      %p142 = scmp.lt.s32.totalorder %s141, 255
      %s143 = scalar_select %p142, %s141, 255
      %s144 = smul.addr %s143, 4
      %s145 = scalar_lea.vmem %s2, %s144
      %s146 = smul.u32 64, %s13
      %v148 = vld [vmem:[%s139] sm:$0xf]
      %v149 = vld [vmem:[%s139 + $0x4] sm:$0xf]
      %v150 = vld [vmem:[%s139 + $0x8] sm:$0xf]
      %v151 = vld [vmem:[%s139 + $0xc] sm:$0xf]
      %v152 = vld [vmem:[%s139 + $0x10] sm:$0xf]
      %v153 = vld [vmem:[%s139 + $0x14] sm:$0xf]
      %v154 = vld [vmem:[%s139 + $0x18] sm:$0xf]
      %v155 = vld [vmem:[%s139 + $0x1c] sm:$0xf]
      %v156 = vld [vmem:[%s139 + $0x20] sm:$0xf]
      %v157 = vld [vmem:[%s139 + $0x24] sm:$0xf]
      %v158 = vld [vmem:[%s139 + $0x28] sm:$0xf]
      %v159 = vld [vmem:[%s139 + $0x2c] sm:$0xf]
      %v160 = vld [vmem:[%s139 + $0x30] sm:$0xf]
      %v161 = vld [vmem:[%s139 + $0x34] sm:$0xf]
      %v162 = vld [vmem:[%s139 + $0x38] sm:$0xf]
      %v163 = vld [vmem:[%s139 + $0x3c] sm:$0xf]
      %v164 = vld [vmem:[%s139 + $0x40] sm:$0xf]
      %v165 = vld [vmem:[%s139 + $0x44] sm:$0xf]
      %v166 = vld [vmem:[%s139 + $0x48] sm:$0xf]
      %v167 = vld [vmem:[%s139 + $0x4c] sm:$0xf]
      %v168 = vld [vmem:[%s139 + $0x50] sm:$0xf]
      %v169 = vld [vmem:[%s139 + $0x54] sm:$0xf]
      %v170 = vld [vmem:[%s139 + $0x58] sm:$0xf]
      %v171 = vld [vmem:[%s139 + $0x5c] sm:$0xf]
      %v172 = vld [vmem:[%s139 + $0x60] sm:$0xf]
      %v173 = vld [vmem:[%s139 + $0x64] sm:$0xf]
      %v174 = vld [vmem:[%s139 + $0x68] sm:$0xf]
      %v175 = vld [vmem:[%s139 + $0x6c] sm:$0xf]
      %v176 = vld [vmem:[%s139 + $0x70] sm:$0xf]
      %v177 = vld [vmem:[%s139 + $0x74] sm:$0xf]
      %v178 = vld [vmem:[%s139 + $0x78] sm:$0xf]
      %v179 = vld [vmem:[%s139 + $0x7c] sm:$0xf]
      %v180 = vld [vmem:[%s139 + $0x80] sm:$0xf]
      %v181 = vld [vmem:[%s139 + $0x84] sm:$0xf]
      %v182 = vld [vmem:[%s139 + $0x88] sm:$0xf]
      %v183 = vld [vmem:[%s139 + $0x8c] sm:$0xf]
      %v184 = vld [vmem:[%s139 + $0x90] sm:$0xf]
      %v185 = vld [vmem:[%s139 + $0x94] sm:$0xf]
      %v186 = vld [vmem:[%s139 + $0x98] sm:$0xf]
      %v187 = vld [vmem:[%s139 + $0x9c] sm:$0xf]
      %v188 = vld [vmem:[%s139 + $0xa0] sm:$0xf]
      %v189 = vld [vmem:[%s139 + $0xa4] sm:$0xf]
      %v190 = vld [vmem:[%s139 + $0xa8] sm:$0xf]
      %v191 = vld [vmem:[%s139 + $0xac] sm:$0xf]
      %v192 = vld [vmem:[%s139 + $0xb0] sm:$0xf]
      %v193 = vld [vmem:[%s139 + $0xb4] sm:$0xf]
      %v194 = vld [vmem:[%s139 + $0xb8] sm:$0xf]
      %v195 = vld [vmem:[%s139 + $0xbc] sm:$0xf]
      %v196 = vld [vmem:[%s139 + $0xc0] sm:$0xf]
      %v197 = vld [vmem:[%s139 + $0xc4] sm:$0xf]
      %v198 = vld [vmem:[%s139 + $0xc8] sm:$0xf]
      %v199 = vld [vmem:[%s139 + $0xcc] sm:$0xf]
      %v200 = vld [vmem:[%s139 + $0xd0] sm:$0xf]
      %v201 = vld [vmem:[%s139 + $0xd4] sm:$0xf]
      %v202 = vld [vmem:[%s139 + $0xd8] sm:$0xf]
      %v203 = vld [vmem:[%s139 + $0xdc] sm:$0xf]
      %v204 = vld [vmem:[%s139 + $0xe0] sm:$0xf]
      %v205 = vld [vmem:[%s139 + $0xe4] sm:$0xf]
      %v206 = vld [vmem:[%s139 + $0xe8] sm:$0xf]
      %v207 = vld [vmem:[%s139 + $0xec] sm:$0xf]
      %v208 = vld [vmem:[%s139 + $0xf0] sm:$0xf]
      %v209 = vld [vmem:[%s139 + $0xf4] sm:$0xf]
      %v210 = vld [vmem:[%s139 + $0xf8] sm:$0xf]
      %v211 = vld [vmem:[%s139 + $0xfc] sm:$0xf]
      %v212 = vld [vmem:[%s1] sm:$0xf]
      %v213 = vld [vmem:[%s1 + $0x4] sm:$0xf]
      %v214 = vld [vmem:[%s1 + $0x8] sm:$0xf]
      %v215 = vld [vmem:[%s1 + $0xc] sm:$0xf]
      %v216 = vld [vmem:[%s1 + $0x10] sm:$0xf]
      %v217 = vld [vmem:[%s1 + $0x14] sm:$0xf]
      %v282 = vunpack.c.l.b16 %v148
      %v283 = vunpack.c.l.b16 %v149
      %v284 = vunpack.c.l.b16 %v150
      %v285 = vunpack.c.l.b16 %v151
      %v286 = vunpack.c.l.b16 %v152
      %v287 = vunpack.c.l.b16 %v153
      %v288 = vunpack.c.l.b16 %v154
      %v289 = vunpack.c.l.b16 %v155
      %v290 = vunpack.c.l.b16 %v156
      %v291 = vunpack.c.l.b16 %v157
      %v292 = vunpack.c.l.b16 %v158
      %v293 = vunpack.c.l.b16 %v159
      %v294 = vunpack.c.l.b16 %v160
      %v295 = vunpack.c.l.b16 %v161
      %v296 = vunpack.c.l.b16 %v162
      %v297 = vunpack.c.l.b16 %v163
      %v298 = vunpack.c.l.b16 %v164
      %v299 = vunpack.c.l.b16 %v165
      %v300 = vunpack.c.l.b16 %v166
      %v301 = vunpack.c.l.b16 %v167
      %v302 = vunpack.c.l.b16 %v168
      %v303 = vunpack.c.l.b16 %v169
      %v304 = vunpack.c.l.b16 %v170
      %v305 = vunpack.c.l.b16 %v171
      %v306 = vunpack.c.l.b16 %v172
      %v307 = vunpack.c.l.b16 %v173
      %v308 = vunpack.c.l.b16 %v174
      %v309 = vunpack.c.l.b16 %v175
      %v310 = vunpack.c.l.b16 %v176
      %v311 = vunpack.c.l.b16 %v177
      %v312 = vunpack.c.l.b16 %v178
      %v313 = vunpack.c.l.b16 %v179
      %v314 = vunpack.c.l.b16 %v180
      %v315 = vunpack.c.l.b16 %v181
      %v316 = vunpack.c.l.b16 %v182
      %v317 = vunpack.c.l.b16 %v183
      %v318 = vunpack.c.l.b16 %v184
      %v319 = vunpack.c.l.b16 %v185
      %v320 = vunpack.c.l.b16 %v186
      %v321 = vunpack.c.l.b16 %v187
      %v322 = vunpack.c.l.b16 %v188
      %v323 = vunpack.c.l.b16 %v189
      %v324 = vunpack.c.l.b16 %v190
      %v325 = vunpack.c.l.b16 %v191
      %v326 = vunpack.c.l.b16 %v192
      %v327 = vunpack.c.l.b16 %v193
      %v328 = vunpack.c.l.b16 %v194
      %v329 = vunpack.c.l.b16 %v195
      %v330 = vunpack.c.l.b16 %v196
      %v331 = vunpack.c.l.b16 %v197
      %v332 = vunpack.c.l.b16 %v198
      %v333 = vunpack.c.l.b16 %v199
      %v334 = vunpack.c.l.b16 %v200
      %v335 = vunpack.c.l.b16 %v201
      %v336 = vunpack.c.l.b16 %v202
      %v337 = vunpack.c.l.b16 %v203
      %v338 = vunpack.c.l.b16 %v204
      %v339 = vunpack.c.l.b16 %v205
      %v340 = vunpack.c.l.b16 %v206
      %v341 = vunpack.c.l.b16 %v207
      %v342 = vunpack.c.l.b16 %v208
      %v343 = vunpack.c.l.b16 %v209
      %v344 = vunpack.c.l.b16 %v210
      %v345 = vunpack.c.l.b16 %v211
      %v346 = vpack.c.b16 %v283, %v282
      %v347 = vpack.c.b16 %v285, %v284
      %v348 = vpack.c.b16 %v287, %v286
      %v349 = vpack.c.b16 %v289, %v288
      %v350 = vpack.c.b16 %v291, %v290
      %v351 = vpack.c.b16 %v293, %v292
      %v352 = vpack.c.b16 %v295, %v294
      %v353 = vpack.c.b16 %v297, %v296
      %v354 = vpack.c.b16 %v299, %v298
      %v355 = vpack.c.b16 %v301, %v300
      %v356 = vpack.c.b16 %v303, %v302
      %v357 = vpack.c.b16 %v305, %v304
      %v358 = vpack.c.b16 %v307, %v306
      %v359 = vpack.c.b16 %v309, %v308
      %v360 = vpack.c.b16 %v311, %v310
      %v361 = vpack.c.b16 %v313, %v312
      %v362 = vpack.c.b16 %v315, %v314
      %v363 = vpack.c.b16 %v317, %v316
      %v364 = vpack.c.b16 %v319, %v318
      %v365 = vpack.c.b16 %v321, %v320
      %v366 = vpack.c.b16 %v323, %v322
      %v367 = vpack.c.b16 %v325, %v324
      %v368 = vpack.c.b16 %v327, %v326
      %v369 = vpack.c.b16 %v329, %v328
      %v370 = vpack.c.b16 %v331, %v330
      %v371 = vpack.c.b16 %v333, %v332
      %v372 = vpack.c.b16 %v335, %v334
      %v373 = vpack.c.b16 %v337, %v336
      %v374 = vpack.c.b16 %v339, %v338
      %v375 = vpack.c.b16 %v341, %v340
      %v376 = vpack.c.b16 %v343, %v342
      %v377 = vpack.c.b16 %v345, %v344
      %v384 = vunpack.c.l.b16 %v212
      %v385 = vunpack.c.l.b16 %v213
      %v386 = vunpack.c.l.b16 %v214
      %v387 = vunpack.c.l.b16 %v215
      %v388 = vunpack.c.l.b16 %v216
      %v389 = vunpack.c.l.b16 %v217
      %v390 = vpack.c.b16 %v385, %v384
      %v391 = vpack.c.b16 %v387, %v386
      %v392 = vpack.c.b16 %v389, %v388
      %vm396 = vcmask 392192
      %v398 = vsel %vm396, %v346, 0
      %v401 = vsel %vm396, %v347, 0
      %v404 = vsel %vm396, %v348, 0
      %v407 = vsel %vm396, %v349, 0
      %v410 = vsel %vm396, %v350, 0
      %v413 = vsel %vm396, %v351, 0
      %v416 = vsel %vm396, %v352, 0
      %v419 = vsel %vm396, %v353, 0
      %v422 = vsel %vm396, %v354, 0
      %v425 = vsel %vm396, %v355, 0
      %v428 = vsel %vm396, %v356, 0
      %v431 = vsel %vm396, %v357, 0
      %v434 = vsel %vm396, %v358, 0
      %v437 = vsel %vm396, %v359, 0
      %v440 = vsel %vm396, %v360, 0
      %v443 = vsel %vm396, %v361, 0
      %v446 = vsel %vm396, %v362, 0
      %v449 = vsel %vm396, %v363, 0
      %v452 = vsel %vm396, %v364, 0
      %v455 = vsel %vm396, %v365, 0
      %v458 = vsel %vm396, %v366, 0
      %v461 = vsel %vm396, %v367, 0
      %v464 = vsel %vm396, %v368, 0
      %v467 = vsel %vm396, %v369, 0
      %v470 = vsel %vm396, %v370, 0
      %v473 = vsel %vm396, %v371, 0
      %v476 = vsel %vm396, %v372, 0
      %v479 = vsel %vm396, %v373, 0
      %v482 = vsel %vm396, %v374, 0
      %v485 = vsel %vm396, %v375, 0
      %v488 = vsel %vm396, %v376, 0
      %v491 = vsel %vm396, %v377, 0
      %493 = vmatpush.bf16.msra.mxu0 0
      %494 = vmatpush.bf16.msra.mxu0 0
      %495 = vmatpush.bf16.msra.mxu0 0
      %496 = vmatpush.bf16.msra.mxu0 0
      %497 = vmatpush.bf16.msra.mxu0 0
      %498 = vmatpush.bf16.msra.mxu0 %v392
      %499 = vmatpush.bf16.msra.mxu0 %v391
      %500 = vmatpush.bf16.msra.mxu0 %v390
      %501 = vmatmul.bf16.gmra.mxu0 %v398
      %v502 = vpop.f32.mrf.mxu0
      %v503 = vadd.f32 0.0, %v502
      %v504 = vpop.f32.mrf.mxu0
      %v505 = vadd.f32 0.0, %v504
      %506 = vmatmul.bf16.gmra.mxu0 %v401
      %v507 = vpop.f32.mrf.mxu0
      %v508 = vadd.f32 0.0, %v507
      %v509 = vpop.f32.mrf.mxu0
      %v510 = vadd.f32 0.0, %v509
      %511 = vmatmul.bf16.gmra.mxu0 %v404
      %v512 = vpop.f32.mrf.mxu0
      %v513 = vadd.f32 0.0, %v512
      %v514 = vpop.f32.mrf.mxu0
      %v515 = vadd.f32 0.0, %v514
      %516 = vmatmul.bf16.gmra.mxu0 %v407
      %v517 = vpop.f32.mrf.mxu0
      %v518 = vadd.f32 0.0, %v517
      %v519 = vpop.f32.mrf.mxu0
      %v520 = vadd.f32 0.0, %v519
      %521 = vmatmul.bf16.gmra.mxu0 %v410
      %v522 = vpop.f32.mrf.mxu0
      %v523 = vadd.f32 0.0, %v522
      %v524 = vpop.f32.mrf.mxu0
      %v525 = vadd.f32 0.0, %v524
      %526 = vmatmul.bf16.gmra.mxu0 %v413
      %v527 = vpop.f32.mrf.mxu0
      %v528 = vadd.f32 0.0, %v527
      %v529 = vpop.f32.mrf.mxu0
      %v530 = vadd.f32 0.0, %v529
      %531 = vmatmul.bf16.gmra.mxu0 %v416
      %v532 = vpop.f32.mrf.mxu0
      %v533 = vadd.f32 0.0, %v532
      %v534 = vpop.f32.mrf.mxu0
      %v535 = vadd.f32 0.0, %v534
      %536 = vmatmul.bf16.gmra.mxu0 %v419
      %v537 = vpop.f32.mrf.mxu0
      %v538 = vadd.f32 0.0, %v537
      %v539 = vpop.f32.mrf.mxu0
      %v540 = vadd.f32 0.0, %v539
      %541 = vmatmul.bf16.gmra.mxu0 %v422
      %v542 = vpop.f32.mrf.mxu0
      %v543 = vadd.f32 0.0, %v542
      %v544 = vpop.f32.mrf.mxu0
      %v545 = vadd.f32 0.0, %v544
      %546 = vmatmul.bf16.gmra.mxu0 %v425
      %v547 = vpop.f32.mrf.mxu0
      %v548 = vadd.f32 0.0, %v547
      %v549 = vpop.f32.mrf.mxu0
      %v550 = vadd.f32 0.0, %v549
      %551 = vmatmul.bf16.gmra.mxu0 %v428
      %v552 = vpop.f32.mrf.mxu0
      %v553 = vadd.f32 0.0, %v552
      %v554 = vpop.f32.mrf.mxu0
      %v555 = vadd.f32 0.0, %v554
      %556 = vmatmul.bf16.gmra.mxu0 %v431
      %v557 = vpop.f32.mrf.mxu0
      %v558 = vadd.f32 0.0, %v557
      %v559 = vpop.f32.mrf.mxu0
      %v560 = vadd.f32 0.0, %v559
      %561 = vmatmul.bf16.gmra.mxu0 %v434
      %v562 = vpop.f32.mrf.mxu0
      %v563 = vadd.f32 0.0, %v562
      %v564 = vpop.f32.mrf.mxu0
      %v565 = vadd.f32 0.0, %v564
      %566 = vmatmul.bf16.gmra.mxu0 %v437
      %v567 = vpop.f32.mrf.mxu0
      %v568 = vadd.f32 0.0, %v567
      %v569 = vpop.f32.mrf.mxu0
      %v570 = vadd.f32 0.0, %v569
      %571 = vmatmul.bf16.gmra.mxu0 %v440
      %v572 = vpop.f32.mrf.mxu0
      %v573 = vadd.f32 0.0, %v572
      %v574 = vpop.f32.mrf.mxu0
      %v575 = vadd.f32 0.0, %v574
      %576 = vmatmul.bf16.gmra.mxu0 %v443
      %v577 = vpop.f32.mrf.mxu0
      %v578 = vadd.f32 0.0, %v577
      %v579 = vpop.f32.mrf.mxu0
      %v580 = vadd.f32 0.0, %v579
      %581 = vmatmul.bf16.gmra.mxu0 %v446
      %v582 = vpop.f32.mrf.mxu0
      %v583 = vadd.f32 0.0, %v582
      %v584 = vpop.f32.mrf.mxu0
      %v585 = vadd.f32 0.0, %v584
      %586 = vmatmul.bf16.gmra.mxu0 %v449
      %v587 = vpop.f32.mrf.mxu0
      %v588 = vadd.f32 0.0, %v587
      %v589 = vpop.f32.mrf.mxu0
      %v590 = vadd.f32 0.0, %v589
      %591 = vmatmul.bf16.gmra.mxu0 %v452
      %v592 = vpop.f32.mrf.mxu0
      %v593 = vadd.f32 0.0, %v592
      %v594 = vpop.f32.mrf.mxu0
      %v595 = vadd.f32 0.0, %v594
      %596 = vmatmul.bf16.gmra.mxu0 %v455
      %v597 = vpop.f32.mrf.mxu0
      %v598 = vadd.f32 0.0, %v597
      %v599 = vpop.f32.mrf.mxu0
      %v600 = vadd.f32 0.0, %v599
      %601 = vmatmul.bf16.gmra.mxu0 %v458
      %v602 = vpop.f32.mrf.mxu0
      %v603 = vadd.f32 0.0, %v602
      %v604 = vpop.f32.mrf.mxu0
      %v605 = vadd.f32 0.0, %v604
      %606 = vmatmul.bf16.gmra.mxu0 %v461
      %v607 = vpop.f32.mrf.mxu0
      %v608 = vadd.f32 0.0, %v607
      %v609 = vpop.f32.mrf.mxu0
      %v610 = vadd.f32 0.0, %v609
      %611 = vmatmul.bf16.gmra.mxu0 %v464
      %v612 = vpop.f32.mrf.mxu0
      %v613 = vadd.f32 0.0, %v612
      %v614 = vpop.f32.mrf.mxu0
      %v615 = vadd.f32 0.0, %v614
      %616 = vmatmul.bf16.gmra.mxu0 %v467
      %v617 = vpop.f32.mrf.mxu0
      %v618 = vadd.f32 0.0, %v617
      %v619 = vpop.f32.mrf.mxu0
      %v620 = vadd.f32 0.0, %v619
      %621 = vmatmul.bf16.gmra.mxu0 %v470
      %v622 = vpop.f32.mrf.mxu0
      %v623 = vadd.f32 0.0, %v622
      %v624 = vpop.f32.mrf.mxu0
      %v625 = vadd.f32 0.0, %v624
      %626 = vmatmul.bf16.gmra.mxu0 %v473
      %v627 = vpop.f32.mrf.mxu0
      %v628 = vadd.f32 0.0, %v627
      %v629 = vpop.f32.mrf.mxu0
      %v630 = vadd.f32 0.0, %v629
      %631 = vmatmul.bf16.gmra.mxu0 %v476
      %v632 = vpop.f32.mrf.mxu0
      %v633 = vadd.f32 0.0, %v632
      %v634 = vpop.f32.mrf.mxu0
      %v635 = vadd.f32 0.0, %v634
      %636 = vmatmul.bf16.gmra.mxu0 %v479
      %v637 = vpop.f32.mrf.mxu0
      %v638 = vadd.f32 0.0, %v637
      %v639 = vpop.f32.mrf.mxu0
      %v640 = vadd.f32 0.0, %v639
      %641 = vmatmul.bf16.gmra.mxu0 %v482
      %v642 = vpop.f32.mrf.mxu0
      %v643 = vadd.f32 0.0, %v642
      %v644 = vpop.f32.mrf.mxu0
      %v645 = vadd.f32 0.0, %v644
      %646 = vmatmul.bf16.gmra.mxu0 %v485
      %v647 = vpop.f32.mrf.mxu0
      %v648 = vadd.f32 0.0, %v647
      %v649 = vpop.f32.mrf.mxu0
      %v650 = vadd.f32 0.0, %v649
      %651 = vmatmul.bf16.gmra.mxu0 %v488
      %v652 = vpop.f32.mrf.mxu0
      %v653 = vadd.f32 0.0, %v652
      %v654 = vpop.f32.mrf.mxu0
      %v655 = vadd.f32 0.0, %v654
      %656 = vmatmul.bf16.gmra.mxu0 %v491
      %v657 = vpop.f32.mrf.mxu0
      %v658 = vadd.f32 0.0, %v657
      %v659 = vpop.f32.mrf.mxu0
      %v660 = vadd.f32 0.0, %v659
      %661 = vdwg.mxu0
      %vm662 = vcmp.gt.f32.partialorder %v503, 0.0
      %vm663 = vcmp.gt.f32.partialorder %v505, 0.0
      %vm664 = vcmp.gt.f32.partialorder %v508, 0.0
      %vm665 = vcmp.gt.f32.partialorder %v510, 0.0
      %vm666 = vcmp.gt.f32.partialorder %v513, 0.0
      %vm667 = vcmp.gt.f32.partialorder %v515, 0.0
      %vm668 = vcmp.gt.f32.partialorder %v518, 0.0
      %vm669 = vcmp.gt.f32.partialorder %v520, 0.0
      %vm670 = vcmp.gt.f32.partialorder %v523, 0.0
      %vm671 = vcmp.gt.f32.partialorder %v525, 0.0
      %vm672 = vcmp.gt.f32.partialorder %v528, 0.0
      %vm673 = vcmp.gt.f32.partialorder %v530, 0.0
      %vm674 = vcmp.gt.f32.partialorder %v533, 0.0
      %vm675 = vcmp.gt.f32.partialorder %v535, 0.0
      %vm676 = vcmp.gt.f32.partialorder %v538, 0.0
      %vm677 = vcmp.gt.f32.partialorder %v540, 0.0
      %vm678 = vcmp.gt.f32.partialorder %v543, 0.0
      %vm679 = vcmp.gt.f32.partialorder %v545, 0.0
      %vm680 = vcmp.gt.f32.partialorder %v548, 0.0
      %vm681 = vcmp.gt.f32.partialorder %v550, 0.0
      %vm682 = vcmp.gt.f32.partialorder %v553, 0.0
      %vm683 = vcmp.gt.f32.partialorder %v555, 0.0
      %vm684 = vcmp.gt.f32.partialorder %v558, 0.0
      %vm685 = vcmp.gt.f32.partialorder %v560, 0.0
      %vm686 = vcmp.gt.f32.partialorder %v563, 0.0
      %vm687 = vcmp.gt.f32.partialorder %v565, 0.0
      %vm688 = vcmp.gt.f32.partialorder %v568, 0.0
      %vm689 = vcmp.gt.f32.partialorder %v570, 0.0
      %vm690 = vcmp.gt.f32.partialorder %v573, 0.0
      %vm691 = vcmp.gt.f32.partialorder %v575, 0.0
      %vm692 = vcmp.gt.f32.partialorder %v578, 0.0
      %vm693 = vcmp.gt.f32.partialorder %v580, 0.0
      %vm694 = vcmp.gt.f32.partialorder %v583, 0.0
      %vm695 = vcmp.gt.f32.partialorder %v585, 0.0
      %vm696 = vcmp.gt.f32.partialorder %v588, 0.0
      %vm697 = vcmp.gt.f32.partialorder %v590, 0.0
      %vm698 = vcmp.gt.f32.partialorder %v593, 0.0
      %vm699 = vcmp.gt.f32.partialorder %v595, 0.0
      %vm700 = vcmp.gt.f32.partialorder %v598, 0.0
      %vm701 = vcmp.gt.f32.partialorder %v600, 0.0
      %vm702 = vcmp.gt.f32.partialorder %v603, 0.0
      %vm703 = vcmp.gt.f32.partialorder %v605, 0.0
      %vm704 = vcmp.gt.f32.partialorder %v608, 0.0
      %vm705 = vcmp.gt.f32.partialorder %v610, 0.0
      %vm706 = vcmp.gt.f32.partialorder %v613, 0.0
      %vm707 = vcmp.gt.f32.partialorder %v615, 0.0
      %vm708 = vcmp.gt.f32.partialorder %v618, 0.0
      %vm709 = vcmp.gt.f32.partialorder %v620, 0.0
      %vm710 = vcmp.gt.f32.partialorder %v623, 0.0
      %vm711 = vcmp.gt.f32.partialorder %v625, 0.0
      %vm712 = vcmp.gt.f32.partialorder %v628, 0.0
      %vm713 = vcmp.gt.f32.partialorder %v630, 0.0
      %vm714 = vcmp.gt.f32.partialorder %v633, 0.0
      %vm715 = vcmp.gt.f32.partialorder %v635, 0.0
      %vm716 = vcmp.gt.f32.partialorder %v638, 0.0
      %vm717 = vcmp.gt.f32.partialorder %v640, 0.0
      %vm718 = vcmp.gt.f32.partialorder %v643, 0.0
      %vm719 = vcmp.gt.f32.partialorder %v645, 0.0
      %vm720 = vcmp.gt.f32.partialorder %v648, 0.0
      %vm721 = vcmp.gt.f32.partialorder %v650, 0.0
      %vm722 = vcmp.gt.f32.partialorder %v653, 0.0
      %vm723 = vcmp.gt.f32.partialorder %v655, 0.0
      %vm724 = vcmp.gt.f32.partialorder %v658, 0.0
      %vm725 = vcmp.gt.f32.partialorder %v660, 0.0
      %v726 = vmul.f32 %v503, 0.2
      %v727 = vmul.f32 %v505, 0.2
      %v728 = vmul.f32 %v508, 0.2
      %v729 = vmul.f32 %v510, 0.2
      %v730 = vmul.f32 %v513, 0.2
      %v731 = vmul.f32 %v515, 0.2
      %v732 = vmul.f32 %v518, 0.2
      %v733 = vmul.f32 %v520, 0.2
      %v734 = vmul.f32 %v523, 0.2
      %v735 = vmul.f32 %v525, 0.2
      %v736 = vmul.f32 %v528, 0.2
      %v737 = vmul.f32 %v530, 0.2
      %v738 = vmul.f32 %v533, 0.2
      %v739 = vmul.f32 %v535, 0.2
      %v740 = vmul.f32 %v538, 0.2
      %v741 = vmul.f32 %v540, 0.2
      %v742 = vmul.f32 %v543, 0.2
      %v743 = vmul.f32 %v545, 0.2
      %v744 = vmul.f32 %v548, 0.2
      %v745 = vmul.f32 %v550, 0.2
      %v746 = vmul.f32 %v553, 0.2
      %v747 = vmul.f32 %v555, 0.2
      %v748 = vmul.f32 %v558, 0.2
      %v749 = vmul.f32 %v560, 0.2
      %v750 = vmul.f32 %v563, 0.2
      %v751 = vmul.f32 %v565, 0.2
      %v752 = vmul.f32 %v568, 0.2
      %v753 = vmul.f32 %v570, 0.2
      %v754 = vmul.f32 %v573, 0.2
      %v755 = vmul.f32 %v575, 0.2
      %v756 = vmul.f32 %v578, 0.2
      %v757 = vmul.f32 %v580, 0.2
      %v758 = vmul.f32 %v583, 0.2
      %v759 = vmul.f32 %v585, 0.2
      %v760 = vmul.f32 %v588, 0.2
      %v761 = vmul.f32 %v590, 0.2
      %v762 = vmul.f32 %v593, 0.2
      %v763 = vmul.f32 %v595, 0.2
      %v764 = vmul.f32 %v598, 0.2
      %v765 = vmul.f32 %v600, 0.2
      %v766 = vmul.f32 %v603, 0.2
      %v767 = vmul.f32 %v605, 0.2
      %v768 = vmul.f32 %v608, 0.2
      %v769 = vmul.f32 %v610, 0.2
      %v770 = vmul.f32 %v613, 0.2
      %v771 = vmul.f32 %v615, 0.2
      %v772 = vmul.f32 %v618, 0.2
      %v773 = vmul.f32 %v620, 0.2
      %v774 = vmul.f32 %v623, 0.2
      %v775 = vmul.f32 %v625, 0.2
      %v776 = vmul.f32 %v628, 0.2
      %v777 = vmul.f32 %v630, 0.2
      %v778 = vmul.f32 %v633, 0.2
      %v779 = vmul.f32 %v635, 0.2
      %v780 = vmul.f32 %v638, 0.2
      %v781 = vmul.f32 %v640, 0.2
      %v782 = vmul.f32 %v643, 0.2
      %v783 = vmul.f32 %v645, 0.2
      %v784 = vmul.f32 %v648, 0.2
      %v785 = vmul.f32 %v650, 0.2
      %v786 = vmul.f32 %v653, 0.2
      %v787 = vmul.f32 %v655, 0.2
      %v788 = vmul.f32 %v658, 0.2
      %v789 = vmul.f32 %v660, 0.2
      %v790 = vsel %vm662, %v503, %v726
      %v791 = vsel %vm663, %v505, %v727
      %v792 = vsel %vm664, %v508, %v728
      %v793 = vsel %vm665, %v510, %v729
      %v794 = vsel %vm666, %v513, %v730
      %v795 = vsel %vm667, %v515, %v731
      %v796 = vsel %vm668, %v518, %v732
      %v797 = vsel %vm669, %v520, %v733
      %v798 = vsel %vm670, %v523, %v734
      %v799 = vsel %vm671, %v525, %v735
      %v800 = vsel %vm672, %v528, %v736
      %v801 = vsel %vm673, %v530, %v737
      %v802 = vsel %vm674, %v533, %v738
      %v803 = vsel %vm675, %v535, %v739
      %v804 = vsel %vm676, %v538, %v740
      %v805 = vsel %vm677, %v540, %v741
      %v806 = vsel %vm678, %v543, %v742
      %v807 = vsel %vm679, %v545, %v743
      %v808 = vsel %vm680, %v548, %v744
      %v809 = vsel %vm681, %v550, %v745
      %v810 = vsel %vm682, %v553, %v746
      %v811 = vsel %vm683, %v555, %v747
      %v812 = vsel %vm684, %v558, %v748
      %v813 = vsel %vm685, %v560, %v749
      %v814 = vsel %vm686, %v563, %v750
      %v815 = vsel %vm687, %v565, %v751
      %v816 = vsel %vm688, %v568, %v752
      %v817 = vsel %vm689, %v570, %v753
      %v818 = vsel %vm690, %v573, %v754
      %v819 = vsel %vm691, %v575, %v755
      %v820 = vsel %vm692, %v578, %v756
      %v821 = vsel %vm693, %v580, %v757
      %v822 = vsel %vm694, %v583, %v758
      %v823 = vsel %vm695, %v585, %v759
      %v824 = vsel %vm696, %v588, %v760
      %v825 = vsel %vm697, %v590, %v761
      %v826 = vsel %vm698, %v593, %v762
      %v827 = vsel %vm699, %v595, %v763
      %v828 = vsel %vm700, %v598, %v764
      %v829 = vsel %vm701, %v600, %v765
      %v830 = vsel %vm702, %v603, %v766
      %v831 = vsel %vm703, %v605, %v767
      %v832 = vsel %vm704, %v608, %v768
      %v833 = vsel %vm705, %v610, %v769
      %v834 = vsel %vm706, %v613, %v770
      %v835 = vsel %vm707, %v615, %v771
      %v836 = vsel %vm708, %v618, %v772
      %v837 = vsel %vm709, %v620, %v773
      %v838 = vsel %vm710, %v623, %v774
      %v839 = vsel %vm711, %v625, %v775
      %v840 = vsel %vm712, %v628, %v776
      %v841 = vsel %vm713, %v630, %v777
      %v842 = vsel %vm714, %v633, %v778
      %v843 = vsel %vm715, %v635, %v779
      %v844 = vsel %vm716, %v638, %v780
      %v845 = vsel %vm717, %v640, %v781
      %v846 = vsel %vm718, %v643, %v782
      %v847 = vsel %vm719, %v645, %v783
      %v848 = vsel %vm720, %v648, %v784
      %v849 = vsel %vm721, %v650, %v785
      %v850 = vsel %vm722, %v653, %v786
      %v851 = vsel %vm723, %v655, %v787
      %v852 = vsel %vm724, %v658, %v788
      %v853 = vsel %vm725, %v660, %v789
      %v854 = vpack.c.bf16 %v790, %v790
      %v855 = vpack.c.bf16 %v791, %v791
      %v856 = vpack.c.bf16 %v792, %v792
      %v857 = vpack.c.bf16 %v793, %v793
      %v858 = vpack.c.bf16 %v794, %v794
      %v859 = vpack.c.bf16 %v795, %v795
      %v860 = vpack.c.bf16 %v796, %v796
      %v861 = vpack.c.bf16 %v797, %v797
      %v862 = vpack.c.bf16 %v798, %v798
      %v863 = vpack.c.bf16 %v799, %v799
      %v864 = vpack.c.bf16 %v800, %v800
      %v865 = vpack.c.bf16 %v801, %v801
      %v866 = vpack.c.bf16 %v802, %v802
      %v867 = vpack.c.bf16 %v803, %v803
      %v868 = vpack.c.bf16 %v804, %v804
      %v869 = vpack.c.bf16 %v805, %v805
      %v870 = vpack.c.bf16 %v806, %v806
      %v871 = vpack.c.bf16 %v807, %v807
      %v872 = vpack.c.bf16 %v808, %v808
      %v873 = vpack.c.bf16 %v809, %v809
      %v874 = vpack.c.bf16 %v810, %v810
      %v875 = vpack.c.bf16 %v811, %v811
      %v876 = vpack.c.bf16 %v812, %v812
      %v877 = vpack.c.bf16 %v813, %v813
      %v878 = vpack.c.bf16 %v814, %v814
      %v879 = vpack.c.bf16 %v815, %v815
      %v880 = vpack.c.bf16 %v816, %v816
      %v881 = vpack.c.bf16 %v817, %v817
      %v882 = vpack.c.bf16 %v818, %v818
      %v883 = vpack.c.bf16 %v819, %v819
      %v884 = vpack.c.bf16 %v820, %v820
      %v885 = vpack.c.bf16 %v821, %v821
      %v886 = vpack.c.bf16 %v822, %v822
      %v887 = vpack.c.bf16 %v823, %v823
      %v888 = vpack.c.bf16 %v824, %v824
      %v889 = vpack.c.bf16 %v825, %v825
      %v890 = vpack.c.bf16 %v826, %v826
      %v891 = vpack.c.bf16 %v827, %v827
      %v892 = vpack.c.bf16 %v828, %v828
      %v893 = vpack.c.bf16 %v829, %v829
      %v894 = vpack.c.bf16 %v830, %v830
      %v895 = vpack.c.bf16 %v831, %v831
      %v896 = vpack.c.bf16 %v832, %v832
      %v897 = vpack.c.bf16 %v833, %v833
      %v898 = vpack.c.bf16 %v834, %v834
      %v899 = vpack.c.bf16 %v835, %v835
      %v900 = vpack.c.bf16 %v836, %v836
      %v901 = vpack.c.bf16 %v837, %v837
      %v902 = vpack.c.bf16 %v838, %v838
      %v903 = vpack.c.bf16 %v839, %v839
      %v904 = vpack.c.bf16 %v840, %v840
      %v905 = vpack.c.bf16 %v841, %v841
      %v906 = vpack.c.bf16 %v842, %v842
      %v907 = vpack.c.bf16 %v843, %v843
      %v908 = vpack.c.bf16 %v844, %v844
      %v909 = vpack.c.bf16 %v845, %v845
      %v910 = vpack.c.bf16 %v846, %v846
      %v911 = vpack.c.bf16 %v847, %v847
      %v912 = vpack.c.bf16 %v848, %v848
      %v913 = vpack.c.bf16 %v849, %v849
      %v914 = vpack.c.bf16 %v850, %v850
      %v915 = vpack.c.bf16 %v851, %v851
      %v916 = vpack.c.bf16 %v852, %v852
      %v917 = vpack.c.bf16 %v853, %v853
      %vm918 = vcmask 60416
      %919 = vst.msk [vmem:[%s145] sm:$0xf] %vm918, %v854
      %920 = vst.msk [vmem:[%s145 + $0x4] sm:$0xf] %vm918, %v855
      %921 = vst.msk [vmem:[%s145 + $0x8] sm:$0xf] %vm918, %v856
      %922 = vst.msk [vmem:[%s145 + $0xc] sm:$0xf] %vm918, %v857
      %923 = vst.msk [vmem:[%s145 + $0x10] sm:$0xf] %vm918, %v858
      %924 = vst.msk [vmem:[%s145 + $0x14] sm:$0xf] %vm918, %v859
      %925 = vst.msk [vmem:[%s145 + $0x18] sm:$0xf] %vm918, %v860
      %926 = vst.msk [vmem:[%s145 + $0x1c] sm:$0xf] %vm918, %v861
      %927 = vst.msk [vmem:[%s145 + $0x20] sm:$0xf] %vm918, %v862
      %928 = vst.msk [vmem:[%s145 + $0x24] sm:$0xf] %vm918, %v863
      %929 = vst.msk [vmem:[%s145 + $0x28] sm:$0xf] %vm918, %v864
      %930 = vst.msk [vmem:[%s145 + $0x2c] sm:$0xf] %vm918, %v865
      %931 = vst.msk [vmem:[%s145 + $0x30] sm:$0xf] %vm918, %v866
      %932 = vst.msk [vmem:[%s145 + $0x34] sm:$0xf] %vm918, %v867
      %933 = vst.msk [vmem:[%s145 + $0x38] sm:$0xf] %vm918, %v868
      %934 = vst.msk [vmem:[%s145 + $0x3c] sm:$0xf] %vm918, %v869
      %935 = vst.msk [vmem:[%s145 + $0x40] sm:$0xf] %vm918, %v870
      %936 = vst.msk [vmem:[%s145 + $0x44] sm:$0xf] %vm918, %v871
      %937 = vst.msk [vmem:[%s145 + $0x48] sm:$0xf] %vm918, %v872
      %938 = vst.msk [vmem:[%s145 + $0x4c] sm:$0xf] %vm918, %v873
      %939 = vst.msk [vmem:[%s145 + $0x50] sm:$0xf] %vm918, %v874
      %940 = vst.msk [vmem:[%s145 + $0x54] sm:$0xf] %vm918, %v875
      %941 = vst.msk [vmem:[%s145 + $0x58] sm:$0xf] %vm918, %v876
      %942 = vst.msk [vmem:[%s145 + $0x5c] sm:$0xf] %vm918, %v877
      %943 = vst.msk [vmem:[%s145 + $0x60] sm:$0xf] %vm918, %v878
      %944 = vst.msk [vmem:[%s145 + $0x64] sm:$0xf] %vm918, %v879
      %945 = vst.msk [vmem:[%s145 + $0x68] sm:$0xf] %vm918, %v880
      %946 = vst.msk [vmem:[%s145 + $0x6c] sm:$0xf] %vm918, %v881
      %947 = vst.msk [vmem:[%s145 + $0x70] sm:$0xf] %vm918, %v882
      %948 = vst.msk [vmem:[%s145 + $0x74] sm:$0xf] %vm918, %v883
      %949 = vst.msk [vmem:[%s145 + $0x78] sm:$0xf] %vm918, %v884
      %950 = vst.msk [vmem:[%s145 + $0x7c] sm:$0xf] %vm918, %v885
      %951 = vst.msk [vmem:[%s145 + $0x80] sm:$0xf] %vm918, %v886
      %952 = vst.msk [vmem:[%s145 + $0x84] sm:$0xf] %vm918, %v887
      %953 = vst.msk [vmem:[%s145 + $0x88] sm:$0xf] %vm918, %v888
      %954 = vst.msk [vmem:[%s145 + $0x8c] sm:$0xf] %vm918, %v889
      %955 = vst.msk [vmem:[%s145 + $0x90] sm:$0xf] %vm918, %v890
      %956 = vst.msk [vmem:[%s145 + $0x94] sm:$0xf] %vm918, %v891
      %957 = vst.msk [vmem:[%s145 + $0x98] sm:$0xf] %vm918, %v892
      %958 = vst.msk [vmem:[%s145 + $0x9c] sm:$0xf] %vm918, %v893
      %959 = vst.msk [vmem:[%s145 + $0xa0] sm:$0xf] %vm918, %v894
      %960 = vst.msk [vmem:[%s145 + $0xa4] sm:$0xf] %vm918, %v895
      %961 = vst.msk [vmem:[%s145 + $0xa8] sm:$0xf] %vm918, %v896
      %962 = vst.msk [vmem:[%s145 + $0xac] sm:$0xf] %vm918, %v897
      %963 = vst.msk [vmem:[%s145 + $0xb0] sm:$0xf] %vm918, %v898
      %964 = vst.msk [vmem:[%s145 + $0xb4] sm:$0xf] %vm918, %v899
      %965 = vst.msk [vmem:[%s145 + $0xb8] sm:$0xf] %vm918, %v900
      %966 = vst.msk [vmem:[%s145 + $0xbc] sm:$0xf] %vm918, %v901
      %967 = vst.msk [vmem:[%s145 + $0xc0] sm:$0xf] %vm918, %v902
      %968 = vst.msk [vmem:[%s145 + $0xc4] sm:$0xf] %vm918, %v903
      %969 = vst.msk [vmem:[%s145 + $0xc8] sm:$0xf] %vm918, %v904
      %970 = vst.msk [vmem:[%s145 + $0xcc] sm:$0xf] %vm918, %v905
      %971 = vst.msk [vmem:[%s145 + $0xd0] sm:$0xf] %vm918, %v906
      %972 = vst.msk [vmem:[%s145 + $0xd4] sm:$0xf] %vm918, %v907
      %973 = vst.msk [vmem:[%s145 + $0xd8] sm:$0xf] %vm918, %v908
      %974 = vst.msk [vmem:[%s145 + $0xdc] sm:$0xf] %vm918, %v909
      %975 = vst.msk [vmem:[%s145 + $0xe0] sm:$0xf] %vm918, %v910
      %976 = vst.msk [vmem:[%s145 + $0xe4] sm:$0xf] %vm918, %v911
      %977 = vst.msk [vmem:[%s145 + $0xe8] sm:$0xf] %vm918, %v912
      %978 = vst.msk [vmem:[%s145 + $0xec] sm:$0xf] %vm918, %v913
      %979 = vst.msk [vmem:[%s145 + $0xf0] sm:$0xf] %vm918, %v914
      %980 = vst.msk [vmem:[%s145 + $0xf4] sm:$0xf] %vm918, %v915
      %981 = vst.msk [vmem:[%s145 + $0xf8] sm:$0xf] %vm918, %v916
      %982 = vst.msk [vmem:[%s145 + $0xfc] sm:$0xf] %vm918, %v917
      %s983 = smul.u32 64, %s13
      %p984 = scmp.lt.s32.totalorder %s983, 255
      %s985 = scalar_select %p984, %s983, 255
      %s986 = smul.addr %s985, 4
      %s987 = scalar_lea.vmem %s2, %s986
      // Predicated region
      $region29: #{discriminator_forward.4} parent=27 // pred_check
        %p988 = pneg %p78
      $region30: #{discriminator_forward.4} parent=27 // pred_check_branch
        %990 = sbr.rel (%p988) target = $region32
      $region31: #{discriminator_forward.4} parent=27 // pred_region
        %s991 = smul.u32 64, %s13
      $region32: #{discriminator_forward.4} parent=27 // pred_fallthru
        _
    $region28: #{discriminator_forward.4} parent=5 // pred_fallthru
      _
    %p992 = scmp.le.s32.totalorder 2, %s8
    // Predicated region
    $region33: #{discriminator_forward.4} parent=5 // pred_check
      %p993 = pneg %p992
    $region34: #{discriminator_forward.4} parent=5 // pred_check_branch
      %995 = sbr.rel (%p993) target = $region36
    $region35: #{discriminator_forward.4} parent=5 // pred_region
      %s996 = ssub.s32 %s8, 2
      // Predicated region
      $region37: #{discriminator_forward.4} parent=35 // pred_check
        %p997 = pneg %p84
      $region38: #{discriminator_forward.4} parent=35 // pred_check_branch
        %999 = sbr.rel (%p997) target = $region40
      $region39: #{discriminator_forward.4} parent=35 // pred_region
        %s1000 = smul.u32 64, %s14
        %p1001 = scmp.lt.s32.totalorder %s1000, 255
        %s1002 = scalar_select %p1001, %s1000, 255
        %s1003 = smul.addr %s1002, 4
        %s1004 = scalar_lea.vmem %s2, %s1003
      $region40: #{discriminator_forward.4} parent=35 // pred_fallthru
        _
    $region36: #{discriminator_forward.4} parent=5 // pred_fallthru
      _
  $region6: #{discriminator_forward.4} parent=0 // loop_footer
    %s12 = sadd.s32 1, %s8
  $region7: #{discriminator_forward.4} parent=0 // loop_footer_branch
    %7 = sbr.rel target = $region3
  $region8: #{discriminator_forward.4} parent=0 // loop_exit
    _

// kernel: discriminator_forward.5
$region0: #{discriminator_forward.5}
  #allocation0 [shape = 'u32[]', space=smem, size = 0x4, offset = 0x4, fixed_abs, tag = 'smem constant byte address 0x4 - core index']
  #allocation1 [shape = 'u32[72,128]{1,0:T(1,128)}', space=vmem, size = 0x9000, scoped, tag = 'internal scratch']
  %s0 = inlined_call_operand.vmem [shape: bf16[512,128], index: 0, kind: input, shape index: {}]
  %s1 = inlined_call_operand.vmem [shape: bf16[128,16], index: 1, kind: input, shape index: {}]
  %s2 = inlined_call_operand.vmem [shape: bf16[512,16], index: 2, kind: output, shape index: {0}]
  %s3 = inlined_call_operand.vmem [shape: f32[8,16], index: 3, kind: output, shape index: {1}]
  %s4 = inlined_call_operand.vmem [shape: f32[8,16], index: 4, kind: output, shape index: {2}]
  %5 = xla_tuple %s2, %s3, %s4
  %s6 = sld [smem:[#allocation0]]
  $region34: #{discriminator_forward.5} parent=0
    _
  %s8 = ssub.s32 1, %s6
  %s9 = scalar_select 0, %s8, %s6
  // Predicated region
  $region2: #{discriminator_forward.5} parent=0 // pred_check
    _
  $region3: #{discriminator_forward.5} parent=0 // pred_check_branch
    %11 = sbr.rel (0) target = $region5
  $region4: #{discriminator_forward.5} parent=0 // pred_region
    _
  $region5: #{discriminator_forward.5} parent=0 // pred_fallthru
    _
  // Predicated region
  $region6: #{discriminator_forward.5} parent=0 // pred_check
    _
  $region7: #{discriminator_forward.5} parent=0 // pred_check_branch
    %13 = sbr.rel (0) target = $region9
  $region8: #{discriminator_forward.5} parent=0 // pred_region
    _
  $region9: #{discriminator_forward.5} parent=0 // pred_fallthru
    _
  %v14 = vld [vmem:[%s0] sm:$0xf]
  %v15 = vld [vmem:[%s0 + $0x4] sm:$0xf]
  %v16 = vld [vmem:[%s0 + $0x8] sm:$0xf]
  %v17 = vld [vmem:[%s0 + $0xc] sm:$0xf]
  %v18 = vld [vmem:[%s0 + $0x10] sm:$0xf]
  %v19 = vld [vmem:[%s0 + $0x14] sm:$0xf]
  %v20 = vld [vmem:[%s0 + $0x18] sm:$0xf]
  %v21 = vld [vmem:[%s0 + $0x1c] sm:$0xf]
  %v22 = vld [vmem:[%s0 + $0x20] sm:$0xf]
  %v23 = vld [vmem:[%s0 + $0x24] sm:$0xf]
  %v24 = vld [vmem:[%s0 + $0x28] sm:$0xf]
  %v25 = vld [vmem:[%s0 + $0x2c] sm:$0xf]
  %v26 = vld [vmem:[%s0 + $0x30] sm:$0xf]
  %v27 = vld [vmem:[%s0 + $0x34] sm:$0xf]
  %v28 = vld [vmem:[%s0 + $0x38] sm:$0xf]
  %v29 = vld [vmem:[%s0 + $0x3c] sm:$0xf]
  %v30 = vld [vmem:[%s0 + $0x40] sm:$0xf]
  %v31 = vld [vmem:[%s0 + $0x44] sm:$0xf]
  %v32 = vld [vmem:[%s0 + $0x48] sm:$0xf]
  %v33 = vld [vmem:[%s0 + $0x4c] sm:$0xf]
  %v34 = vld [vmem:[%s0 + $0x50] sm:$0xf]
  %v35 = vld [vmem:[%s0 + $0x54] sm:$0xf]
  %v36 = vld [vmem:[%s0 + $0x58] sm:$0xf]
  %v37 = vld [vmem:[%s0 + $0x5c] sm:$0xf]
  %v38 = vld [vmem:[%s0 + $0x60] sm:$0xf]
  %v39 = vld [vmem:[%s0 + $0x64] sm:$0xf]
  %v40 = vld [vmem:[%s0 + $0x68] sm:$0xf]
  %v41 = vld [vmem:[%s0 + $0x6c] sm:$0xf]
  %v42 = vld [vmem:[%s0 + $0x70] sm:$0xf]
  %v43 = vld [vmem:[%s0 + $0x74] sm:$0xf]
  %v44 = vld [vmem:[%s0 + $0x78] sm:$0xf]
  %v45 = vld [vmem:[%s0 + $0x7c] sm:$0xf]
  %v46 = vld [vmem:[%s0 + $0x80] sm:$0xf]
  %v47 = vld [vmem:[%s0 + $0x84] sm:$0xf]
  %v48 = vld [vmem:[%s0 + $0x88] sm:$0xf]
  %v49 = vld [vmem:[%s0 + $0x8c] sm:$0xf]
  %v50 = vld [vmem:[%s0 + $0x90] sm:$0xf]
  %v51 = vld [vmem:[%s0 + $0x94] sm:$0xf]
  %v52 = vld [vmem:[%s0 + $0x98] sm:$0xf]
  %v53 = vld [vmem:[%s0 + $0x9c] sm:$0xf]
  %v54 = vld [vmem:[%s0 + $0xa0] sm:$0xf]
  %v55 = vld [vmem:[%s0 + $0xa4] sm:$0xf]
  %v56 = vld [vmem:[%s0 + $0xa8] sm:$0xf]
  %v57 = vld [vmem:[%s0 + $0xac] sm:$0xf]
  %v58 = vld [vmem:[%s0 + $0xb0] sm:$0xf]
  %v59 = vld [vmem:[%s0 + $0xb4] sm:$0xf]
  %v60 = vld [vmem:[%s0 + $0xb8] sm:$0xf]
  %v61 = vld [vmem:[%s0 + $0xbc] sm:$0xf]
  %v62 = vld [vmem:[%s0 + $0xc0] sm:$0xf]
  %v63 = vld [vmem:[%s0 + $0xc4] sm:$0xf]
  %v64 = vld [vmem:[%s0 + $0xc8] sm:$0xf]
  %v65 = vld [vmem:[%s0 + $0xcc] sm:$0xf]
  %v66 = vld [vmem:[%s0 + $0xd0] sm:$0xf]
  %v67 = vld [vmem:[%s0 + $0xd4] sm:$0xf]
  %v68 = vld [vmem:[%s0 + $0xd8] sm:$0xf]
  %v69 = vld [vmem:[%s0 + $0xdc] sm:$0xf]
  %v70 = vld [vmem:[%s0 + $0xe0] sm:$0xf]
  %v71 = vld [vmem:[%s0 + $0xe4] sm:$0xf]
  %v72 = vld [vmem:[%s0 + $0xe8] sm:$0xf]
  %v73 = vld [vmem:[%s0 + $0xec] sm:$0xf]
  %v74 = vld [vmem:[%s0 + $0xf0] sm:$0xf]
  %v75 = vld [vmem:[%s0 + $0xf4] sm:$0xf]
  %v76 = vld [vmem:[%s0 + $0xf8] sm:$0xf]
  %v77 = vld [vmem:[%s0 + $0xfc] sm:$0xf]
  %v78 = vld [vmem:[%s1] sm:$0xf]
  %v79 = vld [vmem:[%s1 + $0x4] sm:$0xf]
  %v80 = vld [vmem:[%s1 + $0x8] sm:$0xf]
  %v81 = vld [vmem:[%s1 + $0xc] sm:$0xf]
  %v82 = vld [vmem:[%s1 + $0x10] sm:$0xf]
  %v83 = vld [vmem:[%s1 + $0x14] sm:$0xf]
  %v84 = vld [vmem:[%s1 + $0x18] sm:$0xf]
  %v85 = vld [vmem:[%s1 + $0x1c] sm:$0xf]
  %v86 = vld [vmem:[%s1 + $0x20] sm:$0xf]
  %v87 = vld [vmem:[%s1 + $0x24] sm:$0xf]
  %v88 = vld [vmem:[%s1 + $0x28] sm:$0xf]
  %v89 = vld [vmem:[%s1 + $0x2c] sm:$0xf]
  %v90 = vld [vmem:[%s1 + $0x30] sm:$0xf]
  %v91 = vld [vmem:[%s1 + $0x34] sm:$0xf]
  %v92 = vld [vmem:[%s1 + $0x38] sm:$0xf]
  %v93 = vld [vmem:[%s1 + $0x3c] sm:$0xf]
  %v158 = vunpack.c.l.b16 %v14
  %v159 = vunpack.c.l.b16 %v15
  %v160 = vunpack.c.l.b16 %v16
  %v161 = vunpack.c.l.b16 %v17
  %v162 = vunpack.c.l.b16 %v18
  %v163 = vunpack.c.l.b16 %v19
  %v164 = vunpack.c.l.b16 %v20
  %v165 = vunpack.c.l.b16 %v21
  %v166 = vunpack.c.l.b16 %v22
  %v167 = vunpack.c.l.b16 %v23
  %v168 = vunpack.c.l.b16 %v24
  %v169 = vunpack.c.l.b16 %v25
  %v170 = vunpack.c.l.b16 %v26
  %v171 = vunpack.c.l.b16 %v27
  %v172 = vunpack.c.l.b16 %v28
  %v173 = vunpack.c.l.b16 %v29
  %v174 = vunpack.c.l.b16 %v30
  %v175 = vunpack.c.l.b16 %v31
  %v176 = vunpack.c.l.b16 %v32
  %v177 = vunpack.c.l.b16 %v33
  %v178 = vunpack.c.l.b16 %v34
  %v179 = vunpack.c.l.b16 %v35
  %v180 = vunpack.c.l.b16 %v36
  %v181 = vunpack.c.l.b16 %v37
  %v182 = vunpack.c.l.b16 %v38
  %v183 = vunpack.c.l.b16 %v39
  %v184 = vunpack.c.l.b16 %v40
  %v185 = vunpack.c.l.b16 %v41
  %v186 = vunpack.c.l.b16 %v42
  %v187 = vunpack.c.l.b16 %v43
  %v188 = vunpack.c.l.b16 %v44
  %v189 = vunpack.c.l.b16 %v45
  %v190 = vunpack.c.l.b16 %v46
  %v191 = vunpack.c.l.b16 %v47
  %v192 = vunpack.c.l.b16 %v48
  %v193 = vunpack.c.l.b16 %v49
  %v194 = vunpack.c.l.b16 %v50
  %v195 = vunpack.c.l.b16 %v51
  %v196 = vunpack.c.l.b16 %v52
  %v197 = vunpack.c.l.b16 %v53
  %v198 = vunpack.c.l.b16 %v54
  %v199 = vunpack.c.l.b16 %v55
  %v200 = vunpack.c.l.b16 %v56
  %v201 = vunpack.c.l.b16 %v57
  %v202 = vunpack.c.l.b16 %v58
  %v203 = vunpack.c.l.b16 %v59
  %v204 = vunpack.c.l.b16 %v60
  %v205 = vunpack.c.l.b16 %v61
  %v206 = vunpack.c.l.b16 %v62
  %v207 = vunpack.c.l.b16 %v63
  %v208 = vunpack.c.l.b16 %v64
  %v209 = vunpack.c.l.b16 %v65
  %v210 = vunpack.c.l.b16 %v66
  %v211 = vunpack.c.l.b16 %v67
  %v212 = vunpack.c.l.b16 %v68
  %v213 = vunpack.c.l.b16 %v69
  %v214 = vunpack.c.l.b16 %v70
  %v215 = vunpack.c.l.b16 %v71
  %v216 = vunpack.c.l.b16 %v72
  %v217 = vunpack.c.l.b16 %v73
  %v218 = vunpack.c.l.b16 %v74
  %v219 = vunpack.c.l.b16 %v75
  %v220 = vunpack.c.l.b16 %v76
  %v221 = vunpack.c.l.b16 %v77
  %v222 = vpack.c.b16 %v159, %v158
  %v223 = vpack.c.b16 %v161, %v160
  %v224 = vpack.c.b16 %v163, %v162
  %v225 = vpack.c.b16 %v165, %v164
  %v226 = vpack.c.b16 %v167, %v166
  %v227 = vpack.c.b16 %v169, %v168
  %v228 = vpack.c.b16 %v171, %v170
  %v229 = vpack.c.b16 %v173, %v172
  %v230 = vpack.c.b16 %v175, %v174
  %v231 = vpack.c.b16 %v177, %v176
  %v232 = vpack.c.b16 %v179, %v178
  %v233 = vpack.c.b16 %v181, %v180
  %v234 = vpack.c.b16 %v183, %v182
  %v235 = vpack.c.b16 %v185, %v184
  %v236 = vpack.c.b16 %v187, %v186
  %v237 = vpack.c.b16 %v189, %v188
  %v238 = vpack.c.b16 %v191, %v190
  %v239 = vpack.c.b16 %v193, %v192
  %v240 = vpack.c.b16 %v195, %v194
  %v241 = vpack.c.b16 %v197, %v196
  %v242 = vpack.c.b16 %v199, %v198
  %v243 = vpack.c.b16 %v201, %v200
  %v244 = vpack.c.b16 %v203, %v202
  %v245 = vpack.c.b16 %v205, %v204
  %v246 = vpack.c.b16 %v207, %v206
  %v247 = vpack.c.b16 %v209, %v208
  %v248 = vpack.c.b16 %v211, %v210
  %v249 = vpack.c.b16 %v213, %v212
  %v250 = vpack.c.b16 %v215, %v214
  %v251 = vpack.c.b16 %v217, %v216
  %v252 = vpack.c.b16 %v219, %v218
  %v253 = vpack.c.b16 %v221, %v220
  %v302 = vunpack.c.l.b16 %v78
  %v303 = vunpack.c.l.b16 %v79
  %v304 = vunpack.c.l.b16 %v80
  %v305 = vunpack.c.l.b16 %v81
  %v306 = vunpack.c.l.b16 %v82
  %v307 = vunpack.c.l.b16 %v83
  %v308 = vunpack.c.l.b16 %v84
  %v309 = vunpack.c.l.b16 %v85
  %v310 = vunpack.c.l.b16 %v86
  %v311 = vunpack.c.l.b16 %v87
  %v312 = vunpack.c.l.b16 %v88
  %v313 = vunpack.c.l.b16 %v89
  %v314 = vunpack.c.l.b16 %v90
  %v315 = vunpack.c.l.b16 %v91
  %v316 = vunpack.c.l.b16 %v92
  %v317 = vunpack.c.l.b16 %v93
  %v318 = vpack.c.b16 %v303, %v302
  %v319 = vpack.c.b16 %v305, %v304
  %v320 = vpack.c.b16 %v307, %v306
  %v321 = vpack.c.b16 %v309, %v308
  %v322 = vpack.c.b16 %v311, %v310
  %v323 = vpack.c.b16 %v313, %v312
  %v324 = vpack.c.b16 %v315, %v314
  %v325 = vpack.c.b16 %v317, %v316
  %334 = vmatpush.bf16.msra.mxu0 %v325
  %335 = vmatpush.bf16.msra.mxu0 %v324
  %336 = vmatpush.bf16.msra.mxu0 %v323
  %337 = vmatpush.bf16.msra.mxu0 %v322
  %338 = vmatpush.bf16.msra.mxu0 %v321
  %339 = vmatpush.bf16.msra.mxu0 %v320
  %340 = vmatpush.bf16.msra.mxu0 %v319
  %341 = vmatpush.bf16.msra.mxu0 %v318
  %342 = vmatmul.bf16.gmra.mxu0 %v222
  %v343 = vpop.f32.mrf.mxu0
  %v344 = vadd.f32 0.0, %v343
  %v345 = vpop.f32.mrf.mxu0
  %v346 = vadd.f32 0.0, %v345
  %347 = vmatmul.bf16.gmra.mxu0 %v223
  %v348 = vpop.f32.mrf.mxu0
  %v349 = vadd.f32 0.0, %v348
  %v350 = vpop.f32.mrf.mxu0
  %v351 = vadd.f32 0.0, %v350
  %352 = vmatmul.bf16.gmra.mxu0 %v224
  %v353 = vpop.f32.mrf.mxu0
  %v354 = vadd.f32 0.0, %v353
  %v355 = vpop.f32.mrf.mxu0
  %v356 = vadd.f32 0.0, %v355
  %357 = vmatmul.bf16.gmra.mxu0 %v225
  %v358 = vpop.f32.mrf.mxu0
  %v359 = vadd.f32 0.0, %v358
  %v360 = vpop.f32.mrf.mxu0
  %v361 = vadd.f32 0.0, %v360
  %362 = vmatmul.bf16.gmra.mxu0 %v226
  %v363 = vpop.f32.mrf.mxu0
  %v364 = vadd.f32 0.0, %v363
  %v365 = vpop.f32.mrf.mxu0
  %v366 = vadd.f32 0.0, %v365
  %367 = vmatmul.bf16.gmra.mxu0 %v227
  %v368 = vpop.f32.mrf.mxu0
  %v369 = vadd.f32 0.0, %v368
  %v370 = vpop.f32.mrf.mxu0
  %v371 = vadd.f32 0.0, %v370
  %372 = vmatmul.bf16.gmra.mxu0 %v228
  %v373 = vpop.f32.mrf.mxu0
  %v374 = vadd.f32 0.0, %v373
  %v375 = vpop.f32.mrf.mxu0
  %v376 = vadd.f32 0.0, %v375
  %377 = vmatmul.bf16.gmra.mxu0 %v229
  %v378 = vpop.f32.mrf.mxu0
  %v379 = vadd.f32 0.0, %v378
  %v380 = vpop.f32.mrf.mxu0
  %v381 = vadd.f32 0.0, %v380
  %382 = vmatmul.bf16.gmra.mxu0 %v230
  %v383 = vpop.f32.mrf.mxu0
  %v384 = vadd.f32 0.0, %v383
  %v385 = vpop.f32.mrf.mxu0
  %v386 = vadd.f32 0.0, %v385
  %387 = vmatmul.bf16.gmra.mxu0 %v231
  %v388 = vpop.f32.mrf.mxu0
  %v389 = vadd.f32 0.0, %v388
  %v390 = vpop.f32.mrf.mxu0
  %v391 = vadd.f32 0.0, %v390
  %392 = vmatmul.bf16.gmra.mxu0 %v232
  %v393 = vpop.f32.mrf.mxu0
  %v394 = vadd.f32 0.0, %v393
  %v395 = vpop.f32.mrf.mxu0
  %v396 = vadd.f32 0.0, %v395
  %397 = vmatmul.bf16.gmra.mxu0 %v233
  %v398 = vpop.f32.mrf.mxu0
  %v399 = vadd.f32 0.0, %v398
  %v400 = vpop.f32.mrf.mxu0
  %v401 = vadd.f32 0.0, %v400
  %402 = vmatmul.bf16.gmra.mxu0 %v234
  %v403 = vpop.f32.mrf.mxu0
  %v404 = vadd.f32 0.0, %v403
  %v405 = vpop.f32.mrf.mxu0
  %v406 = vadd.f32 0.0, %v405
  %407 = vmatmul.bf16.gmra.mxu0 %v235
  %v408 = vpop.f32.mrf.mxu0
  %v409 = vadd.f32 0.0, %v408
  %v410 = vpop.f32.mrf.mxu0
  %v411 = vadd.f32 0.0, %v410
  %412 = vmatmul.bf16.gmra.mxu0 %v236
  %v413 = vpop.f32.mrf.mxu0
  %v414 = vadd.f32 0.0, %v413
  %v415 = vpop.f32.mrf.mxu0
  %v416 = vadd.f32 0.0, %v415
  %417 = vmatmul.bf16.gmra.mxu0 %v237
  %v418 = vpop.f32.mrf.mxu0
  %v419 = vadd.f32 0.0, %v418
  %v420 = vpop.f32.mrf.mxu0
  %v421 = vadd.f32 0.0, %v420
  %422 = vmatmul.bf16.gmra.mxu0 %v238
  %v423 = vpop.f32.mrf.mxu0
  %v424 = vadd.f32 0.0, %v423
  %v425 = vpop.f32.mrf.mxu0
  %v426 = vadd.f32 0.0, %v425
  %427 = vmatmul.bf16.gmra.mxu0 %v239
  %v428 = vpop.f32.mrf.mxu0
  %v429 = vadd.f32 0.0, %v428
  %v430 = vpop.f32.mrf.mxu0
  %v431 = vadd.f32 0.0, %v430
  %432 = vmatmul.bf16.gmra.mxu0 %v240
  %v433 = vpop.f32.mrf.mxu0
  %v434 = vadd.f32 0.0, %v433
  %v435 = vpop.f32.mrf.mxu0
  %v436 = vadd.f32 0.0, %v435
  %437 = vmatmul.bf16.gmra.mxu0 %v241
  %v438 = vpop.f32.mrf.mxu0
  %v439 = vadd.f32 0.0, %v438
  %v440 = vpop.f32.mrf.mxu0
  %v441 = vadd.f32 0.0, %v440
  %442 = vmatmul.bf16.gmra.mxu0 %v242
  %v443 = vpop.f32.mrf.mxu0
  %v444 = vadd.f32 0.0, %v443
  %v445 = vpop.f32.mrf.mxu0
  %v446 = vadd.f32 0.0, %v445
  %447 = vmatmul.bf16.gmra.mxu0 %v243
  %v448 = vpop.f32.mrf.mxu0
  %v449 = vadd.f32 0.0, %v448
  %v450 = vpop.f32.mrf.mxu0
  %v451 = vadd.f32 0.0, %v450
  %452 = vmatmul.bf16.gmra.mxu0 %v244
  %v453 = vpop.f32.mrf.mxu0
  %v454 = vadd.f32 0.0, %v453
  %v455 = vpop.f32.mrf.mxu0
  %v456 = vadd.f32 0.0, %v455
  %457 = vmatmul.bf16.gmra.mxu0 %v245
  %v458 = vpop.f32.mrf.mxu0
  %v459 = vadd.f32 0.0, %v458
  %v460 = vpop.f32.mrf.mxu0
  %v461 = vadd.f32 0.0, %v460
  %462 = vmatmul.bf16.gmra.mxu0 %v246
  %v463 = vpop.f32.mrf.mxu0
  %v464 = vadd.f32 0.0, %v463
  %v465 = vpop.f32.mrf.mxu0
  %v466 = vadd.f32 0.0, %v465
  %467 = vmatmul.bf16.gmra.mxu0 %v247
  %v468 = vpop.f32.mrf.mxu0
  %v469 = vadd.f32 0.0, %v468
  %v470 = vpop.f32.mrf.mxu0
  %v471 = vadd.f32 0.0, %v470
  %472 = vmatmul.bf16.gmra.mxu0 %v248
  %v473 = vpop.f32.mrf.mxu0
  %v474 = vadd.f32 0.0, %v473
  %v475 = vpop.f32.mrf.mxu0
  %v476 = vadd.f32 0.0, %v475
  %477 = vmatmul.bf16.gmra.mxu0 %v249
  %v478 = vpop.f32.mrf.mxu0
  %v479 = vadd.f32 0.0, %v478
  %v480 = vpop.f32.mrf.mxu0
  %v481 = vadd.f32 0.0, %v480
  %482 = vmatmul.bf16.gmra.mxu0 %v250
  %v483 = vpop.f32.mrf.mxu0
  %v484 = vadd.f32 0.0, %v483
  %v485 = vpop.f32.mrf.mxu0
  %v486 = vadd.f32 0.0, %v485
  %487 = vmatmul.bf16.gmra.mxu0 %v251
  %v488 = vpop.f32.mrf.mxu0
  %v489 = vadd.f32 0.0, %v488
  %v490 = vpop.f32.mrf.mxu0
  %v491 = vadd.f32 0.0, %v490
  %492 = vmatmul.bf16.gmra.mxu0 %v252
  %v493 = vpop.f32.mrf.mxu0
  %v494 = vadd.f32 0.0, %v493
  %v495 = vpop.f32.mrf.mxu0
  %v496 = vadd.f32 0.0, %v495
  %497 = vmatmul.bf16.gmra.mxu0 %v253
  %v498 = vpop.f32.mrf.mxu0
  %v499 = vadd.f32 0.0, %v498
  %v500 = vpop.f32.mrf.mxu0
  %v501 = vadd.f32 0.0, %v500
  %502 = vdwg.mxu0
  %v503 = vpack.c.bf16 %v344, %v344
  %v504 = vpack.c.bf16 %v346, %v346
  %v505 = vpack.c.bf16 %v349, %v349
  %v506 = vpack.c.bf16 %v351, %v351
  %v507 = vpack.c.bf16 %v354, %v354
  %v508 = vpack.c.bf16 %v356, %v356
  %v509 = vpack.c.bf16 %v359, %v359
  %v510 = vpack.c.bf16 %v361, %v361
  %v511 = vpack.c.bf16 %v364, %v364
  %v512 = vpack.c.bf16 %v366, %v366
  %v513 = vpack.c.bf16 %v369, %v369
  %v514 = vpack.c.bf16 %v371, %v371
  %v515 = vpack.c.bf16 %v374, %v374
  %v516 = vpack.c.bf16 %v376, %v376
  %v517 = vpack.c.bf16 %v379, %v379
  %v518 = vpack.c.bf16 %v381, %v381
  %v519 = vpack.c.bf16 %v384, %v384
  %v520 = vpack.c.bf16 %v386, %v386
  %v521 = vpack.c.bf16 %v389, %v389
  %v522 = vpack.c.bf16 %v391, %v391
  %v523 = vpack.c.bf16 %v394, %v394
  %v524 = vpack.c.bf16 %v396, %v396
  %v525 = vpack.c.bf16 %v399, %v399
  %v526 = vpack.c.bf16 %v401, %v401
  %v527 = vpack.c.bf16 %v404, %v404
  %v528 = vpack.c.bf16 %v406, %v406
  %v529 = vpack.c.bf16 %v409, %v409
  %v530 = vpack.c.bf16 %v411, %v411
  %v531 = vpack.c.bf16 %v414, %v414
  %v532 = vpack.c.bf16 %v416, %v416
  %v533 = vpack.c.bf16 %v419, %v419
  %v534 = vpack.c.bf16 %v421, %v421
  %v535 = vpack.c.bf16 %v424, %v424
  %v536 = vpack.c.bf16 %v426, %v426
  %v537 = vpack.c.bf16 %v429, %v429
  %v538 = vpack.c.bf16 %v431, %v431
  %v539 = vpack.c.bf16 %v434, %v434
  %v540 = vpack.c.bf16 %v436, %v436
  %v541 = vpack.c.bf16 %v439, %v439
  %v542 = vpack.c.bf16 %v441, %v441
  %v543 = vpack.c.bf16 %v444, %v444
  %v544 = vpack.c.bf16 %v446, %v446
  %v545 = vpack.c.bf16 %v449, %v449
  %v546 = vpack.c.bf16 %v451, %v451
  %v547 = vpack.c.bf16 %v454, %v454
  %v548 = vpack.c.bf16 %v456, %v456
  %v549 = vpack.c.bf16 %v459, %v459
  %v550 = vpack.c.bf16 %v461, %v461
  %v551 = vpack.c.bf16 %v464, %v464
  %v552 = vpack.c.bf16 %v466, %v466
  %v553 = vpack.c.bf16 %v469, %v469
  %v554 = vpack.c.bf16 %v471, %v471
  %v555 = vpack.c.bf16 %v474, %v474
  %v556 = vpack.c.bf16 %v476, %v476
  %v557 = vpack.c.bf16 %v479, %v479
  %v558 = vpack.c.bf16 %v481, %v481
  %v559 = vpack.c.bf16 %v484, %v484
  %v560 = vpack.c.bf16 %v486, %v486
  %v561 = vpack.c.bf16 %v489, %v489
  %v562 = vpack.c.bf16 %v491, %v491
  %v563 = vpack.c.bf16 %v494, %v494
  %v564 = vpack.c.bf16 %v496, %v496
  %v565 = vpack.c.bf16 %v499, %v499
  %v566 = vpack.c.bf16 %v501, %v501
  %vm567 = vcmask 125952
  %568 = vst.msk [vmem:[%s2] sm:$0xf] %vm567, %v503
  %569 = vst.msk [vmem:[%s2 + $0x4] sm:$0xf] %vm567, %v504
  %570 = vst.msk [vmem:[%s2 + $0x8] sm:$0xf] %vm567, %v505
  %571 = vst.msk [vmem:[%s2 + $0xc] sm:$0xf] %vm567, %v506
  %572 = vst.msk [vmem:[%s2 + $0x10] sm:$0xf] %vm567, %v507
  %573 = vst.msk [vmem:[%s2 + $0x14] sm:$0xf] %vm567, %v508
  %574 = vst.msk [vmem:[%s2 + $0x18] sm:$0xf] %vm567, %v509
  %575 = vst.msk [vmem:[%s2 + $0x1c] sm:$0xf] %vm567, %v510
  %576 = vst.msk [vmem:[%s2 + $0x20] sm:$0xf] %vm567, %v511
  %577 = vst.msk [vmem:[%s2 + $0x24] sm:$0xf] %vm567, %v512
  %578 = vst.msk [vmem:[%s2 + $0x28] sm:$0xf] %vm567, %v513
  %579 = vst.msk [vmem:[%s2 + $0x2c] sm:$0xf] %vm567, %v514
  %580 = vst.msk [vmem:[%s2 + $0x30] sm:$0xf] %vm567, %v515
  %581 = vst.msk [vmem:[%s2 + $0x34] sm:$0xf] %vm567, %v516
  %582 = vst.msk [vmem:[%s2 + $0x38] sm:$0xf] %vm567, %v517
  %583 = vst.msk [vmem:[%s2 + $0x3c] sm:$0xf] %vm567, %v518
  %584 = vst.msk [vmem:[%s2 + $0x40] sm:$0xf] %vm567, %v519
  %585 = vst.msk [vmem:[%s2 + $0x44] sm:$0xf] %vm567, %v520
  %586 = vst.msk [vmem:[%s2 + $0x48] sm:$0xf] %vm567, %v521
  %587 = vst.msk [vmem:[%s2 + $0x4c] sm:$0xf] %vm567, %v522
  %588 = vst.msk [vmem:[%s2 + $0x50] sm:$0xf] %vm567, %v523
  %589 = vst.msk [vmem:[%s2 + $0x54] sm:$0xf] %vm567, %v524
  %590 = vst.msk [vmem:[%s2 + $0x58] sm:$0xf] %vm567, %v525
  %591 = vst.msk [vmem:[%s2 + $0x5c] sm:$0xf] %vm567, %v526
  %592 = vst.msk [vmem:[%s2 + $0x60] sm:$0xf] %vm567, %v527
  %593 = vst.msk [vmem:[%s2 + $0x64] sm:$0xf] %vm567, %v528
  %594 = vst.msk [vmem:[%s2 + $0x68] sm:$0xf] %vm567, %v529
  %595 = vst.msk [vmem:[%s2 + $0x6c] sm:$0xf] %vm567, %v530
  %596 = vst.msk [vmem:[%s2 + $0x70] sm:$0xf] %vm567, %v531
  %597 = vst.msk [vmem:[%s2 + $0x74] sm:$0xf] %vm567, %v532
  %598 = vst.msk [vmem:[%s2 + $0x78] sm:$0xf] %vm567, %v533
  %599 = vst.msk [vmem:[%s2 + $0x7c] sm:$0xf] %vm567, %v534
  %600 = vst.msk [vmem:[%s2 + $0x80] sm:$0xf] %vm567, %v535
  %601 = vst.msk [vmem:[%s2 + $0x84] sm:$0xf] %vm567, %v536
  %602 = vst.msk [vmem:[%s2 + $0x88] sm:$0xf] %vm567, %v537
  %603 = vst.msk [vmem:[%s2 + $0x8c] sm:$0xf] %vm567, %v538
  %604 = vst.msk [vmem:[%s2 + $0x90] sm:$0xf] %vm567, %v539
  %605 = vst.msk [vmem:[%s2 + $0x94] sm:$0xf] %vm567, %v540
  %606 = vst.msk [vmem:[%s2 + $0x98] sm:$0xf] %vm567, %v541
  %607 = vst.msk [vmem:[%s2 + $0x9c] sm:$0xf] %vm567, %v542
  %608 = vst.msk [vmem:[%s2 + $0xa0] sm:$0xf] %vm567, %v543
  %609 = vst.msk [vmem:[%s2 + $0xa4] sm:$0xf] %vm567, %v544
  %610 = vst.msk [vmem:[%s2 + $0xa8] sm:$0xf] %vm567, %v545
  %611 = vst.msk [vmem:[%s2 + $0xac] sm:$0xf] %vm567, %v546
  %612 = vst.msk [vmem:[%s2 + $0xb0] sm:$0xf] %vm567, %v547
  %613 = vst.msk [vmem:[%s2 + $0xb4] sm:$0xf] %vm567, %v548
  %614 = vst.msk [vmem:[%s2 + $0xb8] sm:$0xf] %vm567, %v549
  %615 = vst.msk [vmem:[%s2 + $0xbc] sm:$0xf] %vm567, %v550
  %616 = vst.msk [vmem:[%s2 + $0xc0] sm:$0xf] %vm567, %v551
  %617 = vst.msk [vmem:[%s2 + $0xc4] sm:$0xf] %vm567, %v552
  %618 = vst.msk [vmem:[%s2 + $0xc8] sm:$0xf] %vm567, %v553
  %619 = vst.msk [vmem:[%s2 + $0xcc] sm:$0xf] %vm567, %v554
  %620 = vst.msk [vmem:[%s2 + $0xd0] sm:$0xf] %vm567, %v555
  %621 = vst.msk [vmem:[%s2 + $0xd4] sm:$0xf] %vm567, %v556
  %622 = vst.msk [vmem:[%s2 + $0xd8] sm:$0xf] %vm567, %v557
  %623 = vst.msk [vmem:[%s2 + $0xdc] sm:$0xf] %vm567, %v558
  %624 = vst.msk [vmem:[%s2 + $0xe0] sm:$0xf] %vm567, %v559
  %625 = vst.msk [vmem:[%s2 + $0xe4] sm:$0xf] %vm567, %v560
  %626 = vst.msk [vmem:[%s2 + $0xe8] sm:$0xf] %vm567, %v561
  %627 = vst.msk [vmem:[%s2 + $0xec] sm:$0xf] %vm567, %v562
  %628 = vst.msk [vmem:[%s2 + $0xf0] sm:$0xf] %vm567, %v563
  %629 = vst.msk [vmem:[%s2 + $0xf4] sm:$0xf] %vm567, %v564
  %630 = vst.msk [vmem:[%s2 + $0xf8] sm:$0xf] %vm567, %v565
  %631 = vst.msk [vmem:[%s2 + $0xfc] sm:$0xf] %vm567, %v566
  %vm632 = vcmask 130048
  %v633 = vsel %vm632, %v344, 0.0
  %v634 = vsel %vm632, %v346, 0.0
  %v635 = vadd.f32 %v633, %v634
  %v636 = vsel %vm632, %v349, 0.0
  %v637 = vadd.f32 %v635, %v636
  %v638 = vsel %vm632, %v351, 0.0
  %v639 = vadd.f32 %v637, %v638
  %v640 = vsel %vm632, %v354, 0.0
  %v641 = vadd.f32 %v639, %v640
  %v642 = vsel %vm632, %v356, 0.0
  %v643 = vadd.f32 %v641, %v642
  %v644 = vsel %vm632, %v359, 0.0
  %v645 = vadd.f32 %v643, %v644
  %v646 = vsel %vm632, %v361, 0.0
  %v647 = vadd.f32 %v645, %v646
  %v648 = vsel %vm632, %v364, 0.0
  %v649 = vadd.f32 %v647, %v648
  %v650 = vsel %vm632, %v366, 0.0
  %v651 = vadd.f32 %v649, %v650
  %v652 = vsel %vm632, %v369, 0.0
  %v653 = vadd.f32 %v651, %v652
  %v654 = vsel %vm632, %v371, 0.0
  %v655 = vadd.f32 %v653, %v654
  %v656 = vsel %vm632, %v374, 0.0
  %v657 = vadd.f32 %v655, %v656
  %v658 = vsel %vm632, %v376, 0.0
  %v659 = vadd.f32 %v657, %v658
  %v660 = vsel %vm632, %v379, 0.0
  %v661 = vadd.f32 %v659, %v660
  %v662 = vsel %vm632, %v381, 0.0
  %v663 = vadd.f32 %v661, %v662
  %v664 = vsel %vm632, %v384, 0.0
  %v665 = vadd.f32 %v663, %v664
  %v666 = vsel %vm632, %v386, 0.0
  %v667 = vadd.f32 %v665, %v666
  %v668 = vsel %vm632, %v389, 0.0
  %v669 = vadd.f32 %v667, %v668
  %v670 = vsel %vm632, %v391, 0.0
  %v671 = vadd.f32 %v669, %v670
  %v672 = vsel %vm632, %v394, 0.0
  %v673 = vadd.f32 %v671, %v672
  %v674 = vsel %vm632, %v396, 0.0
  %v675 = vadd.f32 %v673, %v674
  %v676 = vsel %vm632, %v399, 0.0
  %v677 = vadd.f32 %v675, %v676
  %v678 = vsel %vm632, %v401, 0.0
  %v679 = vadd.f32 %v677, %v678
  %v680 = vsel %vm632, %v404, 0.0
  %v681 = vadd.f32 %v679, %v680
  %v682 = vsel %vm632, %v406, 0.0
  %v683 = vadd.f32 %v681, %v682
  %v684 = vsel %vm632, %v409, 0.0
  %v685 = vadd.f32 %v683, %v684
  %v686 = vsel %vm632, %v411, 0.0
  %v687 = vadd.f32 %v685, %v686
  %v688 = vsel %vm632, %v414, 0.0
  %v689 = vadd.f32 %v687, %v688
  %v690 = vsel %vm632, %v416, 0.0
  %v691 = vadd.f32 %v689, %v690
  %v692 = vsel %vm632, %v419, 0.0
  %v693 = vadd.f32 %v691, %v692
  %v694 = vsel %vm632, %v421, 0.0
  %v695 = vadd.f32 %v693, %v694
  %v696 = vsel %vm632, %v424, 0.0
  %v697 = vadd.f32 %v695, %v696
  %v698 = vsel %vm632, %v426, 0.0
  %v699 = vadd.f32 %v697, %v698
  %v700 = vsel %vm632, %v429, 0.0
  %v701 = vadd.f32 %v699, %v700
  %v702 = vsel %vm632, %v431, 0.0
  %v703 = vadd.f32 %v701, %v702
  %v704 = vsel %vm632, %v434, 0.0
  %v705 = vadd.f32 %v703, %v704
  %v706 = vsel %vm632, %v436, 0.0
  %v707 = vadd.f32 %v705, %v706
  %v708 = vsel %vm632, %v439, 0.0
  %v709 = vadd.f32 %v707, %v708
  %v710 = vsel %vm632, %v441, 0.0
  %v711 = vadd.f32 %v709, %v710
  %v712 = vsel %vm632, %v444, 0.0
  %v713 = vadd.f32 %v711, %v712
  %v714 = vsel %vm632, %v446, 0.0
  %v715 = vadd.f32 %v713, %v714
  %v716 = vsel %vm632, %v449, 0.0
  %v717 = vadd.f32 %v715, %v716
  %v718 = vsel %vm632, %v451, 0.0
  %v719 = vadd.f32 %v717, %v718
  %v720 = vsel %vm632, %v454, 0.0
  %v721 = vadd.f32 %v719, %v720
  %v722 = vsel %vm632, %v456, 0.0
  %v723 = vadd.f32 %v721, %v722
  %v724 = vsel %vm632, %v459, 0.0
  %v725 = vadd.f32 %v723, %v724
  %v726 = vsel %vm632, %v461, 0.0
  %v727 = vadd.f32 %v725, %v726
  %v728 = vsel %vm632, %v464, 0.0
  %v729 = vadd.f32 %v727, %v728
  %v730 = vsel %vm632, %v466, 0.0
  %v731 = vadd.f32 %v729, %v730
  %v732 = vsel %vm632, %v469, 0.0
  %v733 = vadd.f32 %v731, %v732
  %v734 = vsel %vm632, %v471, 0.0
  %v735 = vadd.f32 %v733, %v734
  %v736 = vsel %vm632, %v474, 0.0
  %v737 = vadd.f32 %v735, %v736
  %v738 = vsel %vm632, %v476, 0.0
  %v739 = vadd.f32 %v737, %v738
  %v740 = vsel %vm632, %v479, 0.0
  %v741 = vadd.f32 %v739, %v740
  %v742 = vsel %vm632, %v481, 0.0
  %v743 = vadd.f32 %v741, %v742
  %v744 = vsel %vm632, %v484, 0.0
  %v745 = vadd.f32 %v743, %v744
  %v746 = vsel %vm632, %v486, 0.0
  %v747 = vadd.f32 %v745, %v746
  %v748 = vsel %vm632, %v489, 0.0
  %v749 = vadd.f32 %v747, %v748
  %v750 = vsel %vm632, %v491, 0.0
  %v751 = vadd.f32 %v749, %v750
  %v752 = vsel %vm632, %v494, 0.0
  %v753 = vadd.f32 %v751, %v752
  %v754 = vsel %vm632, %v496, 0.0
  %v755 = vadd.f32 %v753, %v754
  %v756 = vsel %vm632, %v499, 0.0
  %v757 = vadd.f32 %v755, %v756
  %v758 = vsel %vm632, %v501, 0.0
  %v759 = vadd.f32 %v757, %v758
  %760 = vst.msk [vmem:[%s3] sm:$0xff] %vm632, %v759
  %v761 = vmul.f32 %v344, %v344
  %v762 = vmul.f32 %v346, %v346
  %v763 = vmul.f32 %v349, %v349
  %v764 = vmul.f32 %v351, %v351
  %v765 = vmul.f32 %v354, %v354
  %v766 = vmul.f32 %v356, %v356
  %v767 = vmul.f32 %v359, %v359
  %v768 = vmul.f32 %v361, %v361
  %v769 = vmul.f32 %v364, %v364
  %v770 = vmul.f32 %v366, %v366
  %v771 = vmul.f32 %v369, %v369
  %v772 = vmul.f32 %v371, %v371
  %v773 = vmul.f32 %v374, %v374
  %v774 = vmul.f32 %v376, %v376
  %v775 = vmul.f32 %v379, %v379
  %v776 = vmul.f32 %v381, %v381
  %v777 = vmul.f32 %v384, %v384
  %v778 = vmul.f32 %v386, %v386
  %v779 = vmul.f32 %v389, %v389
  %v780 = vmul.f32 %v391, %v391
  %v781 = vmul.f32 %v394, %v394
  %v782 = vmul.f32 %v396, %v396
  %v783 = vmul.f32 %v399, %v399
  %v784 = vmul.f32 %v401, %v401
  %v785 = vmul.f32 %v404, %v404
  %v786 = vmul.f32 %v406, %v406
  %v787 = vmul.f32 %v409, %v409
  %v788 = vmul.f32 %v411, %v411
  %v789 = vmul.f32 %v414, %v414
  %v790 = vmul.f32 %v416, %v416
  %v791 = vmul.f32 %v419, %v419
  %v792 = vmul.f32 %v421, %v421
  %v793 = vmul.f32 %v424, %v424
  %v794 = vmul.f32 %v426, %v426
  %v795 = vmul.f32 %v429, %v429
  %v796 = vmul.f32 %v431, %v431
  %v797 = vmul.f32 %v434, %v434
  %v798 = vmul.f32 %v436, %v436
  %v799 = vmul.f32 %v439, %v439
  %v800 = vmul.f32 %v441, %v441
  %v801 = vmul.f32 %v444, %v444
  %v802 = vmul.f32 %v446, %v446
  %v803 = vmul.f32 %v449, %v449
  %v804 = vmul.f32 %v451, %v451
  %v805 = vmul.f32 %v454, %v454
  %v806 = vmul.f32 %v456, %v456
  %v807 = vmul.f32 %v459, %v459
  %v808 = vmul.f32 %v461, %v461
  %v809 = vmul.f32 %v464, %v464
  %v810 = vmul.f32 %v466, %v466
  %v811 = vmul.f32 %v469, %v469
  %v812 = vmul.f32 %v471, %v471
  %v813 = vmul.f32 %v474, %v474
  %v814 = vmul.f32 %v476, %v476
  %v815 = vmul.f32 %v479, %v479
  %v816 = vmul.f32 %v481, %v481
  %v817 = vmul.f32 %v484, %v484
  %v818 = vmul.f32 %v486, %v486
  %v819 = vmul.f32 %v489, %v489
  %v820 = vmul.f32 %v491, %v491
  %v821 = vmul.f32 %v494, %v494
  %v822 = vmul.f32 %v496, %v496
  %v823 = vmul.f32 %v499, %v499
  %v824 = vmul.f32 %v501, %v501
  %v825 = vsel %vm632, %v761, 0.0
  %v826 = vsel %vm632, %v762, 0.0
  %v827 = vadd.f32 %v825, %v826
  %v828 = vsel %vm632, %v763, 0.0
  %v829 = vadd.f32 %v827, %v828
  %v830 = vsel %vm632, %v764, 0.0
  %v831 = vadd.f32 %v829, %v830
  %v832 = vsel %vm632, %v765, 0.0
  %v833 = vadd.f32 %v831, %v832
  %v834 = vsel %vm632, %v766, 0.0
  %v835 = vadd.f32 %v833, %v834
  %v836 = vsel %vm632, %v767, 0.0
  %v837 = vadd.f32 %v835, %v836
  %v838 = vsel %vm632, %v768, 0.0
  %v839 = vadd.f32 %v837, %v838
  %v840 = vsel %vm632, %v769, 0.0
  %v841 = vadd.f32 %v839, %v840
  %v842 = vsel %vm632, %v770, 0.0
  %v843 = vadd.f32 %v841, %v842
  %v844 = vsel %vm632, %v771, 0.0
  %v845 = vadd.f32 %v843, %v844
  %v846 = vsel %vm632, %v772, 0.0
  %v847 = vadd.f32 %v845, %v846
  %v848 = vsel %vm632, %v773, 0.0
  %v849 = vadd.f32 %v847, %v848
  %v850 = vsel %vm632, %v774, 0.0
  %v851 = vadd.f32 %v849, %v850
  %v852 = vsel %vm632, %v775, 0.0
  %v853 = vadd.f32 %v851, %v852
  %v854 = vsel %vm632, %v776, 0.0
  %v855 = vadd.f32 %v853, %v854
  %v856 = vsel %vm632, %v777, 0.0
  %v857 = vadd.f32 %v855, %v856
  %v858 = vsel %vm632, %v778, 0.0
  %v859 = vadd.f32 %v857, %v858
  %v860 = vsel %vm632, %v779, 0.0
  %v861 = vadd.f32 %v859, %v860
  %v862 = vsel %vm632, %v780, 0.0
  %v863 = vadd.f32 %v861, %v862
  %v864 = vsel %vm632, %v781, 0.0
  %v865 = vadd.f32 %v863, %v864
  %v866 = vsel %vm632, %v782, 0.0
  %v867 = vadd.f32 %v865, %v866
  %v868 = vsel %vm632, %v783, 0.0
  %v869 = vadd.f32 %v867, %v868
  %v870 = vsel %vm632, %v784, 0.0
  %v871 = vadd.f32 %v869, %v870
  %v872 = vsel %vm632, %v785, 0.0
  %v873 = vadd.f32 %v871, %v872
  %v874 = vsel %vm632, %v786, 0.0
  %v875 = vadd.f32 %v873, %v874
  %v876 = vsel %vm632, %v787, 0.0
  %v877 = vadd.f32 %v875, %v876
  %v878 = vsel %vm632, %v788, 0.0
  %v879 = vadd.f32 %v877, %v878
  %v880 = vsel %vm632, %v789, 0.0
  %v881 = vadd.f32 %v879, %v880
  %v882 = vsel %vm632, %v790, 0.0
  %v883 = vadd.f32 %v881, %v882
  %v884 = vsel %vm632, %v791, 0.0
  %v885 = vadd.f32 %v883, %v884
  %v886 = vsel %vm632, %v792, 0.0
  %v887 = vadd.f32 %v885, %v886
  %v888 = vsel %vm632, %v793, 0.0
  %v889 = vadd.f32 %v887, %v888
  %v890 = vsel %vm632, %v794, 0.0
  %v891 = vadd.f32 %v889, %v890
  %v892 = vsel %vm632, %v795, 0.0
  %v893 = vadd.f32 %v891, %v892
  %v894 = vsel %vm632, %v796, 0.0
  %v895 = vadd.f32 %v893, %v894
  %v896 = vsel %vm632, %v797, 0.0
  %v897 = vadd.f32 %v895, %v896
  %v898 = vsel %vm632, %v798, 0.0
  %v899 = vadd.f32 %v897, %v898
  %v900 = vsel %vm632, %v799, 0.0
  %v901 = vadd.f32 %v899, %v900
  %v902 = vsel %vm632, %v800, 0.0
  %v903 = vadd.f32 %v901, %v902
  %v904 = vsel %vm632, %v801, 0.0
  %v905 = vadd.f32 %v903, %v904
  %v906 = vsel %vm632, %v802, 0.0
  %v907 = vadd.f32 %v905, %v906
  %v908 = vsel %vm632, %v803, 0.0
  %v909 = vadd.f32 %v907, %v908
  %v910 = vsel %vm632, %v804, 0.0
  %v911 = vadd.f32 %v909, %v910
  %v912 = vsel %vm632, %v805, 0.0
  %v913 = vadd.f32 %v911, %v912
  %v914 = vsel %vm632, %v806, 0.0
  %v915 = vadd.f32 %v913, %v914
  %v916 = vsel %vm632, %v807, 0.0
  %v917 = vadd.f32 %v915, %v916
  %v918 = vsel %vm632, %v808, 0.0
  %v919 = vadd.f32 %v917, %v918
  %v920 = vsel %vm632, %v809, 0.0
  %v921 = vadd.f32 %v919, %v920
  %v922 = vsel %vm632, %v810, 0.0
  %v923 = vadd.f32 %v921, %v922
  %v924 = vsel %vm632, %v811, 0.0
  %v925 = vadd.f32 %v923, %v924
  %v926 = vsel %vm632, %v812, 0.0
  %v927 = vadd.f32 %v925, %v926
  %v928 = vsel %vm632, %v813, 0.0
  %v929 = vadd.f32 %v927, %v928
  %v930 = vsel %vm632, %v814, 0.0
  %v931 = vadd.f32 %v929, %v930
  %v932 = vsel %vm632, %v815, 0.0
  %v933 = vadd.f32 %v931, %v932
  %v934 = vsel %vm632, %v816, 0.0
  %v935 = vadd.f32 %v933, %v934
  %v936 = vsel %vm632, %v817, 0.0
  %v937 = vadd.f32 %v935, %v936
  %v938 = vsel %vm632, %v818, 0.0
  %v939 = vadd.f32 %v937, %v938
  %v940 = vsel %vm632, %v819, 0.0
  %v941 = vadd.f32 %v939, %v940
  %v942 = vsel %vm632, %v820, 0.0
  %v943 = vadd.f32 %v941, %v942
  %v944 = vsel %vm632, %v821, 0.0
  %v945 = vadd.f32 %v943, %v944
  %v946 = vsel %vm632, %v822, 0.0
  %v947 = vadd.f32 %v945, %v946
  %v948 = vsel %vm632, %v823, 0.0
  %v949 = vadd.f32 %v947, %v948
  %v950 = vsel %vm632, %v824, 0.0
  %v951 = vadd.f32 %v949, %v950
  %952 = vst.msk [vmem:[%s4] sm:$0xff] %vm632, %v951
  // Predicated region
  $region10: #{discriminator_forward.5} parent=0 // pred_check
    _
  $region11: #{discriminator_forward.5} parent=0 // pred_check_branch
    %954 = sbr.rel (0) target = $region13
  $region12: #{discriminator_forward.5} parent=0 // pred_region
    _
  $region13: #{discriminator_forward.5} parent=0 // pred_fallthru
    _
  // Predicated region
  $region14: #{discriminator_forward.5} parent=0 // pred_check
    _
  $region15: #{discriminator_forward.5} parent=0 // pred_check_branch
    %956 = sbr.rel (0) target = $region17
  $region16: #{discriminator_forward.5} parent=0 // pred_region
    _
  $region17: #{discriminator_forward.5} parent=0 // pred_fallthru
    _
  // Predicated region
  $region18: #{discriminator_forward.5} parent=0 // pred_check
    _
  $region19: #{discriminator_forward.5} parent=0 // pred_check_branch
    %958 = sbr.rel (0) target = $region21
  $region20: #{discriminator_forward.5} parent=0 // pred_region
    _
  $region21: #{discriminator_forward.5} parent=0 // pred_fallthru
    _
  // Predicated region
  $region22: #{discriminator_forward.5} parent=0 // pred_check
    _
  $region23: #{discriminator_forward.5} parent=0 // pred_check_branch
    %960 = sbr.rel (0) target = $region25
  $region24: #{discriminator_forward.5} parent=0 // pred_region
    _
  $region25: #{discriminator_forward.5} parent=0 // pred_fallthru
    _
  // Predicated region
  $region26: #{discriminator_forward.5} parent=0 // pred_check
    _
  $region27: #{discriminator_forward.5} parent=0 // pred_check_branch
    %962 = sbr.rel (0) target = $region29
  $region28: #{discriminator_forward.5} parent=0 // pred_region
    _
  $region29: #{discriminator_forward.5} parent=0 // pred_fallthru
    _
  // Predicated region
  $region30: #{discriminator_forward.5} parent=0 // pred_check
    _
  $region31: #{discriminator_forward.5} parent=0 // pred_check_branch
    %964 = sbr.rel (0) target = $region33
  $region32: #{discriminator_forward.5} parent=0 // pred_region
    _
  $region33: #{discriminator_forward.5} parent=0 // pred_fallthru
    _

// kernel: tile.23
$region0: #{tile.23}
  #allocation0 [shape = 's32[1]{0}', space=sflag, size = 0x4, scoped, tag = 'scoped memory for tile.23']
  %s0 = inlined_call_operand.vmem [shape: f32[16], index: 0, kind: input, shape index: {}]
  %s1 = inlined_call_operand.vmem [shape: f32[16,16], index: 1, kind: output, shape index: {}]
  // Predicated region
  $region2: #{tile.23} parent=0 // pred_check
    _
  $region3: #{tile.23} parent=0 // pred_check_branch
    %3 = sbr.rel (0) target = $region5
  $region4: #{tile.23} parent=0 // pred_region
    _
  $region5: #{tile.23} parent=0 // pred_fallthru
    _
  %v4 = vld [vmem:[%s0] ss:$0 sm:$0xff]
  %5 = vst [vmem:[%s1] sm:$0xff] %v4
  %s6 = scalar_lea.vmem %s1, 8
  %7 = vst [vmem:[%s6] sm:$0xff] %v4

// kernel: tile.24
$region0: #{tile.24}
  %s0 = inlined_call_operand.vmem [shape: f32[16,16], index: 0, kind: input, shape index: {}]
  %s1 = inlined_call_operand.vmem [shape: f32[1,256], index: 1, kind: output, shape index: {}]
  $region1: #{tile.24} parent=0
    #allocation0 [shape = 'u8[8192]{0}', space=vmem, size = 0x2000, scoped, tag = 'scoped mem for output reshape']
    %s2 = smov 3
    %v3 = vld [vmem:[%s0] ss:$8 sm:%s2]
    %vm4 = vcmask 130048
    %5 = vst.msk [vmem:[#allocation0] ss:$8 sm:$0x3] %vm4, %v3
    %s6 = scalar_lea.vmem %s0, 7
    %s7 = smov 3
    %v8 = vld [vmem:[%s6] ss:$8 sm:%s7]
    %9 = vrot.lane.b32.xlu0 %v8, 112
    %v10 = vpop.permute.xlu0 %9
    %vm11 = vcmask 1048448
    %12 = vst.msk [vmem:[#allocation0] ss:$8 sm:$0x3] %vm11, %v10
    %s13 = scalar_lea.vmem %s0, 6
    %s14 = smov 3
    %v15 = vld [vmem:[%s13] ss:$8 sm:%s14]
    %16 = vrot.lane.b32.xlu0 %v15, 96
    %v17 = vpop.permute.xlu0 %16
    %vm18 = vcmask 917248
    %19 = vst.msk [vmem:[#allocation0] ss:$8 sm:$0x3] %vm18, %v17
    %s20 = scalar_lea.vmem %s0, 5
    %s21 = smov 3
    %v22 = vld [vmem:[%s20] ss:$8 sm:%s21]
    %23 = vrot.lane.b32.xlu0 %v22, 80
    %v24 = vpop.permute.xlu0 %23
    %vm25 = vcmask 786048
    %26 = vst.msk [vmem:[#allocation0] ss:$8 sm:$0x3] %vm25, %v24
    %s27 = scalar_lea.vmem %s0, 4
    %s28 = smov 3
    %v29 = vld [vmem:[%s27] ss:$8 sm:%s28]
    %30 = vrot.lane.b32.xlu0 %v29, 64
    %v31 = vpop.permute.xlu0 %30
    %vm32 = vcmask 654848
    %33 = vst.msk [vmem:[#allocation0] ss:$8 sm:$0x3] %vm32, %v31
    %s34 = scalar_lea.vmem %s0, 3
    %s35 = smov 3
    %v36 = vld [vmem:[%s34] ss:$8 sm:%s35]
    %37 = vrot.lane.b32.xlu0 %v36, 48
    %v38 = vpop.permute.xlu0 %37
    %vm39 = vcmask 523648
    %40 = vst.msk [vmem:[#allocation0] ss:$8 sm:$0x3] %vm39, %v38
    %s41 = scalar_lea.vmem %s0, 2
    %s42 = smov 3
    %v43 = vld [vmem:[%s41] ss:$8 sm:%s42]
    %44 = vrot.lane.b32.xlu0 %v43, 32
    %v45 = vpop.permute.xlu0 %44
    %vm46 = vcmask 392448
    %47 = vst.msk [vmem:[#allocation0] ss:$8 sm:$0x3] %vm46, %v45
    %s48 = scalar_lea.vmem %s0, 1
    %s49 = smov 3
    %v50 = vld [vmem:[%s48] ss:$8 sm:%s49]
    %51 = vrot.lane.b32.xlu0 %v50, 16
    %v52 = vpop.permute.xlu0 %51
    %vm53 = vcmask 261248
    %54 = vst.msk [vmem:[#allocation0] ss:$8 sm:$0x3] %vm53, %v52
    %s56 = ssub.s32 2, 1
    %v57 = vld [vmem:[#allocation0] sm:%s56]
    %s59 = ssub.s32 2, 1
    %60 = vst [vmem:[%s1] sm:%s59] %v57
    %s61 = scalar_lea.vmem [#allocation0], 8
    %v62 = vld [vmem:[%s61] sm:%s56]
    %s64 = ssub.s32 2, 1
    %s65 = scalar_lea.vmem %s1, 1
    %66 = vst [vmem:[%s65] sm:%s64] %v62

// kernel: discriminator_forward.6
$region0: #{discriminator_forward.6}
  #allocation0 [shape = 'u32[]', space=smem, size = 0x4, offset = 0x4, fixed_abs, tag = 'smem constant byte address 0x4 - core index']
  #allocation1 [shape = 'u32[72,128]{1,0:T(1,128)}', space=vmem, size = 0x9000, scoped, tag = 'internal scratch']
  %s0 = inlined_call_operand.vmem [shape: bf16[128,256], index: 0, kind: input, shape index: {}]
  %s1 = inlined_call_operand.vmem [shape: bf16[256,32], index: 1, kind: input, shape index: {}]
  %s2 = inlined_call_operand.vmem [shape: f32[1,256], index: 2, kind: input, shape index: {}]
  %s3 = inlined_call_operand.vmem [shape: f32[1,256], index: 3, kind: input, shape index: {}]
  %s4 = inlined_call_operand.vmem [shape: bf16[128,32], index: 4, kind: output, shape index: {0}]
  %s5 = inlined_call_operand.vmem [shape: f32[8,32], index: 5, kind: output, shape index: {1}]
  %s6 = inlined_call_operand.vmem [shape: f32[8,32], index: 6, kind: output, shape index: {2}]
  %7 = xla_tuple %s4, %s5, %s6
  %s8 = sld [smem:[#allocation0]]
  $region42: #{discriminator_forward.6} parent=0
    _
  %s10 = ssub.s32 1, %s8
  %s11 = scalar_select 0, %s10, %s8
  // Predicated region
  $region2: #{discriminator_forward.6} parent=0 // pred_check
    _
  $region3: #{discriminator_forward.6} parent=0 // pred_check_branch
    %13 = sbr.rel (0) target = $region5
  $region4: #{discriminator_forward.6} parent=0 // pred_region
    _
  $region5: #{discriminator_forward.6} parent=0 // pred_fallthru
    _
  // Predicated region
  $region6: #{discriminator_forward.6} parent=0 // pred_check
    _
  $region7: #{discriminator_forward.6} parent=0 // pred_check_branch
    %15 = sbr.rel (0) target = $region9
  $region8: #{discriminator_forward.6} parent=0 // pred_region
    _
  $region9: #{discriminator_forward.6} parent=0 // pred_fallthru
    _
  // Predicated region
  $region10: #{discriminator_forward.6} parent=0 // pred_check
    _
  $region11: #{discriminator_forward.6} parent=0 // pred_check_branch
    %17 = sbr.rel (0) target = $region13
  $region12: #{discriminator_forward.6} parent=0 // pred_region
    _
  $region13: #{discriminator_forward.6} parent=0 // pred_fallthru
    _
  // Predicated region
  $region14: #{discriminator_forward.6} parent=0 // pred_check
    _
  $region15: #{discriminator_forward.6} parent=0 // pred_check_branch
    %19 = sbr.rel (0) target = $region17
  $region16: #{discriminator_forward.6} parent=0 // pred_region
    _
  $region17: #{discriminator_forward.6} parent=0 // pred_fallthru
    _
  %v20 = vld [vmem:[%s0] sm:$0xff]
  %v21 = vld [vmem:[%s0 + $0x8] sm:$0xff]
  %v22 = vld [vmem:[%s0 + $0x10] sm:$0xff]
  %v23 = vld [vmem:[%s0 + $0x18] sm:$0xff]
  %v24 = vld [vmem:[%s0 + $0x20] sm:$0xff]
  %v25 = vld [vmem:[%s0 + $0x28] sm:$0xff]
  %v26 = vld [vmem:[%s0 + $0x30] sm:$0xff]
  %v27 = vld [vmem:[%s0 + $0x38] sm:$0xff]
  %v28 = vld [vmem:[%s0 + $0x40] sm:$0xff]
  %v29 = vld [vmem:[%s0 + $0x48] sm:$0xff]
  %v30 = vld [vmem:[%s0 + $0x50] sm:$0xff]
  %v31 = vld [vmem:[%s0 + $0x58] sm:$0xff]
  %v32 = vld [vmem:[%s0 + $0x60] sm:$0xff]
  %v33 = vld [vmem:[%s0 + $0x68] sm:$0xff]
  %v34 = vld [vmem:[%s0 + $0x70] sm:$0xff]
  %v35 = vld [vmem:[%s0 + $0x78] sm:$0xff]
  %v36 = vunpack.c.l.bf16 %v20
  %v37 = vunpack.c.h.bf16 %v20
  %v38 = vunpack.c.l.bf16 %v21
  %v39 = vunpack.c.h.bf16 %v21
  %v40 = vunpack.c.l.bf16 %v22
  %v41 = vunpack.c.h.bf16 %v22
  %v42 = vunpack.c.l.bf16 %v23
  %v43 = vunpack.c.h.bf16 %v23
  %v44 = vunpack.c.l.bf16 %v24
  %v45 = vunpack.c.h.bf16 %v24
  %v46 = vunpack.c.l.bf16 %v25
  %v47 = vunpack.c.h.bf16 %v25
  %v48 = vunpack.c.l.bf16 %v26
  %v49 = vunpack.c.h.bf16 %v26
  %v50 = vunpack.c.l.bf16 %v27
  %v51 = vunpack.c.h.bf16 %v27
  %v52 = vunpack.c.l.bf16 %v28
  %v53 = vunpack.c.h.bf16 %v28
  %v54 = vunpack.c.l.bf16 %v29
  %v55 = vunpack.c.h.bf16 %v29
  %v56 = vunpack.c.l.bf16 %v30
  %v57 = vunpack.c.h.bf16 %v30
  %v58 = vunpack.c.l.bf16 %v31
  %v59 = vunpack.c.h.bf16 %v31
  %v60 = vunpack.c.l.bf16 %v32
  %v61 = vunpack.c.h.bf16 %v32
  %v62 = vunpack.c.l.bf16 %v33
  %v63 = vunpack.c.h.bf16 %v33
  %v64 = vunpack.c.l.bf16 %v34
  %v65 = vunpack.c.h.bf16 %v34
  %v66 = vunpack.c.l.bf16 %v35
  %v67 = vunpack.c.h.bf16 %v35
  %v68 = vld [vmem:[%s2] sm:$0x3]
  %v70 = vperm.slane %v68, 0
  %v71 = vperm.slane %v68, 1
  %v74 = vmul.f32 %v36, %v70
  %v75 = vmul.f32 %v37, %v71
  %v76 = vmul.f32 %v38, %v70
  %v77 = vmul.f32 %v39, %v71
  %v78 = vmul.f32 %v40, %v70
  %v79 = vmul.f32 %v41, %v71
  %v80 = vmul.f32 %v42, %v70
  %v81 = vmul.f32 %v43, %v71
  %v82 = vmul.f32 %v44, %v70
  %v83 = vmul.f32 %v45, %v71
  %v84 = vmul.f32 %v46, %v70
  %v85 = vmul.f32 %v47, %v71
  %v86 = vmul.f32 %v48, %v70
  %v87 = vmul.f32 %v49, %v71
  %v88 = vmul.f32 %v50, %v70
  %v89 = vmul.f32 %v51, %v71
  %v90 = vmul.f32 %v52, %v70
  %v91 = vmul.f32 %v53, %v71
  %v92 = vmul.f32 %v54, %v70
  %v93 = vmul.f32 %v55, %v71
  %v94 = vmul.f32 %v56, %v70
  %v95 = vmul.f32 %v57, %v71
  %v96 = vmul.f32 %v58, %v70
  %v97 = vmul.f32 %v59, %v71
  %v98 = vmul.f32 %v60, %v70
  %v99 = vmul.f32 %v61, %v71
  %v100 = vmul.f32 %v62, %v70
  %v101 = vmul.f32 %v63, %v71
  %v102 = vmul.f32 %v64, %v70
  %v103 = vmul.f32 %v65, %v71
  %v104 = vmul.f32 %v66, %v70
  %v105 = vmul.f32 %v67, %v71
  %v106 = vld [vmem:[%s3] sm:$0x3]
  %v108 = vperm.slane %v106, 0
  %v109 = vperm.slane %v106, 1
  %v112 = vadd.f32 %v74, %v108
  %v113 = vadd.f32 %v75, %v109
  %v114 = vadd.f32 %v76, %v108
  %v115 = vadd.f32 %v77, %v109
  %v116 = vadd.f32 %v78, %v108
  %v117 = vadd.f32 %v79, %v109
  %v118 = vadd.f32 %v80, %v108
  %v119 = vadd.f32 %v81, %v109
  %v120 = vadd.f32 %v82, %v108
  %v121 = vadd.f32 %v83, %v109
  %v122 = vadd.f32 %v84, %v108
  %v123 = vadd.f32 %v85, %v109
  %v124 = vadd.f32 %v86, %v108
  %v125 = vadd.f32 %v87, %v109
  %v126 = vadd.f32 %v88, %v108
  %v127 = vadd.f32 %v89, %v109
  %v128 = vadd.f32 %v90, %v108
  %v129 = vadd.f32 %v91, %v109
  %v130 = vadd.f32 %v92, %v108
  %v131 = vadd.f32 %v93, %v109
  %v132 = vadd.f32 %v94, %v108
  %v133 = vadd.f32 %v95, %v109
  %v134 = vadd.f32 %v96, %v108
  %v135 = vadd.f32 %v97, %v109
  %v136 = vadd.f32 %v98, %v108
  %v137 = vadd.f32 %v99, %v109
  %v138 = vadd.f32 %v100, %v108
  %v139 = vadd.f32 %v101, %v109
  %v140 = vadd.f32 %v102, %v108
  %v141 = vadd.f32 %v103, %v109
  %v142 = vadd.f32 %v104, %v108
  %v143 = vadd.f32 %v105, %v109
  %vm144 = vcmp.gt.f32.partialorder %v112, 0.0
  %vm145 = vcmp.gt.f32.partialorder %v113, 0.0
  %vm146 = vcmp.gt.f32.partialorder %v114, 0.0
  %vm147 = vcmp.gt.f32.partialorder %v115, 0.0
  %vm148 = vcmp.gt.f32.partialorder %v116, 0.0
  %vm149 = vcmp.gt.f32.partialorder %v117, 0.0
  %vm150 = vcmp.gt.f32.partialorder %v118, 0.0
  %vm151 = vcmp.gt.f32.partialorder %v119, 0.0
  %vm152 = vcmp.gt.f32.partialorder %v120, 0.0
  %vm153 = vcmp.gt.f32.partialorder %v121, 0.0
  %vm154 = vcmp.gt.f32.partialorder %v122, 0.0
  %vm155 = vcmp.gt.f32.partialorder %v123, 0.0
  %vm156 = vcmp.gt.f32.partialorder %v124, 0.0
  %vm157 = vcmp.gt.f32.partialorder %v125, 0.0
  %vm158 = vcmp.gt.f32.partialorder %v126, 0.0
  %vm159 = vcmp.gt.f32.partialorder %v127, 0.0
  %vm160 = vcmp.gt.f32.partialorder %v128, 0.0
  %vm161 = vcmp.gt.f32.partialorder %v129, 0.0
  %vm162 = vcmp.gt.f32.partialorder %v130, 0.0
  %vm163 = vcmp.gt.f32.partialorder %v131, 0.0
  %vm164 = vcmp.gt.f32.partialorder %v132, 0.0
  %vm165 = vcmp.gt.f32.partialorder %v133, 0.0
  %vm166 = vcmp.gt.f32.partialorder %v134, 0.0
  %vm167 = vcmp.gt.f32.partialorder %v135, 0.0
  %vm168 = vcmp.gt.f32.partialorder %v136, 0.0
  %vm169 = vcmp.gt.f32.partialorder %v137, 0.0
  %vm170 = vcmp.gt.f32.partialorder %v138, 0.0
  %vm171 = vcmp.gt.f32.partialorder %v139, 0.0
  %vm172 = vcmp.gt.f32.partialorder %v140, 0.0
  %vm173 = vcmp.gt.f32.partialorder %v141, 0.0
  %vm174 = vcmp.gt.f32.partialorder %v142, 0.0
  %vm175 = vcmp.gt.f32.partialorder %v143, 0.0
  %v176 = vmul.f32 %v112, 0.2
  %v177 = vmul.f32 %v113, 0.2
  %v178 = vmul.f32 %v114, 0.2
  %v179 = vmul.f32 %v115, 0.2
  %v180 = vmul.f32 %v116, 0.2
  %v181 = vmul.f32 %v117, 0.2
  %v182 = vmul.f32 %v118, 0.2
  %v183 = vmul.f32 %v119, 0.2
  %v184 = vmul.f32 %v120, 0.2
  %v185 = vmul.f32 %v121, 0.2
  %v186 = vmul.f32 %v122, 0.2
  %v187 = vmul.f32 %v123, 0.2
  %v188 = vmul.f32 %v124, 0.2
  %v189 = vmul.f32 %v125, 0.2
  %v190 = vmul.f32 %v126, 0.2
  %v191 = vmul.f32 %v127, 0.2
  %v192 = vmul.f32 %v128, 0.2
  %v193 = vmul.f32 %v129, 0.2
  %v194 = vmul.f32 %v130, 0.2
  %v195 = vmul.f32 %v131, 0.2
  %v196 = vmul.f32 %v132, 0.2
  %v197 = vmul.f32 %v133, 0.2
  %v198 = vmul.f32 %v134, 0.2
  %v199 = vmul.f32 %v135, 0.2
  %v200 = vmul.f32 %v136, 0.2
  %v201 = vmul.f32 %v137, 0.2
  %v202 = vmul.f32 %v138, 0.2
  %v203 = vmul.f32 %v139, 0.2
  %v204 = vmul.f32 %v140, 0.2
  %v205 = vmul.f32 %v141, 0.2
  %v206 = vmul.f32 %v142, 0.2
  %v207 = vmul.f32 %v143, 0.2
  %v208 = vsel %vm144, %v112, %v176
  %v209 = vsel %vm145, %v113, %v177
  %v210 = vsel %vm146, %v114, %v178
  %v211 = vsel %vm147, %v115, %v179
  %v212 = vsel %vm148, %v116, %v180
  %v213 = vsel %vm149, %v117, %v181
  %v214 = vsel %vm150, %v118, %v182
  %v215 = vsel %vm151, %v119, %v183
  %v216 = vsel %vm152, %v120, %v184
  %v217 = vsel %vm153, %v121, %v185
  %v218 = vsel %vm154, %v122, %v186
  %v219 = vsel %vm155, %v123, %v187
  %v220 = vsel %vm156, %v124, %v188
  %v221 = vsel %vm157, %v125, %v189
  %v222 = vsel %vm158, %v126, %v190
  %v223 = vsel %vm159, %v127, %v191
  %v224 = vsel %vm160, %v128, %v192
  %v225 = vsel %vm161, %v129, %v193
  %v226 = vsel %vm162, %v130, %v194
  %v227 = vsel %vm163, %v131, %v195
  %v228 = vsel %vm164, %v132, %v196
  %v229 = vsel %vm165, %v133, %v197
  %v230 = vsel %vm166, %v134, %v198
  %v231 = vsel %vm167, %v135, %v199
  %v232 = vsel %vm168, %v136, %v200
  %v233 = vsel %vm169, %v137, %v201
  %v234 = vsel %vm170, %v138, %v202
  %v235 = vsel %vm171, %v139, %v203
  %v236 = vsel %vm172, %v140, %v204
  %v237 = vsel %vm173, %v141, %v205
  %v238 = vsel %vm174, %v142, %v206
  %v239 = vsel %vm175, %v143, %v207
  %v240 = vpack.c.bf16 %v210, %v208
  %v241 = vpack.c.bf16 %v211, %v209
  %v242 = vpack.c.bf16 %v214, %v212
  %v243 = vpack.c.bf16 %v215, %v213
  %v244 = vpack.c.bf16 %v218, %v216
  %v245 = vpack.c.bf16 %v219, %v217
  %v246 = vpack.c.bf16 %v222, %v220
  %v247 = vpack.c.bf16 %v223, %v221
  %v248 = vpack.c.bf16 %v226, %v224
  %v249 = vpack.c.bf16 %v227, %v225
  %v250 = vpack.c.bf16 %v230, %v228
  %v251 = vpack.c.bf16 %v231, %v229
  %v252 = vpack.c.bf16 %v234, %v232
  %v253 = vpack.c.bf16 %v235, %v233
  %v254 = vpack.c.bf16 %v238, %v236
  %v255 = vpack.c.bf16 %v239, %v237
  %v256 = vld [vmem:[%s1] sm:$0xf]
  %v257 = vld [vmem:[%s1 + $0x4] sm:$0xf]
  %v258 = vld [vmem:[%s1 + $0x8] sm:$0xf]
  %v259 = vld [vmem:[%s1 + $0xc] sm:$0xf]
  %v260 = vld [vmem:[%s1 + $0x10] sm:$0xf]
  %v261 = vld [vmem:[%s1 + $0x14] sm:$0xf]
  %v262 = vld [vmem:[%s1 + $0x18] sm:$0xf]
  %v263 = vld [vmem:[%s1 + $0x1c] sm:$0xf]
  %v264 = vld [vmem:[%s1 + $0x20] sm:$0xf]
  %v265 = vld [vmem:[%s1 + $0x24] sm:$0xf]
  %v266 = vld [vmem:[%s1 + $0x28] sm:$0xf]
  %v267 = vld [vmem:[%s1 + $0x2c] sm:$0xf]
  %v268 = vld [vmem:[%s1 + $0x30] sm:$0xf]
  %v269 = vld [vmem:[%s1 + $0x34] sm:$0xf]
  %v270 = vld [vmem:[%s1 + $0x38] sm:$0xf]
  %v271 = vld [vmem:[%s1 + $0x3c] sm:$0xf]
  %v272 = vld [vmem:[%s1 + $0x40] sm:$0xf]
  %v273 = vld [vmem:[%s1 + $0x44] sm:$0xf]
  %v274 = vld [vmem:[%s1 + $0x48] sm:$0xf]
  %v275 = vld [vmem:[%s1 + $0x4c] sm:$0xf]
  %v276 = vld [vmem:[%s1 + $0x50] sm:$0xf]
  %v277 = vld [vmem:[%s1 + $0x54] sm:$0xf]
  %v278 = vld [vmem:[%s1 + $0x58] sm:$0xf]
  %v279 = vld [vmem:[%s1 + $0x5c] sm:$0xf]
  %v280 = vld [vmem:[%s1 + $0x60] sm:$0xf]
  %v281 = vld [vmem:[%s1 + $0x64] sm:$0xf]
  %v282 = vld [vmem:[%s1 + $0x68] sm:$0xf]
  %v283 = vld [vmem:[%s1 + $0x6c] sm:$0xf]
  %v284 = vld [vmem:[%s1 + $0x70] sm:$0xf]
  %v285 = vld [vmem:[%s1 + $0x74] sm:$0xf]
  %v286 = vld [vmem:[%s1 + $0x78] sm:$0xf]
  %v287 = vld [vmem:[%s1 + $0x7c] sm:$0xf]
  %v320 = vunpack.c.l.b16 %v256
  %v321 = vunpack.c.l.b16 %v257
  %v322 = vunpack.c.l.b16 %v258
  %v323 = vunpack.c.l.b16 %v259
  %v324 = vunpack.c.l.b16 %v260
  %v325 = vunpack.c.l.b16 %v261
  %v326 = vunpack.c.l.b16 %v262
  %v327 = vunpack.c.l.b16 %v263
  %v328 = vunpack.c.l.b16 %v264
  %v329 = vunpack.c.l.b16 %v265
  %v330 = vunpack.c.l.b16 %v266
  %v331 = vunpack.c.l.b16 %v267
  %v332 = vunpack.c.l.b16 %v268
  %v333 = vunpack.c.l.b16 %v269
  %v334 = vunpack.c.l.b16 %v270
  %v335 = vunpack.c.l.b16 %v271
  %v336 = vunpack.c.l.b16 %v272
  %v337 = vunpack.c.l.b16 %v273
  %v338 = vunpack.c.l.b16 %v274
  %v339 = vunpack.c.l.b16 %v275
  %v340 = vunpack.c.l.b16 %v276
  %v341 = vunpack.c.l.b16 %v277
  %v342 = vunpack.c.l.b16 %v278
  %v343 = vunpack.c.l.b16 %v279
  %v344 = vunpack.c.l.b16 %v280
  %v345 = vunpack.c.l.b16 %v281
  %v346 = vunpack.c.l.b16 %v282
  %v347 = vunpack.c.l.b16 %v283
  %v348 = vunpack.c.l.b16 %v284
  %v349 = vunpack.c.l.b16 %v285
  %v350 = vunpack.c.l.b16 %v286
  %v351 = vunpack.c.l.b16 %v287
  %v352 = vpack.c.b16 %v321, %v320
  %v353 = vpack.c.b16 %v323, %v322
  %v354 = vpack.c.b16 %v325, %v324
  %v355 = vpack.c.b16 %v327, %v326
  %v356 = vpack.c.b16 %v329, %v328
  %v357 = vpack.c.b16 %v331, %v330
  %v358 = vpack.c.b16 %v333, %v332
  %v359 = vpack.c.b16 %v335, %v334
  %v360 = vpack.c.b16 %v337, %v336
  %v361 = vpack.c.b16 %v339, %v338
  %v362 = vpack.c.b16 %v341, %v340
  %v363 = vpack.c.b16 %v343, %v342
  %v364 = vpack.c.b16 %v345, %v344
  %v365 = vpack.c.b16 %v347, %v346
  %v366 = vpack.c.b16 %v349, %v348
  %v367 = vpack.c.b16 %v351, %v350
  %384 = vmatpush.bf16.msra.mxu0 %v359
  %385 = vmatpush.bf16.msra.mxu0 %v358
  %386 = vmatpush.bf16.msra.mxu0 %v357
  %387 = vmatpush.bf16.msra.mxu0 %v356
  %388 = vmatpush.bf16.msra.mxu0 %v355
  %389 = vmatpush.bf16.msra.mxu0 %v354
  %390 = vmatpush.bf16.msra.mxu0 %v353
  %391 = vmatpush.bf16.msra.mxu0 %v352
  %392 = vmatmul.bf16.gmra.mxu0 %v240
  %v393 = vpop.f32.mrf.mxu0
  %v394 = vadd.f32 0.0, %v393
  %v395 = vpop.f32.mrf.mxu0
  %v396 = vadd.f32 0.0, %v395
  %397 = vmatmul.bf16.gmra.mxu0 %v242
  %v398 = vpop.f32.mrf.mxu0
  %v399 = vadd.f32 0.0, %v398
  %v400 = vpop.f32.mrf.mxu0
  %v401 = vadd.f32 0.0, %v400
  %402 = vmatmul.bf16.gmra.mxu0 %v244
  %v403 = vpop.f32.mrf.mxu0
  %v404 = vadd.f32 0.0, %v403
  %v405 = vpop.f32.mrf.mxu0
  %v406 = vadd.f32 0.0, %v405
  %407 = vmatmul.bf16.gmra.mxu0 %v246
  %v408 = vpop.f32.mrf.mxu0
  %v409 = vadd.f32 0.0, %v408
  %v410 = vpop.f32.mrf.mxu0
  %v411 = vadd.f32 0.0, %v410
  %412 = vmatmul.bf16.gmra.mxu0 %v248
  %v413 = vpop.f32.mrf.mxu0
  %v414 = vadd.f32 0.0, %v413
  %v415 = vpop.f32.mrf.mxu0
  %v416 = vadd.f32 0.0, %v415
  %417 = vmatmul.bf16.gmra.mxu0 %v250
  %v418 = vpop.f32.mrf.mxu0
  %v419 = vadd.f32 0.0, %v418
  %v420 = vpop.f32.mrf.mxu0
  %v421 = vadd.f32 0.0, %v420
  %422 = vmatmul.bf16.gmra.mxu0 %v252
  %v423 = vpop.f32.mrf.mxu0
  %v424 = vadd.f32 0.0, %v423
  %v425 = vpop.f32.mrf.mxu0
  %v426 = vadd.f32 0.0, %v425
  %427 = vmatmul.bf16.gmra.mxu0 %v254
  %v428 = vpop.f32.mrf.mxu0
  %v429 = vadd.f32 0.0, %v428
  %v430 = vpop.f32.mrf.mxu0
  %v431 = vadd.f32 0.0, %v430
  %432 = vdwg.mxu0
  %433 = vmatpush.bf16.msra.mxu0 %v367
  %434 = vmatpush.bf16.msra.mxu0 %v366
  %435 = vmatpush.bf16.msra.mxu0 %v365
  %436 = vmatpush.bf16.msra.mxu0 %v364
  %437 = vmatpush.bf16.msra.mxu0 %v363
  %438 = vmatpush.bf16.msra.mxu0 %v362
  %439 = vmatpush.bf16.msra.mxu0 %v361
  %440 = vmatpush.bf16.msra.mxu0 %v360
  %441 = vmatmul.bf16.gmra.mxu0 %v241
  %v442 = vpop.f32.mrf.mxu0
  %v443 = vadd.f32 %v394, %v442
  %v444 = vpop.f32.mrf.mxu0
  %v445 = vadd.f32 %v396, %v444
  %446 = vmatmul.bf16.gmra.mxu0 %v243
  %v447 = vpop.f32.mrf.mxu0
  %v448 = vadd.f32 %v399, %v447
  %v449 = vpop.f32.mrf.mxu0
  %v450 = vadd.f32 %v401, %v449
  %451 = vmatmul.bf16.gmra.mxu0 %v245
  %v452 = vpop.f32.mrf.mxu0
  %v453 = vadd.f32 %v404, %v452
  %v454 = vpop.f32.mrf.mxu0
  %v455 = vadd.f32 %v406, %v454
  %456 = vmatmul.bf16.gmra.mxu0 %v247
  %v457 = vpop.f32.mrf.mxu0
  %v458 = vadd.f32 %v409, %v457
  %v459 = vpop.f32.mrf.mxu0
  %v460 = vadd.f32 %v411, %v459
  %461 = vmatmul.bf16.gmra.mxu0 %v249
  %v462 = vpop.f32.mrf.mxu0
  %v463 = vadd.f32 %v414, %v462
  %v464 = vpop.f32.mrf.mxu0
  %v465 = vadd.f32 %v416, %v464
  %466 = vmatmul.bf16.gmra.mxu0 %v251
  %v467 = vpop.f32.mrf.mxu0
  %v468 = vadd.f32 %v419, %v467
  %v469 = vpop.f32.mrf.mxu0
  %v470 = vadd.f32 %v421, %v469
  %471 = vmatmul.bf16.gmra.mxu0 %v253
  %v472 = vpop.f32.mrf.mxu0
  %v473 = vadd.f32 %v424, %v472
  %v474 = vpop.f32.mrf.mxu0
  %v475 = vadd.f32 %v426, %v474
  %476 = vmatmul.bf16.gmra.mxu0 %v255
  %v477 = vpop.f32.mrf.mxu0
  %v478 = vadd.f32 %v429, %v477
  %v479 = vpop.f32.mrf.mxu0
  %v480 = vadd.f32 %v431, %v479
  %481 = vdwg.mxu0
  %v482 = vpack.c.bf16 %v443, %v443
  %v483 = vpack.c.bf16 %v445, %v445
  %v484 = vpack.c.bf16 %v448, %v448
  %v485 = vpack.c.bf16 %v450, %v450
  %v486 = vpack.c.bf16 %v453, %v453
  %v487 = vpack.c.bf16 %v455, %v455
  %v488 = vpack.c.bf16 %v458, %v458
  %v489 = vpack.c.bf16 %v460, %v460
  %v490 = vpack.c.bf16 %v463, %v463
  %v491 = vpack.c.bf16 %v465, %v465
  %v492 = vpack.c.bf16 %v468, %v468
  %v493 = vpack.c.bf16 %v470, %v470
  %v494 = vpack.c.bf16 %v473, %v473
  %v495 = vpack.c.bf16 %v475, %v475
  %v496 = vpack.c.bf16 %v478, %v478
  %v497 = vpack.c.bf16 %v480, %v480
  %vm498 = vcmask 257024
  %499 = vst.msk [vmem:[%s4] sm:$0xf] %vm498, %v482
  %500 = vst.msk [vmem:[%s4 + $0x4] sm:$0xf] %vm498, %v483
  %501 = vst.msk [vmem:[%s4 + $0x8] sm:$0xf] %vm498, %v484
  %502 = vst.msk [vmem:[%s4 + $0xc] sm:$0xf] %vm498, %v485
  %503 = vst.msk [vmem:[%s4 + $0x10] sm:$0xf] %vm498, %v486
  %504 = vst.msk [vmem:[%s4 + $0x14] sm:$0xf] %vm498, %v487
  %505 = vst.msk [vmem:[%s4 + $0x18] sm:$0xf] %vm498, %v488
  %506 = vst.msk [vmem:[%s4 + $0x1c] sm:$0xf] %vm498, %v489
  %507 = vst.msk [vmem:[%s4 + $0x20] sm:$0xf] %vm498, %v490
  %508 = vst.msk [vmem:[%s4 + $0x24] sm:$0xf] %vm498, %v491
  %509 = vst.msk [vmem:[%s4 + $0x28] sm:$0xf] %vm498, %v492
  %510 = vst.msk [vmem:[%s4 + $0x2c] sm:$0xf] %vm498, %v493
  %511 = vst.msk [vmem:[%s4 + $0x30] sm:$0xf] %vm498, %v494
  %512 = vst.msk [vmem:[%s4 + $0x34] sm:$0xf] %vm498, %v495
  %513 = vst.msk [vmem:[%s4 + $0x38] sm:$0xf] %vm498, %v496
  %514 = vst.msk [vmem:[%s4 + $0x3c] sm:$0xf] %vm498, %v497
  %vm515 = vcmask 261120
  %v516 = vsel %vm515, %v443, 0.0
  %v517 = vsel %vm515, %v445, 0.0
  %v518 = vadd.f32 %v516, %v517
  %v519 = vsel %vm515, %v448, 0.0
  %v520 = vadd.f32 %v518, %v519
  %v521 = vsel %vm515, %v450, 0.0
  %v522 = vadd.f32 %v520, %v521
  %v523 = vsel %vm515, %v453, 0.0
  %v524 = vadd.f32 %v522, %v523
  %v525 = vsel %vm515, %v455, 0.0
  %v526 = vadd.f32 %v524, %v525
  %v527 = vsel %vm515, %v458, 0.0
  %v528 = vadd.f32 %v526, %v527
  %v529 = vsel %vm515, %v460, 0.0
  %v530 = vadd.f32 %v528, %v529
  %v531 = vsel %vm515, %v463, 0.0
  %v532 = vadd.f32 %v530, %v531
  %v533 = vsel %vm515, %v465, 0.0
  %v534 = vadd.f32 %v532, %v533
  %v535 = vsel %vm515, %v468, 0.0
  %v536 = vadd.f32 %v534, %v535
  %v537 = vsel %vm515, %v470, 0.0
  %v538 = vadd.f32 %v536, %v537
  %v539 = vsel %vm515, %v473, 0.0
  %v540 = vadd.f32 %v538, %v539
  %v541 = vsel %vm515, %v475, 0.0
  %v542 = vadd.f32 %v540, %v541
  %v543 = vsel %vm515, %v478, 0.0
  %v544 = vadd.f32 %v542, %v543
  %v545 = vsel %vm515, %v480, 0.0
  %v546 = vadd.f32 %v544, %v545
  %547 = vst.msk [vmem:[%s5] sm:$0xff] %vm515, %v546
  %v548 = vmul.f32 %v443, %v443
  %v549 = vmul.f32 %v445, %v445
  %v550 = vmul.f32 %v448, %v448
  %v551 = vmul.f32 %v450, %v450
  %v552 = vmul.f32 %v453, %v453
  %v553 = vmul.f32 %v455, %v455
  %v554 = vmul.f32 %v458, %v458
  %v555 = vmul.f32 %v460, %v460
  %v556 = vmul.f32 %v463, %v463
  %v557 = vmul.f32 %v465, %v465
  %v558 = vmul.f32 %v468, %v468
  %v559 = vmul.f32 %v470, %v470
  %v560 = vmul.f32 %v473, %v473
  %v561 = vmul.f32 %v475, %v475
  %v562 = vmul.f32 %v478, %v478
  %v563 = vmul.f32 %v480, %v480
  %v564 = vsel %vm515, %v548, 0.0
  %v565 = vsel %vm515, %v549, 0.0
  %v566 = vadd.f32 %v564, %v565
  %v567 = vsel %vm515, %v550, 0.0
  %v568 = vadd.f32 %v566, %v567
  %v569 = vsel %vm515, %v551, 0.0
  %v570 = vadd.f32 %v568, %v569
  %v571 = vsel %vm515, %v552, 0.0
  %v572 = vadd.f32 %v570, %v571
  %v573 = vsel %vm515, %v553, 0.0
  %v574 = vadd.f32 %v572, %v573
  %v575 = vsel %vm515, %v554, 0.0
  %v576 = vadd.f32 %v574, %v575
  %v577 = vsel %vm515, %v555, 0.0
  %v578 = vadd.f32 %v576, %v577
  %v579 = vsel %vm515, %v556, 0.0
  %v580 = vadd.f32 %v578, %v579
  %v581 = vsel %vm515, %v557, 0.0
  %v582 = vadd.f32 %v580, %v581
  %v583 = vsel %vm515, %v558, 0.0
  %v584 = vadd.f32 %v582, %v583
  %v585 = vsel %vm515, %v559, 0.0
  %v586 = vadd.f32 %v584, %v585
  %v587 = vsel %vm515, %v560, 0.0
  %v588 = vadd.f32 %v586, %v587
  %v589 = vsel %vm515, %v561, 0.0
  %v590 = vadd.f32 %v588, %v589
  %v591 = vsel %vm515, %v562, 0.0
  %v592 = vadd.f32 %v590, %v591
  %v593 = vsel %vm515, %v563, 0.0
  %v594 = vadd.f32 %v592, %v593
  %595 = vst.msk [vmem:[%s6] sm:$0xff] %vm515, %v594
  // Predicated region
  $region18: #{discriminator_forward.6} parent=0 // pred_check
    _
  $region19: #{discriminator_forward.6} parent=0 // pred_check_branch
    %597 = sbr.rel (0) target = $region21
  $region20: #{discriminator_forward.6} parent=0 // pred_region
    _
  $region21: #{discriminator_forward.6} parent=0 // pred_fallthru
    _
  // Predicated region
  $region22: #{discriminator_forward.6} parent=0 // pred_check
    _
  $region23: #{discriminator_forward.6} parent=0 // pred_check_branch
    %599 = sbr.rel (0) target = $region25
  $region24: #{discriminator_forward.6} parent=0 // pred_region
    _
  $region25: #{discriminator_forward.6} parent=0 // pred_fallthru
    _
  // Predicated region
  $region26: #{discriminator_forward.6} parent=0 // pred_check
    _
  $region27: #{discriminator_forward.6} parent=0 // pred_check_branch
    %601 = sbr.rel (0) target = $region29
  $region28: #{discriminator_forward.6} parent=0 // pred_region
    _
  $region29: #{discriminator_forward.6} parent=0 // pred_fallthru
    _
  // Predicated region
  $region30: #{discriminator_forward.6} parent=0 // pred_check
    _
  $region31: #{discriminator_forward.6} parent=0 // pred_check_branch
    %603 = sbr.rel (0) target = $region33
  $region32: #{discriminator_forward.6} parent=0 // pred_region
    _
  $region33: #{discriminator_forward.6} parent=0 // pred_fallthru
    _
  // Predicated region
  $region34: #{discriminator_forward.6} parent=0 // pred_check
    _
  $region35: #{discriminator_forward.6} parent=0 // pred_check_branch
    %605 = sbr.rel (0) target = $region37
  $region36: #{discriminator_forward.6} parent=0 // pred_region
    _
  $region37: #{discriminator_forward.6} parent=0 // pred_fallthru
    _
  // Predicated region
  $region38: #{discriminator_forward.6} parent=0 // pred_check
    _
  $region39: #{discriminator_forward.6} parent=0 // pred_check_branch
    %607 = sbr.rel (0) target = $region41
  $region40: #{discriminator_forward.6} parent=0 // pred_region
    _
  $region41: #{discriminator_forward.6} parent=0 // pred_fallthru
    _

// kernel: tile.33
$region0: #{tile.33}
  #allocation0 [shape = 's32[1]{0}', space=sflag, size = 0x4, scoped, tag = 'scoped memory for tile.33']
  %s0 = inlined_call_operand.vmem [shape: f32[32], index: 0, kind: input, shape index: {}]
  %s1 = inlined_call_operand.vmem [shape: f32[16,32], index: 1, kind: output, shape index: {}]
  // Predicated region
  $region2: #{tile.33} parent=0 // pred_check
    _
  $region3: #{tile.33} parent=0 // pred_check_branch
    %3 = sbr.rel (0) target = $region5
  $region4: #{tile.33} parent=0 // pred_region
    _
  $region5: #{tile.33} parent=0 // pred_fallthru
    _
  %v4 = vld [vmem:[%s0] ss:$0 sm:$0xff]
  %5 = vst [vmem:[%s1] sm:$0xff] %v4
  %s6 = scalar_lea.vmem %s1, 8
  %7 = vst [vmem:[%s6] sm:$0xff] %v4

// kernel: tile.34
$region0: #{tile.34}
  %s0 = inlined_call_operand.vmem [shape: f32[16,32], index: 0, kind: input, shape index: {}]
  %s1 = inlined_call_operand.vmem [shape: f32[1,512], index: 1, kind: output, shape index: {}]
  $region1: #{tile.34} parent=0
    #allocation0 [shape = 'u8[16384]{0}', space=vmem, size = 0x4000, scoped, tag = 'scoped mem for output reshape']
    %v2 = vld [vmem:[%s0] ss:$4 sm:$0xf]
    %vm3 = vcmask 261120
    %4 = vst.msk [vmem:[#allocation0] ss:$8 sm:$0xf] %vm3, %v2
    %s5 = scalar_lea.vmem %s0, 3
    %v6 = vld [vmem:[%s5] ss:$4 sm:$0xf]
    %7 = vrot.lane.b32.xlu0 %v6, 96
    %v8 = vpop.permute.xlu0 %7
    %vm9 = vcmask 1048320
    %10 = vst.msk [vmem:[#allocation0] ss:$8 sm:$0xf] %vm9, %v8
    %s11 = scalar_lea.vmem %s0, 2
    %v12 = vld [vmem:[%s11] ss:$4 sm:$0xf]
    %13 = vrot.lane.b32.xlu0 %v12, 64
    %v14 = vpop.permute.xlu0 %13
    %vm15 = vcmask 785920
    %16 = vst.msk [vmem:[#allocation0] ss:$8 sm:$0xf] %vm15, %v14
    %s17 = scalar_lea.vmem %s0, 1
    %v18 = vld [vmem:[%s17] ss:$4 sm:$0xf]
    %19 = vrot.lane.b32.xlu0 %v18, 32
    %v20 = vpop.permute.xlu0 %19
    %vm21 = vcmask 523520
    %22 = vst.msk [vmem:[#allocation0] ss:$8 sm:$0xf] %vm21, %v20
    %s24 = ssub.s32 2, 1
    %v25 = vld [vmem:[#allocation0] sm:%s24]
    %s27 = ssub.s32 2, 1
    %28 = vst [vmem:[%s1] sm:%s27] %v25
    %s29 = scalar_lea.vmem [#allocation0], 8
    %v30 = vld [vmem:[%s29] sm:%s24]
    %s32 = ssub.s32 2, 1
    %s33 = scalar_lea.vmem %s1, 1
    %34 = vst [vmem:[%s33] sm:%s32] %v30
    %s35 = scalar_lea.vmem [#allocation0], 16
    %v36 = vld [vmem:[%s35] sm:%s24]
    %s38 = ssub.s32 2, 1
    %s39 = scalar_lea.vmem %s1, 2
    %40 = vst [vmem:[%s39] sm:%s38] %v36
    %s41 = scalar_lea.vmem [#allocation0], 24
    %v42 = vld [vmem:[%s41] sm:%s24]
    %s44 = ssub.s32 2, 1
    %s45 = scalar_lea.vmem %s1, 3
    %46 = vst [vmem:[%s45] sm:%s44] %v42

// kernel: discriminator_forward.7
$region0: #{discriminator_forward.7}
  #allocation0 [shape = 'u32[]', space=smem, size = 0x4, offset = 0x4, fixed_abs, tag = 'smem constant byte address 0x4 - core index']
  #allocation1 [shape = 'u32[72,128]{1,0:T(1,128)}', space=vmem, size = 0x9000, scoped, tag = 'internal scratch']
  %s0 = inlined_call_operand.vmem [shape: bf16[32,512], index: 0, kind: input, shape index: {}]
  %s1 = inlined_call_operand.vmem [shape: bf16[512,64], index: 1, kind: input, shape index: {}]
  %s2 = inlined_call_operand.vmem [shape: f32[1,512], index: 2, kind: input, shape index: {}]
  %s3 = inlined_call_operand.vmem [shape: f32[1,512], index: 3, kind: input, shape index: {}]
  %s4 = inlined_call_operand.vmem [shape: bf16[32,64], index: 4, kind: output, shape index: {0}]
  %s5 = inlined_call_operand.vmem [shape: f32[8,64], index: 5, kind: output, shape index: {1}]
  %s6 = inlined_call_operand.vmem [shape: f32[8,64], index: 6, kind: output, shape index: {2}]
  %7 = xla_tuple %s4, %s5, %s6
  %s8 = sld [smem:[#allocation0]]
  $region42: #{discriminator_forward.7} parent=0
    _
  %s10 = ssub.s32 1, %s8
  %s11 = scalar_select 0, %s10, %s8
  // Predicated region
  $region2: #{discriminator_forward.7} parent=0 // pred_check
    _
  $region3: #{discriminator_forward.7} parent=0 // pred_check_branch
    %13 = sbr.rel (0) target = $region5
  $region4: #{discriminator_forward.7} parent=0 // pred_region
    _
  $region5: #{discriminator_forward.7} parent=0 // pred_fallthru
    _
  // Predicated region
  $region6: #{discriminator_forward.7} parent=0 // pred_check
    _
  $region7: #{discriminator_forward.7} parent=0 // pred_check_branch
    %15 = sbr.rel (0) target = $region9
  $region8: #{discriminator_forward.7} parent=0 // pred_region
    _
  $region9: #{discriminator_forward.7} parent=0 // pred_fallthru
    _
  // Predicated region
  $region10: #{discriminator_forward.7} parent=0 // pred_check
    _
  $region11: #{discriminator_forward.7} parent=0 // pred_check_branch
    %17 = sbr.rel (0) target = $region13
  $region12: #{discriminator_forward.7} parent=0 // pred_region
    _
  $region13: #{discriminator_forward.7} parent=0 // pred_fallthru
    _
  // Predicated region
  $region14: #{discriminator_forward.7} parent=0 // pred_check
    _
  $region15: #{discriminator_forward.7} parent=0 // pred_check_branch
    %19 = sbr.rel (0) target = $region17
  $region16: #{discriminator_forward.7} parent=0 // pred_region
    _
  $region17: #{discriminator_forward.7} parent=0 // pred_fallthru
    _
  %v20 = vld [vmem:[%s0] sm:$0xff]
  %v21 = vld [vmem:[%s0 + $0x8] sm:$0xff]
  %v22 = vld [vmem:[%s0 + $0x10] sm:$0xff]
  %v23 = vld [vmem:[%s0 + $0x18] sm:$0xff]
  %v24 = vld [vmem:[%s0 + $0x20] sm:$0xff]
  %v25 = vld [vmem:[%s0 + $0x28] sm:$0xff]
  %v26 = vld [vmem:[%s0 + $0x30] sm:$0xff]
  %v27 = vld [vmem:[%s0 + $0x38] sm:$0xff]
  %v28 = vunpack.c.l.bf16 %v20
  %v29 = vunpack.c.h.bf16 %v20
  %v30 = vunpack.c.l.bf16 %v21
  %v31 = vunpack.c.h.bf16 %v21
  %v32 = vunpack.c.l.bf16 %v22
  %v33 = vunpack.c.h.bf16 %v22
  %v34 = vunpack.c.l.bf16 %v23
  %v35 = vunpack.c.h.bf16 %v23
  %v36 = vunpack.c.l.bf16 %v24
  %v37 = vunpack.c.h.bf16 %v24
  %v38 = vunpack.c.l.bf16 %v25
  %v39 = vunpack.c.h.bf16 %v25
  %v40 = vunpack.c.l.bf16 %v26
  %v41 = vunpack.c.h.bf16 %v26
  %v42 = vunpack.c.l.bf16 %v27
  %v43 = vunpack.c.h.bf16 %v27
  %v44 = vld [vmem:[%s2] sm:$0xf]
  %v46 = vperm.slane %v44, 0
  %v47 = vperm.slane %v44, 1
  %v48 = vperm.slane %v44, 2
  %v49 = vperm.slane %v44, 3
  %v54 = vmul.f32 %v28, %v46
  %v55 = vmul.f32 %v29, %v47
  %v56 = vmul.f32 %v30, %v48
  %v57 = vmul.f32 %v31, %v49
  %v58 = vmul.f32 %v32, %v46
  %v59 = vmul.f32 %v33, %v47
  %v60 = vmul.f32 %v34, %v48
  %v61 = vmul.f32 %v35, %v49
  %v62 = vmul.f32 %v36, %v46
  %v63 = vmul.f32 %v37, %v47
  %v64 = vmul.f32 %v38, %v48
  %v65 = vmul.f32 %v39, %v49
  %v66 = vmul.f32 %v40, %v46
  %v67 = vmul.f32 %v41, %v47
  %v68 = vmul.f32 %v42, %v48
  %v69 = vmul.f32 %v43, %v49
  %v70 = vld [vmem:[%s3] sm:$0xf]
  %v72 = vperm.slane %v70, 0
  %v73 = vperm.slane %v70, 1
  %v74 = vperm.slane %v70, 2
  %v75 = vperm.slane %v70, 3
  %v80 = vadd.f32 %v54, %v72
  %v81 = vadd.f32 %v55, %v73
  %v82 = vadd.f32 %v56, %v74
  %v83 = vadd.f32 %v57, %v75
  %v84 = vadd.f32 %v58, %v72
  %v85 = vadd.f32 %v59, %v73
  %v86 = vadd.f32 %v60, %v74
  %v87 = vadd.f32 %v61, %v75
  %v88 = vadd.f32 %v62, %v72
  %v89 = vadd.f32 %v63, %v73
  %v90 = vadd.f32 %v64, %v74
  %v91 = vadd.f32 %v65, %v75
  %v92 = vadd.f32 %v66, %v72
  %v93 = vadd.f32 %v67, %v73
  %v94 = vadd.f32 %v68, %v74
  %v95 = vadd.f32 %v69, %v75
  %vm96 = vcmp.gt.f32.partialorder %v80, 0.0
  %vm97 = vcmp.gt.f32.partialorder %v81, 0.0
  %vm98 = vcmp.gt.f32.partialorder %v82, 0.0
  %vm99 = vcmp.gt.f32.partialorder %v83, 0.0
  %vm100 = vcmp.gt.f32.partialorder %v84, 0.0
  %vm101 = vcmp.gt.f32.partialorder %v85, 0.0
  %vm102 = vcmp.gt.f32.partialorder %v86, 0.0
  %vm103 = vcmp.gt.f32.partialorder %v87, 0.0
  %vm104 = vcmp.gt.f32.partialorder %v88, 0.0
  %vm105 = vcmp.gt.f32.partialorder %v89, 0.0
  %vm106 = vcmp.gt.f32.partialorder %v90, 0.0
  %vm107 = vcmp.gt.f32.partialorder %v91, 0.0
  %vm108 = vcmp.gt.f32.partialorder %v92, 0.0
  %vm109 = vcmp.gt.f32.partialorder %v93, 0.0
  %vm110 = vcmp.gt.f32.partialorder %v94, 0.0
  %vm111 = vcmp.gt.f32.partialorder %v95, 0.0
  %v112 = vmul.f32 %v80, 0.2
  %v113 = vmul.f32 %v81, 0.2
  %v114 = vmul.f32 %v82, 0.2
  %v115 = vmul.f32 %v83, 0.2
  %v116 = vmul.f32 %v84, 0.2
  %v117 = vmul.f32 %v85, 0.2
  %v118 = vmul.f32 %v86, 0.2
  %v119 = vmul.f32 %v87, 0.2
  %v120 = vmul.f32 %v88, 0.2
  %v121 = vmul.f32 %v89, 0.2
  %v122 = vmul.f32 %v90, 0.2
  %v123 = vmul.f32 %v91, 0.2
  %v124 = vmul.f32 %v92, 0.2
  %v125 = vmul.f32 %v93, 0.2
  %v126 = vmul.f32 %v94, 0.2
  %v127 = vmul.f32 %v95, 0.2
  %v128 = vsel %vm96, %v80, %v112
  %v129 = vsel %vm97, %v81, %v113
  %v130 = vsel %vm98, %v82, %v114
  %v131 = vsel %vm99, %v83, %v115
  %v132 = vsel %vm100, %v84, %v116
  %v133 = vsel %vm101, %v85, %v117
  %v134 = vsel %vm102, %v86, %v118
  %v135 = vsel %vm103, %v87, %v119
  %v136 = vsel %vm104, %v88, %v120
  %v137 = vsel %vm105, %v89, %v121
  %v138 = vsel %vm106, %v90, %v122
  %v139 = vsel %vm107, %v91, %v123
  %v140 = vsel %vm108, %v92, %v124
  %v141 = vsel %vm109, %v93, %v125
  %v142 = vsel %vm110, %v94, %v126
  %v143 = vsel %vm111, %v95, %v127
  %v144 = vpack.c.bf16 %v132, %v128
  %v145 = vpack.c.bf16 %v133, %v129
  %v146 = vpack.c.bf16 %v134, %v130
  %v147 = vpack.c.bf16 %v135, %v131
  %v148 = vpack.c.bf16 %v140, %v136
  %v149 = vpack.c.bf16 %v141, %v137
  %v150 = vpack.c.bf16 %v142, %v138
  %v151 = vpack.c.bf16 %v143, %v139
  %v152 = vld [vmem:[%s1] sm:$0xf]
  %v153 = vld [vmem:[%s1 + $0x4] sm:$0xf]
  %v154 = vld [vmem:[%s1 + $0x8] sm:$0xf]
  %v155 = vld [vmem:[%s1 + $0xc] sm:$0xf]
  %v156 = vld [vmem:[%s1 + $0x10] sm:$0xf]
  %v157 = vld [vmem:[%s1 + $0x14] sm:$0xf]
  %v158 = vld [vmem:[%s1 + $0x18] sm:$0xf]
  %v159 = vld [vmem:[%s1 + $0x1c] sm:$0xf]
  %v160 = vld [vmem:[%s1 + $0x20] sm:$0xf]
  %v161 = vld [vmem:[%s1 + $0x24] sm:$0xf]
  %v162 = vld [vmem:[%s1 + $0x28] sm:$0xf]
  %v163 = vld [vmem:[%s1 + $0x2c] sm:$0xf]
  %v164 = vld [vmem:[%s1 + $0x30] sm:$0xf]
  %v165 = vld [vmem:[%s1 + $0x34] sm:$0xf]
  %v166 = vld [vmem:[%s1 + $0x38] sm:$0xf]
  %v167 = vld [vmem:[%s1 + $0x3c] sm:$0xf]
  %v168 = vld [vmem:[%s1 + $0x40] sm:$0xf]
  %v169 = vld [vmem:[%s1 + $0x44] sm:$0xf]
  %v170 = vld [vmem:[%s1 + $0x48] sm:$0xf]
  %v171 = vld [vmem:[%s1 + $0x4c] sm:$0xf]
  %v172 = vld [vmem:[%s1 + $0x50] sm:$0xf]
  %v173 = vld [vmem:[%s1 + $0x54] sm:$0xf]
  %v174 = vld [vmem:[%s1 + $0x58] sm:$0xf]
  %v175 = vld [vmem:[%s1 + $0x5c] sm:$0xf]
  %v176 = vld [vmem:[%s1 + $0x60] sm:$0xf]
  %v177 = vld [vmem:[%s1 + $0x64] sm:$0xf]
  %v178 = vld [vmem:[%s1 + $0x68] sm:$0xf]
  %v179 = vld [vmem:[%s1 + $0x6c] sm:$0xf]
  %v180 = vld [vmem:[%s1 + $0x70] sm:$0xf]
  %v181 = vld [vmem:[%s1 + $0x74] sm:$0xf]
  %v182 = vld [vmem:[%s1 + $0x78] sm:$0xf]
  %v183 = vld [vmem:[%s1 + $0x7c] sm:$0xf]
  %v184 = vld [vmem:[%s1 + $0x80] sm:$0xf]
  %v185 = vld [vmem:[%s1 + $0x84] sm:$0xf]
  %v186 = vld [vmem:[%s1 + $0x88] sm:$0xf]
  %v187 = vld [vmem:[%s1 + $0x8c] sm:$0xf]
  %v188 = vld [vmem:[%s1 + $0x90] sm:$0xf]
  %v189 = vld [vmem:[%s1 + $0x94] sm:$0xf]
  %v190 = vld [vmem:[%s1 + $0x98] sm:$0xf]
  %v191 = vld [vmem:[%s1 + $0x9c] sm:$0xf]
  %v192 = vld [vmem:[%s1 + $0xa0] sm:$0xf]
  %v193 = vld [vmem:[%s1 + $0xa4] sm:$0xf]
  %v194 = vld [vmem:[%s1 + $0xa8] sm:$0xf]
  %v195 = vld [vmem:[%s1 + $0xac] sm:$0xf]
  %v196 = vld [vmem:[%s1 + $0xb0] sm:$0xf]
  %v197 = vld [vmem:[%s1 + $0xb4] sm:$0xf]
  %v198 = vld [vmem:[%s1 + $0xb8] sm:$0xf]
  %v199 = vld [vmem:[%s1 + $0xbc] sm:$0xf]
  %v200 = vld [vmem:[%s1 + $0xc0] sm:$0xf]
  %v201 = vld [vmem:[%s1 + $0xc4] sm:$0xf]
  %v202 = vld [vmem:[%s1 + $0xc8] sm:$0xf]
  %v203 = vld [vmem:[%s1 + $0xcc] sm:$0xf]
  %v204 = vld [vmem:[%s1 + $0xd0] sm:$0xf]
  %v205 = vld [vmem:[%s1 + $0xd4] sm:$0xf]
  %v206 = vld [vmem:[%s1 + $0xd8] sm:$0xf]
  %v207 = vld [vmem:[%s1 + $0xdc] sm:$0xf]
  %v208 = vld [vmem:[%s1 + $0xe0] sm:$0xf]
  %v209 = vld [vmem:[%s1 + $0xe4] sm:$0xf]
  %v210 = vld [vmem:[%s1 + $0xe8] sm:$0xf]
  %v211 = vld [vmem:[%s1 + $0xec] sm:$0xf]
  %v212 = vld [vmem:[%s1 + $0xf0] sm:$0xf]
  %v213 = vld [vmem:[%s1 + $0xf4] sm:$0xf]
  %v214 = vld [vmem:[%s1 + $0xf8] sm:$0xf]
  %v215 = vld [vmem:[%s1 + $0xfc] sm:$0xf]
  %v280 = vunpack.c.l.b16 %v152
  %v281 = vunpack.c.l.b16 %v153
  %v282 = vunpack.c.l.b16 %v154
  %v283 = vunpack.c.l.b16 %v155
  %v284 = vunpack.c.l.b16 %v156
  %v285 = vunpack.c.l.b16 %v157
  %v286 = vunpack.c.l.b16 %v158
  %v287 = vunpack.c.l.b16 %v159
  %v288 = vunpack.c.l.b16 %v160
  %v289 = vunpack.c.l.b16 %v161
  %v290 = vunpack.c.l.b16 %v162
  %v291 = vunpack.c.l.b16 %v163
  %v292 = vunpack.c.l.b16 %v164
  %v293 = vunpack.c.l.b16 %v165
  %v294 = vunpack.c.l.b16 %v166
  %v295 = vunpack.c.l.b16 %v167
  %v296 = vunpack.c.l.b16 %v168
  %v297 = vunpack.c.l.b16 %v169
  %v298 = vunpack.c.l.b16 %v170
  %v299 = vunpack.c.l.b16 %v171
  %v300 = vunpack.c.l.b16 %v172
  %v301 = vunpack.c.l.b16 %v173
  %v302 = vunpack.c.l.b16 %v174
  %v303 = vunpack.c.l.b16 %v175
  %v304 = vunpack.c.l.b16 %v176
  %v305 = vunpack.c.l.b16 %v177
  %v306 = vunpack.c.l.b16 %v178
  %v307 = vunpack.c.l.b16 %v179
  %v308 = vunpack.c.l.b16 %v180
  %v309 = vunpack.c.l.b16 %v181
  %v310 = vunpack.c.l.b16 %v182
  %v311 = vunpack.c.l.b16 %v183
  %v312 = vunpack.c.l.b16 %v184
  %v313 = vunpack.c.l.b16 %v185
  %v314 = vunpack.c.l.b16 %v186
  %v315 = vunpack.c.l.b16 %v187
  %v316 = vunpack.c.l.b16 %v188
  %v317 = vunpack.c.l.b16 %v189
  %v318 = vunpack.c.l.b16 %v190
  %v319 = vunpack.c.l.b16 %v191
  %v320 = vunpack.c.l.b16 %v192
  %v321 = vunpack.c.l.b16 %v193
  %v322 = vunpack.c.l.b16 %v194
  %v323 = vunpack.c.l.b16 %v195
  %v324 = vunpack.c.l.b16 %v196
  %v325 = vunpack.c.l.b16 %v197
  %v326 = vunpack.c.l.b16 %v198
  %v327 = vunpack.c.l.b16 %v199
  %v328 = vunpack.c.l.b16 %v200
  %v329 = vunpack.c.l.b16 %v201
  %v330 = vunpack.c.l.b16 %v202
  %v331 = vunpack.c.l.b16 %v203
  %v332 = vunpack.c.l.b16 %v204
  %v333 = vunpack.c.l.b16 %v205
  %v334 = vunpack.c.l.b16 %v206
  %v335 = vunpack.c.l.b16 %v207
  %v336 = vunpack.c.l.b16 %v208
  %v337 = vunpack.c.l.b16 %v209
  %v338 = vunpack.c.l.b16 %v210
  %v339 = vunpack.c.l.b16 %v211
  %v340 = vunpack.c.l.b16 %v212
  %v341 = vunpack.c.l.b16 %v213
  %v342 = vunpack.c.l.b16 %v214
  %v343 = vunpack.c.l.b16 %v215
  %v344 = vpack.c.b16 %v281, %v280
  %v345 = vpack.c.b16 %v283, %v282
  %v346 = vpack.c.b16 %v285, %v284
  %v347 = vpack.c.b16 %v287, %v286
  %v348 = vpack.c.b16 %v289, %v288
  %v349 = vpack.c.b16 %v291, %v290
  %v350 = vpack.c.b16 %v293, %v292
  %v351 = vpack.c.b16 %v295, %v294
  %v352 = vpack.c.b16 %v297, %v296
  %v353 = vpack.c.b16 %v299, %v298
  %v354 = vpack.c.b16 %v301, %v300
  %v355 = vpack.c.b16 %v303, %v302
  %v356 = vpack.c.b16 %v305, %v304
  %v357 = vpack.c.b16 %v307, %v306
  %v358 = vpack.c.b16 %v309, %v308
  %v359 = vpack.c.b16 %v311, %v310
  %v360 = vpack.c.b16 %v313, %v312
  %v361 = vpack.c.b16 %v315, %v314
  %v362 = vpack.c.b16 %v317, %v316
  %v363 = vpack.c.b16 %v319, %v318
  %v364 = vpack.c.b16 %v321, %v320
  %v365 = vpack.c.b16 %v323, %v322
  %v366 = vpack.c.b16 %v325, %v324
  %v367 = vpack.c.b16 %v327, %v326
  %v368 = vpack.c.b16 %v329, %v328
  %v369 = vpack.c.b16 %v331, %v330
  %v370 = vpack.c.b16 %v333, %v332
  %v371 = vpack.c.b16 %v335, %v334
  %v372 = vpack.c.b16 %v337, %v336
  %v373 = vpack.c.b16 %v339, %v338
  %v374 = vpack.c.b16 %v341, %v340
  %v375 = vpack.c.b16 %v343, %v342
  %408 = vmatpush.bf16.msra.mxu0 %v351
  %409 = vmatpush.bf16.msra.mxu0 %v350
  %410 = vmatpush.bf16.msra.mxu0 %v349
  %411 = vmatpush.bf16.msra.mxu0 %v348
  %412 = vmatpush.bf16.msra.mxu0 %v347
  %413 = vmatpush.bf16.msra.mxu0 %v346
  %414 = vmatpush.bf16.msra.mxu0 %v345
  %415 = vmatpush.bf16.msra.mxu0 %v344
  %416 = vmatmul.bf16.gmra.mxu0 %v144
  %v417 = vpop.f32.mrf.mxu0
  %v418 = vadd.f32 0.0, %v417
  %v419 = vpop.f32.mrf.mxu0
  %v420 = vadd.f32 0.0, %v419
  %421 = vmatmul.bf16.gmra.mxu0 %v148
  %v422 = vpop.f32.mrf.mxu0
  %v423 = vadd.f32 0.0, %v422
  %v424 = vpop.f32.mrf.mxu0
  %v425 = vadd.f32 0.0, %v424
  %426 = vdwg.mxu0
  %427 = vmatpush.bf16.msra.mxu0 %v359
  %428 = vmatpush.bf16.msra.mxu0 %v358
  %429 = vmatpush.bf16.msra.mxu0 %v357
  %430 = vmatpush.bf16.msra.mxu0 %v356
  %431 = vmatpush.bf16.msra.mxu0 %v355
  %432 = vmatpush.bf16.msra.mxu0 %v354
  %433 = vmatpush.bf16.msra.mxu0 %v353
  %434 = vmatpush.bf16.msra.mxu0 %v352
  %435 = vmatmul.bf16.gmra.mxu0 %v145
  %v436 = vpop.f32.mrf.mxu0
  %v437 = vadd.f32 %v418, %v436
  %v438 = vpop.f32.mrf.mxu0
  %v439 = vadd.f32 %v420, %v438
  %440 = vmatmul.bf16.gmra.mxu0 %v149
  %v441 = vpop.f32.mrf.mxu0
  %v442 = vadd.f32 %v423, %v441
  %v443 = vpop.f32.mrf.mxu0
  %v444 = vadd.f32 %v425, %v443
  %445 = vdwg.mxu0
  %446 = vmatpush.bf16.msra.mxu0 %v367
  %447 = vmatpush.bf16.msra.mxu0 %v366
  %448 = vmatpush.bf16.msra.mxu0 %v365
  %449 = vmatpush.bf16.msra.mxu0 %v364
  %450 = vmatpush.bf16.msra.mxu0 %v363
  %451 = vmatpush.bf16.msra.mxu0 %v362
  %452 = vmatpush.bf16.msra.mxu0 %v361
  %453 = vmatpush.bf16.msra.mxu0 %v360
  %454 = vmatmul.bf16.gmra.mxu0 %v146
  %v455 = vpop.f32.mrf.mxu0
  %v456 = vadd.f32 %v437, %v455
  %v457 = vpop.f32.mrf.mxu0
  %v458 = vadd.f32 %v439, %v457
  %459 = vmatmul.bf16.gmra.mxu0 %v150
  %v460 = vpop.f32.mrf.mxu0
  %v461 = vadd.f32 %v442, %v460
  %v462 = vpop.f32.mrf.mxu0
  %v463 = vadd.f32 %v444, %v462
  %464 = vdwg.mxu0
  %465 = vmatpush.bf16.msra.mxu0 %v375
  %466 = vmatpush.bf16.msra.mxu0 %v374
  %467 = vmatpush.bf16.msra.mxu0 %v373
  %468 = vmatpush.bf16.msra.mxu0 %v372
  %469 = vmatpush.bf16.msra.mxu0 %v371
  %470 = vmatpush.bf16.msra.mxu0 %v370
  %471 = vmatpush.bf16.msra.mxu0 %v369
  %472 = vmatpush.bf16.msra.mxu0 %v368
  %473 = vmatmul.bf16.gmra.mxu0 %v147
  %v474 = vpop.f32.mrf.mxu0
  %v475 = vadd.f32 %v456, %v474
  %v476 = vpop.f32.mrf.mxu0
  %v477 = vadd.f32 %v458, %v476
  %478 = vmatmul.bf16.gmra.mxu0 %v151
  %v479 = vpop.f32.mrf.mxu0
  %v480 = vadd.f32 %v461, %v479
  %v481 = vpop.f32.mrf.mxu0
  %v482 = vadd.f32 %v463, %v481
  %483 = vdwg.mxu0
  %v484 = vpack.c.bf16 %v475, %v475
  %v485 = vpack.c.bf16 %v477, %v477
  %v486 = vpack.c.bf16 %v480, %v480
  %v487 = vpack.c.bf16 %v482, %v482
  %vm488 = vcmask 519168
  %489 = vst.msk [vmem:[%s4] sm:$0xf] %vm488, %v484
  %490 = vst.msk [vmem:[%s4 + $0x4] sm:$0xf] %vm488, %v485
  %491 = vst.msk [vmem:[%s4 + $0x8] sm:$0xf] %vm488, %v486
  %492 = vst.msk [vmem:[%s4 + $0xc] sm:$0xf] %vm488, %v487
  %vm493 = vcmask 523264
  %v494 = vsel %vm493, %v475, 0.0
  %v495 = vsel %vm493, %v477, 0.0
  %v496 = vadd.f32 %v494, %v495
  %v497 = vsel %vm493, %v480, 0.0
  %v498 = vadd.f32 %v496, %v497
  %v499 = vsel %vm493, %v482, 0.0
  %v500 = vadd.f32 %v498, %v499
  %501 = vst.msk [vmem:[%s5] sm:$0xff] %vm493, %v500
  %v502 = vmul.f32 %v475, %v475
  %v503 = vmul.f32 %v477, %v477
  %v504 = vmul.f32 %v480, %v480
  %v505 = vmul.f32 %v482, %v482
  %v506 = vsel %vm493, %v502, 0.0
  %v507 = vsel %vm493, %v503, 0.0
  %v508 = vadd.f32 %v506, %v507
  %v509 = vsel %vm493, %v504, 0.0
  %v510 = vadd.f32 %v508, %v509
  %v511 = vsel %vm493, %v505, 0.0
  %v512 = vadd.f32 %v510, %v511
  %513 = vst.msk [vmem:[%s6] sm:$0xff] %vm493, %v512
  // Predicated region
  $region18: #{discriminator_forward.7} parent=0 // pred_check
    _
  $region19: #{discriminator_forward.7} parent=0 // pred_check_branch
    %515 = sbr.rel (0) target = $region21
  $region20: #{discriminator_forward.7} parent=0 // pred_region
    _
  $region21: #{discriminator_forward.7} parent=0 // pred_fallthru
    _
  // Predicated region
  $region22: #{discriminator_forward.7} parent=0 // pred_check
    _
  $region23: #{discriminator_forward.7} parent=0 // pred_check_branch
    %517 = sbr.rel (0) target = $region25
  $region24: #{discriminator_forward.7} parent=0 // pred_region
    _
  $region25: #{discriminator_forward.7} parent=0 // pred_fallthru
    _
  // Predicated region
  $region26: #{discriminator_forward.7} parent=0 // pred_check
    _
  $region27: #{discriminator_forward.7} parent=0 // pred_check_branch
    %519 = sbr.rel (0) target = $region29
  $region28: #{discriminator_forward.7} parent=0 // pred_region
    _
  $region29: #{discriminator_forward.7} parent=0 // pred_fallthru
    _
  // Predicated region
  $region30: #{discriminator_forward.7} parent=0 // pred_check
    _
  $region31: #{discriminator_forward.7} parent=0 // pred_check_branch
    %521 = sbr.rel (0) target = $region33
  $region32: #{discriminator_forward.7} parent=0 // pred_region
    _
  $region33: #{discriminator_forward.7} parent=0 // pred_fallthru
    _
  // Predicated region
  $region34: #{discriminator_forward.7} parent=0 // pred_check
    _
  $region35: #{discriminator_forward.7} parent=0 // pred_check_branch
    %523 = sbr.rel (0) target = $region37
  $region36: #{discriminator_forward.7} parent=0 // pred_region
    _
  $region37: #{discriminator_forward.7} parent=0 // pred_fallthru
    _
  // Predicated region
  $region38: #{discriminator_forward.7} parent=0 // pred_check
    _
  $region39: #{discriminator_forward.7} parent=0 // pred_check_branch
    %525 = sbr.rel (0) target = $region41
  $region40: #{discriminator_forward.7} parent=0 // pred_region
    _
  $region41: #{discriminator_forward.7} parent=0 // pred_fallthru
    _

</llo_original>
